<compile_context>
chip_gen: v7x
topology: tpu7x:2x2x1
jax: 0.10.0
libtpu: 0.0.40
codegen_flags: <defaults>
</compile_context>

<pallas_src>
import functools

import jax
import jax.numpy as jnp
from jax import lax
from jax.experimental import pallas as pl
from jax.experimental.pallas import tpu as pltpu

LANE = 128


# ---------------------------- helpers ----------------------------

def _round_up(n, m):
    return ((n + m - 1) // m) * m


def _pad2(a, rows, cols):
    return jnp.pad(a, ((0, rows - a.shape[0]), (0, cols - a.shape[1])))


def _pack_row(*vals):
    # pack a few scalars into one lane-dense (1, LANE) row
    col = lax.broadcasted_iota(jnp.int32, (1, LANE), 1)
    out = jnp.zeros((1, LANE), jnp.float32)
    for idx, v in enumerate(vals):
        out = out + jnp.where(col == idx, v, 0.0)
    return out


# ---------------------------- fused Pallas kernel ----------------------------

def _fused_forward_kernel(x_ref, enc_w_ref, enc_b_ref, w_ref, b_ref,
                          asl_ref, dinv_ref, dinvr_ref,
                          xs_ref, e_ref, *, num_layers):
    # Graph quantities loaded once; resident in VMEM for the whole forward.
    a_sl = asl_ref[...]                       # (N, N)  A + I   (rw edge weights)
    dinv = dinv_ref[...]                      # (N, 1)  deg^-1/2
    dinv_r = dinvr_ref[...]                   # (1, N)
    dinv2 = dinv * dinv                       # (N, 1)  1/deg
    a_hat = a_sl * dinv * dinv_r              # D^-1/2 (A+I) D^-1/2 (GCN / sym weights)
    deg = jnp.sum(a_sl, axis=1, keepdims=True)              # rowsum(A+I)
    w_dinv = jnp.sum(a_sl * dinv_r, axis=1, keepdims=True)  # (A+I) @ dinv, no matmul
    sym_row = dinv2 * dinv * w_dinv           # rowsum(A_hat)_i * dinv_i^2

    def energies(x, want_rw):
        # E = 0.5 * sum_ij W_ij ||z_i - z_j||^2, expanded without N^2 temporaries.
        # term1 == term2 because W (undirected adjacency + self loops) is symmetric.
        inv_norm = lax.rsqrt(jnp.sum(x * x))   # inf/NaN iff x==0, matches torch ref
        xn = x * inv_norm
        d = jnp.sum(xn * xn, axis=1, keepdims=True)          # (N, 1) row norms^2
        e_sym_t1 = jnp.sum(sym_row * d)
        if want_rw:
            f = xn.shape[1]
            # both cross terms with ONE matmul against A+I
            rhs = jnp.concatenate([xn, dinv2 * xn], axis=1)  # (N, 2F)
            prod = jnp.dot(a_sl, rhs, preferred_element_type=jnp.float32)
            cross_rw = jnp.sum(prod[:, :f] * xn)
            cross_sym = jnp.sum(dinv2 * prod[:, f:] * xn)
            e_rw = jnp.sum(deg * d) - cross_rw
            return e_rw, e_sym_t1 - cross_sym
        prod = jnp.dot(a_sl, dinv2 * xn, preferred_element_type=jnp.float32)
        cross_sym = jnp.sum(dinv2 * prod * xn)
        return None, e_sym_t1 - cross_sym

    # encoder: x0 = x @ W_enc + b_enc  (nn.Linear), fused with initial sym energy
    x = (jnp.dot(x_ref[...], enc_w_ref[...], preferred_element_type=jnp.float32)
         + enc_b_ref[...])
    _, e0_sym = energies(x, want_rw=False)
    rows = [_pack_row(e0_sym)]

    # GCN layers: x = relu( A_hat @ (x @ W_l) + b_l ); scaling_factor == 1.
    # num_layers is a static Python int -> fully unrolled, static stack indices.
    for layer in range(num_layers):
        xw = jnp.dot(x, w_ref[layer], preferred_element_type=jnp.float32)
        agg = jnp.dot(a_hat, xw, preferred_element_type=jnp.float32)
        x = jnp.maximum(agg + b_ref[layer], 0.0)
        xs_ref[layer] = x                                   # lane-dense (N, D_pad) store
        e_rw, e_sym = energies(x, want_rw=True)
        rows.append(_pack_row(e_rw, e_sym))

    # single lane-dense store of all packed energies
    e_ref[...] = jnp.concatenate(rows, axis=0)


# ---------------------------- pallas_call wrapper ----------------------------

def _full_spec(shape):
    # single-block spec (block == whole array), grid=(1,)
    return pl.BlockSpec(shape, lambda i: (0,) * len(shape))


def pallas_fused_forward(x, enc_w, enc_b, w_stack, b_stack,
                         a_sl, dinv_col, dinv_row, *, num_layers):
    n = x.shape[0]
    d_pad = enc_w.shape[1]
    kernel = functools.partial(_fused_forward_kernel, num_layers=num_layers)
    xs, e = pl.pallas_call(
        kernel,
        grid=(1,),
        in_specs=[_full_spec(x.shape), _full_spec(enc_w.shape),
                  _full_spec(enc_b.shape), _full_spec(w_stack.shape),
                  _full_spec(b_stack.shape), _full_spec(a_sl.shape),
                  _full_spec(dinv_col.shape), _full_spec(dinv_row.shape)],
        out_specs=(_full_spec((num_layers, n, d_pad)),
                   _full_spec((num_layers + 1, LANE))),
        out_shape=(jax.ShapeDtypeStruct((num_layers, n, d_pad), jnp.float32),
                   jax.ShapeDtypeStruct((num_layers + 1, LANE), jnp.float32)),
        compiler_params=pltpu.CompilerParams(dimension_semantics=("arbitrary",)),
    )(x, enc_w, enc_b, w_stack, b_stack, a_sl, dinv_col, dinv_row)
    return xs, e


# ---------------------------- plain-JAX pieces ----------------------------

def rank_diff(x):
    # TODO(synk): nuclear norm requires SVD, which has no Pallas TPU equivalent;
    # computed in plain JAX under jit (matches torch.linalg.norm(..., 'nuc')).
    def nuc(m):
        return jnp.sum(jnp.linalg.svd(m, compute_uv=False))

    x = x / nuc(x)
    i = jnp.argmax(jnp.sum(jnp.abs(x), axis=1))
    j = jnp.argmax(jnp.sum(jnp.abs(x), axis=0))
    mean0 = lax.dynamic_slice_in_dim(x, i, 1, axis=0)      # (1, F)
    mean1 = lax.dynamic_slice_in_dim(x, j, 1, axis=1)      # (N, 1)
    pivot = lax.dynamic_slice_in_dim(mean0, j, 1, axis=1)[0, 0]
    mean0 = jnp.where(pivot < 0, -mean0, mean0)
    x_hat = mean1 @ mean0
    x_hat = x_hat / nuc(x_hat)
    return nuc(x - x_hat)


def _forward_impl(params, x, adj, *, num_layers, h_dim, out_dim):
    n = adj.shape[0]
    # Graph quantities computed ONCE per forward (shared by conv + both energies).
    a_sl = adj.astype(jnp.float32) + jnp.eye(n, dtype=jnp.float32)
    deg = jnp.sum(a_sl, axis=1)
    dinv = 1.0 / jnp.sqrt(deg)
    dinv_col = dinv[:, None]                                # (N, 1)
    dinv_row = dinv[None, :]                                # (1, N)

    enc_w, enc_b = params["enc"]
    in_pad = enc_w.shape[0]
    x = jnp.pad(x.astype(jnp.float32), ((0, 0), (0, in_pad - x.shape[1])))

    xs, e = pallas_fused_forward(
        x, enc_w, enc_b, params["w_stack"], params["b_stack"],
        a_sl, dinv_col, dinv_row, num_layers=num_layers)

    # unpack the single (L+1, 128) energies block
    energies = [e[0, 0]] + [e[i + 1, 0] for i in range(num_layers)]
    energies_sym = [e[i + 1, 1] for i in range(num_layers)]

    # rank_diff on real (unpadded) feature slices so nuclear norms match exactly
    rank = []
    for i in range(num_layers):
        d_real = h_dim if i < num_layers - 1 else out_dim
        rank.append(rank_diff(xs[i, :, :d_real]))

    x_out = xs[num_layers - 1, :, :out_dim]
    return x_out, energies, energies_sym, rank


# ---------------------------- model ----------------------------

class SimpleModelGCN:
    """SimpleModel with conv='GCN' (res=False, norm=False, scaling_factor=1)."""

    def __init__(self, in_dim, out_dim, h_dim, num_layers, key):
        keys = jax.random.split(key, num_layers + 1)

        def init_lin(k, fan_in, fan_out):
            kw, kb = jax.random.split(k)
            bound = 1.0 / jnp.sqrt(jnp.float32(fan_in))
            w = jax.random.uniform(kw, (fan_in, fan_out), jnp.float32, -bound, bound)
            b = jax.random.uniform(kb, (1, fan_out), jnp.float32, -bound, bound)
            return w, b

        in_pad = _round_up(in_dim, 8)                   # contraction dim: 8-aligned only
        d_pad = _round_up(max(h_dim, out_dim), LANE)    # feature dims: lane-dense 128

        enc_w, enc_b = init_lin(keys[0], in_dim, h_dim)
        enc_w = _pad2(enc_w, in_pad, d_pad)     # zero padding keeps padded lanes
        enc_b = _pad2(enc_b, 1, d_pad)          # exactly zero through the whole net
        ws, bs = [], []
        for i in range(num_layers):
            d2 = h_dim if i < num_layers - 1 else out_dim
            w, b = init_lin(keys[i + 1], h_dim, d2)
            ws.append(_pad2(w, d_pad, d_pad))
            bs.append(_pad2(b, 1, d_pad))

        self.params = {
            "enc": (enc_w, enc_b),
            "w_stack": jnp.stack(ws, axis=0),   # (L, D_pad, D_pad)
            "b_stack": jnp.stack(bs, axis=0),   # (L, 1, D_pad)
        }
        self.num_layers = num_layers
        # whole forward (graph precompute + ONE fused Pallas kernel + SVDs) runs
        # as a single jitted program -> one custom-call dispatch per forward.
        self._jit_forward = jax.jit(functools.partial(
            _forward_impl, num_layers=num_layers, h_dim=h_dim, out_dim=out_dim))

    def forward(self, x, adj):
        return self._jit_forward(self.params, x, adj)


# ---------------------------- main ----------------------------

if __name__ == "__main__":
    key = jax.random.PRNGKey(0)
    k_x, k_model = jax.random.split(key)

    N, in_dim, h_dim, out_dim, num_layers = 16, 8, 32, 16, 2

    # node features
    x = jax.random.normal(k_x, (N, in_dim), jnp.float32)

    # deterministic undirected ring graph (edge_index stored both directions),
    # realized here as a dense adjacency matrix
    src = jnp.arange(N)
    dst = (src + 1) % N
    adj = jnp.zeros((N, N), jnp.float32)
    adj = adj.at[src, dst].set(1.0).at[dst, src].set(1.0)

    model = SimpleModelGCN(in_dim, out_dim, h_dim, num_layers, k_model)
    out = model.forward(x, adj)
    jax.block_until_ready(out)

    print("KERNEL_OK")
</pallas_src>

<mosaic_0001>
module attributes {stable_mosaic.version = 11 : i64} {
  func.func @_fused_forward_kernel(%arg0: i32, %arg1: memref<16x8xf32, #tpu.memory_space<vmem>>, %arg2: memref<8x128xf32, #tpu.memory_space<vmem>>, %arg3: memref<1x128xf32, #tpu.memory_space<vmem>>, %arg4: memref<2x128x128xf32, #tpu.memory_space<vmem>>, %arg5: memref<2x1x128xf32, #tpu.memory_space<vmem>>, %arg6: memref<16x16xf32, #tpu.memory_space<vmem>>, %arg7: memref<16x1xf32, #tpu.memory_space<vmem>>, %arg8: memref<1x16xf32, #tpu.memory_space<vmem>>, %arg9: memref<2x16x128xf32, #tpu.memory_space<vmem>>, %arg10: memref<3x128xf32, #tpu.memory_space<vmem>>) attributes {dimension_semantics = [#tpu.dimension_semantics<arbitrary>], iteration_bounds = array<i64: 1>, scalar_prefetch = 0 : i64, scratch_operands = 0 : i64, tpu.core_type = #tpu.core_type<tc>, window_params = [{pipeline_mode = #tpu.pipeline_mode<synchronous>, transform_indices = @transform_0, window_bounds = array<i64: 16, 8>}, {pipeline_mode = #tpu.pipeline_mode<synchronous>, transform_indices = @transform_1, window_bounds = array<i64: 8, 128>}, {pipeline_mode = #tpu.pipeline_mode<synchronous>, transform_indices = @transform_2, window_bounds = array<i64: 1, 128>}, {pipeline_mode = #tpu.pipeline_mode<synchronous>, transform_indices = @transform_3, window_bounds = array<i64: 2, 128, 128>}, {pipeline_mode = #tpu.pipeline_mode<synchronous>, transform_indices = @transform_4, window_bounds = array<i64: 2, 1, 128>}, {pipeline_mode = #tpu.pipeline_mode<synchronous>, transform_indices = @transform_5, window_bounds = array<i64: 16, 16>}, {pipeline_mode = #tpu.pipeline_mode<synchronous>, transform_indices = @transform_6, window_bounds = array<i64: 16, 1>}, {pipeline_mode = #tpu.pipeline_mode<synchronous>, transform_indices = @transform_7, window_bounds = array<i64: 1, 16>}, {pipeline_mode = #tpu.pipeline_mode<synchronous>, transform_indices = @transform_8, window_bounds = array<i64: 2, 16, 128>}, {pipeline_mode = #tpu.pipeline_mode<synchronous>, transform_indices = @transform_9, window_bounds = array<i64: 3, 128>}]} {
    %c0 = arith.constant 0 : index
    %c0_0 = arith.constant 0 : index
    %0 = vector.load %arg6[%c0, %c0_0] : memref<16x16xf32, #tpu.memory_space<vmem>>, vector<16x16xf32>
    %c0_1 = arith.constant 0 : index
    %c0_2 = arith.constant 0 : index
    %1 = vector.load %arg7[%c0_1, %c0_2] : memref<16x1xf32, #tpu.memory_space<vmem>>, vector<16x1xf32>
    %c0_3 = arith.constant 0 : index
    %c0_4 = arith.constant 0 : index
    %2 = vector.load %arg8[%c0_3, %c0_4] : memref<1x16xf32, #tpu.memory_space<vmem>>, vector<1x16xf32>
    %3 = arith.mulf %1, %1 : vector<16x1xf32>
    %4 = vector.broadcast %1 : vector<16x1xf32> to vector<16x16xf32>
    %5 = arith.mulf %0, %4 : vector<16x16xf32>
    %6 = vector.broadcast %2 : vector<1x16xf32> to vector<16x16xf32>
    %7 = arith.mulf %5, %6 : vector<16x16xf32>
    %cst = arith.constant dense<0.000000e+00> : vector<16xf32>
    %8 = vector.multi_reduction <add>, %0, %cst [1] : vector<16x16xf32> to vector<16xf32>
    %9 = vector.shape_cast %8 : vector<16xf32> to vector<16x1xf32>
    %10 = vector.broadcast %2 : vector<1x16xf32> to vector<16x16xf32>
    %11 = arith.mulf %0, %10 : vector<16x16xf32>
    %cst_5 = arith.constant dense<0.000000e+00> : vector<16xf32>
    %12 = vector.multi_reduction <add>, %11, %cst_5 [1] : vector<16x16xf32> to vector<16xf32>
    %13 = vector.shape_cast %12 : vector<16xf32> to vector<16x1xf32>
    %14 = arith.mulf %3, %1 : vector<16x1xf32>
    %15 = arith.mulf %14, %13 : vector<16x1xf32>
    %c0_6 = arith.constant 0 : index
    %c0_7 = arith.constant 0 : index
    %16 = vector.load %arg1[%c0_6, %c0_7] : memref<16x8xf32, #tpu.memory_space<vmem>>, vector<16x8xf32>
    %c0_8 = arith.constant 0 : index
    %c0_9 = arith.constant 0 : index
    %17 = vector.load %arg2[%c0_8, %c0_9] : memref<8x128xf32, #tpu.memory_space<vmem>>, vector<8x128xf32>
    %cst_10 = arith.constant dense<0.000000e+00> : vector<16x128xf32>
    %18 = tpu.matmul %16, %17, %cst_10 {dimension_numbers = #tpu.dot_dimension_numbers<[1], [0], [0], [1], [0, 0, 1, 1], [], []>} : vector<16x8xf32>, vector<8x128xf32>, vector<16x128xf32> -> vector<16x128xf32>
    %c0_11 = arith.constant 0 : index
    %c0_12 = arith.constant 0 : index
    %19 = vector.load %arg3[%c0_11, %c0_12] : memref<1x128xf32, #tpu.memory_space<vmem>>, vector<1x128xf32>
    %20 = vector.broadcast %19 : vector<1x128xf32> to vector<16x128xf32>
    %21 = arith.addf %18, %20 : vector<16x128xf32>
    %22 = arith.mulf %21, %21 : vector<16x128xf32>
    %23 = vector.shape_cast %22 : vector<16x128xf32> to vector<1x16x128xf32>
    %cst_13 = arith.constant dense<0.000000e+00> : vector<1xf32>
    %24 = vector.multi_reduction <add>, %23, %cst_13 [1, 2] : vector<1x16x128xf32> to vector<1xf32>
    %25 = vector.shape_cast %24 : vector<1xf32> to vector<1x1x1xf32>
    %26 = vector.extract %25[0, 0, 0] : f32 from vector<1x1x1xf32>
    %27 = math.rsqrt %26 : f32
    %28 = vector.broadcast %27 : f32 to vector<16x128xf32>
    %29 = arith.mulf %21, %28 : vector<16x128xf32>
    %30 = arith.mulf %29, %29 : vector<16x128xf32>
    %cst_14 = arith.constant dense<0.000000e+00> : vector<16xf32>
    %31 = vector.multi_reduction <add>, %30, %cst_14 [1] : vector<16x128xf32> to vector<16xf32>
    %32 = vector.shape_cast %31 : vector<16xf32> to vector<16x1xf32>
    %33 = arith.mulf %15, %32 : vector<16x1xf32>
    %34 = vector.shape_cast %33 : vector<16x1xf32> to vector<1x16x1xf32>
    %cst_15 = arith.constant dense<0.000000e+00> : vector<1xf32>
    %35 = vector.multi_reduction <add>, %34, %cst_15 [1, 2] : vector<1x16x1xf32> to vector<1xf32>
    %36 = vector.shape_cast %35 : vector<1xf32> to vector<1x1x1xf32>
    %37 = vector.extract %36[0, 0, 0] : f32 from vector<1x1x1xf32>
    %38 = vector.broadcast %3 : vector<16x1xf32> to vector<16x128xf32>
    %39 = arith.mulf %38, %29 : vector<16x128xf32>
    %cst_16 = arith.constant dense<0.000000e+00> : vector<16x128xf32>
    %40 = tpu.matmul %0, %39, %cst_16 {dimension_numbers = #tpu.dot_dimension_numbers<[1], [0], [0], [1], [0, 0, 1, 1], [], []>} : vector<16x16xf32>, vector<16x128xf32>, vector<16x128xf32> -> vector<16x128xf32>
    %41 = vector.broadcast %3 : vector<16x1xf32> to vector<16x128xf32>
    %42 = arith.mulf %41, %40 : vector<16x128xf32>
    %43 = arith.mulf %42, %29 : vector<16x128xf32>
    %44 = vector.shape_cast %43 : vector<16x128xf32> to vector<1x16x128xf32>
    %cst_17 = arith.constant dense<0.000000e+00> : vector<1xf32>
    %45 = vector.multi_reduction <add>, %44, %cst_17 [1, 2] : vector<1x16x128xf32> to vector<1xf32>
    %46 = vector.shape_cast %45 : vector<1xf32> to vector<1x1x1xf32>
    %47 = vector.extract %46[0, 0, 0] : f32 from vector<1x1x1xf32>
    %48 = arith.subf %37, %47 : f32
    %49 = tpu.iota {dimensions = array<i32: 1>} : vector<1x128xi32>
    %cst_18 = arith.constant 0.000000e+00 : f32
    %50 = vector.broadcast %cst_18 : f32 to vector<1x128xf32>
    %c0_i32 = arith.constant 0 : i32
    %51 = vector.broadcast %c0_i32 : i32 to vector<1x128xi32>
    %52 = arith.cmpi eq, %49, %51 : vector<1x128xi32>
    %cst_19 = arith.constant 0.000000e+00 : f32
    %53 = vector.broadcast %48 : f32 to vector<1x128xf32>
    %54 = vector.broadcast %cst_19 : f32 to vector<1x128xf32>
    %55 = arith.select %52, %53, %54 : vector<1x128xi1>, vector<1x128xf32>
    %56 = arith.addf %50, %55 : vector<1x128xf32>
    %c0_20 = arith.constant 0 : index
    %c0_21 = arith.constant 0 : index
    %c0_22 = arith.constant 0 : index
    %57 = vector.load %arg4[%c0_20, %c0_21, %c0_22] : memref<2x128x128xf32, #tpu.memory_space<vmem>>, vector<1x128x128xf32>
    %58 = vector.shape_cast %57 : vector<1x128x128xf32> to vector<128x128xf32>
    %cst_23 = arith.constant dense<0.000000e+00> : vector<16x128xf32>
    %59 = tpu.matmul %21, %58, %cst_23 {dimension_numbers = #tpu.dot_dimension_numbers<[1], [0], [0], [1], [0, 0, 1, 1], [], []>} : vector<16x128xf32>, vector<128x128xf32>, vector<16x128xf32> -> vector<16x128xf32>
    %cst_24 = arith.constant dense<0.000000e+00> : vector<16x128xf32>
    %60 = tpu.matmul %7, %59, %cst_24 {dimension_numbers = #tpu.dot_dimension_numbers<[1], [0], [0], [1], [0, 0, 1, 1], [], []>} : vector<16x16xf32>, vector<16x128xf32>, vector<16x128xf32> -> vector<16x128xf32>
    %c0_25 = arith.constant 0 : index
    %c0_26 = arith.constant 0 : index
    %c0_27 = arith.constant 0 : index
    %61 = vector.load %arg5[%c0_25, %c0_26, %c0_27] : memref<2x1x128xf32, #tpu.memory_space<vmem>>, vector<1x1x128xf32>
    %62 = vector.shape_cast %61 : vector<1x1x128xf32> to vector<1x128xf32>
    %63 = vector.broadcast %62 : vector<1x128xf32> to vector<16x128xf32>
    %64 = arith.addf %60, %63 : vector<16x128xf32>
    %cst_28 = arith.constant 0.000000e+00 : f32
    %65 = vector.broadcast %cst_28 : f32 to vector<16x128xf32>
    %66 = arith.maximumf %64, %65 : vector<16x128xf32>
    %c0_29 = arith.constant 0 : index
    %c0_30 = arith.constant 0 : index
    %c0_31 = arith.constant 0 : index
    %67 = vector.load %arg9[%c0_29, %c0_30, %c0_31] : memref<2x16x128xf32, #tpu.memory_space<vmem>>, vector<1x16x128xf32>
    %68 = vector.shape_cast %67 : vector<1x16x128xf32> to vector<16x128xf32>
    %69 = vector.shape_cast %66 : vector<16x128xf32> to vector<1x16x128xf32>
    tpu.vector_store %arg9[%c0_29, %c0_30, %c0_31], %69 {strides = array<i32>} : memref<2x16x128xf32, #tpu.memory_space<vmem>>, vector<1x16x128xf32>,
    %70 = arith.mulf %66, %66 : vector<16x128xf32>
    %71 = vector.shape_cast %70 : vector<16x128xf32> to vector<1x16x128xf32>
    %cst_32 = arith.constant dense<0.000000e+00> : vector<1xf32>
    %72 = vector.multi_reduction <add>, %71, %cst_32 [1, 2] : vector<1x16x128xf32> to vector<1xf32>
    %73 = vector.shape_cast %72 : vector<1xf32> to vector<1x1x1xf32>
    %74 = vector.extract %73[0, 0, 0] : f32 from vector<1x1x1xf32>
    %75 = math.rsqrt %74 : f32
    %76 = vector.broadcast %75 : f32 to vector<16x128xf32>
    %77 = arith.mulf %66, %76 : vector<16x128xf32>
    %78 = arith.mulf %77, %77 : vector<16x128xf32>
    %cst_33 = arith.constant dense<0.000000e+00> : vector<16xf32>
    %79 = vector.multi_reduction <add>, %78, %cst_33 [1] : vector<16x128xf32> to vector<16xf32>
    %80 = vector.shape_cast %79 : vector<16xf32> to vector<16x1xf32>
    %81 = arith.mulf %15, %80 : vector<16x1xf32>
    %82 = vector.shape_cast %81 : vector<16x1xf32> to vector<1x16x1xf32>
    %cst_34 = arith.constant dense<0.000000e+00> : vector<1xf32>
    %83 = vector.multi_reduction <add>, %82, %cst_34 [1, 2] : vector<1x16x1xf32> to vector<1xf32>
    %84 = vector.shape_cast %83 : vector<1xf32> to vector<1x1x1xf32>
    %85 = vector.extract %84[0, 0, 0] : f32 from vector<1x1x1xf32>
    %86 = vector.broadcast %3 : vector<16x1xf32> to vector<16x128xf32>
    %87 = arith.mulf %86, %77 : vector<16x128xf32>
    %88 = tpu.concatenate %77, %87 in 1 : vector<16x128xf32>, vector<16x128xf32> -> vector<16x256xf32>
    %cst_35 = arith.constant dense<0.000000e+00> : vector<16x256xf32>
    %89 = tpu.matmul %0, %88, %cst_35 {dimension_numbers = #tpu.dot_dimension_numbers<[1], [0], [0], [1], [0, 0, 1, 1], [], []>} : vector<16x16xf32>, vector<16x256xf32>, vector<16x256xf32> -> vector<16x256xf32>
    %90 = vector.extract_strided_slice %89 {offsets = [0, 0], sizes = [16, 128], strides = [1, 1]} : vector<16x256xf32> to vector<16x128xf32>
    %91 = arith.mulf %90, %77 : vector<16x128xf32>
    %92 = vector.shape_cast %91 : vector<16x128xf32> to vector<1x16x128xf32>
    %cst_36 = arith.constant dense<0.000000e+00> : vector<1xf32>
    %93 = vector.multi_reduction <add>, %92, %cst_36 [1, 2] : vector<1x16x128xf32> to vector<1xf32>
    %94 = vector.shape_cast %93 : vector<1xf32> to vector<1x1x1xf32>
    %95 = vector.extract %94[0, 0, 0] : f32 from vector<1x1x1xf32>
    %96 = vector.extract_strided_slice %89 {offsets = [0, 128], sizes = [16, 128], strides = [1, 1]} : vector<16x256xf32> to vector<16x128xf32>
    %97 = vector.broadcast %3 : vector<16x1xf32> to vector<16x128xf32>
    %98 = arith.mulf %97, %96 : vector<16x128xf32>
    %99 = arith.mulf %98, %77 : vector<16x128xf32>
    %100 = vector.shape_cast %99 : vector<16x128xf32> to vector<1x16x128xf32>
    %cst_37 = arith.constant dense<0.000000e+00> : vector<1xf32>
    %101 = vector.multi_reduction <add>, %100, %cst_37 [1, 2] : vector<1x16x128xf32> to vector<1xf32>
    %102 = vector.shape_cast %101 : vector<1xf32> to vector<1x1x1xf32>
    %103 = vector.extract %102[0, 0, 0] : f32 from vector<1x1x1xf32>
    %104 = arith.mulf %9, %80 : vector<16x1xf32>
    %105 = vector.shape_cast %104 : vector<16x1xf32> to vector<1x16x1xf32>
    %cst_38 = arith.constant dense<0.000000e+00> : vector<1xf32>
    %106 = vector.multi_reduction <add>, %105, %cst_38 [1, 2] : vector<1x16x1xf32> to vector<1xf32>
    %107 = vector.shape_cast %106 : vector<1xf32> to vector<1x1x1xf32>
    %108 = vector.extract %107[0, 0, 0] : f32 from vector<1x1x1xf32>
    %109 = arith.subf %108, %95 : f32
    %110 = arith.subf %85, %103 : f32
    %111 = tpu.iota {dimensions = array<i32: 1>} : vector<1x128xi32>
    %cst_39 = arith.constant 0.000000e+00 : f32
    %112 = vector.broadcast %cst_39 : f32 to vector<1x128xf32>
    %c0_i32_40 = arith.constant 0 : i32
    %113 = vector.broadcast %c0_i32_40 : i32 to vector<1x128xi32>
    %114 = arith.cmpi eq, %111, %113 : vector<1x128xi32>
    %cst_41 = arith.constant 0.000000e+00 : f32
    %115 = vector.broadcast %109 : f32 to vector<1x128xf32>
    %116 = vector.broadcast %cst_41 : f32 to vector<1x128xf32>
    %117 = arith.select %114, %115, %116 : vector<1x128xi1>, vector<1x128xf32>
    %118 = arith.addf %112, %117 : vector<1x128xf32>
    %c1_i32 = arith.constant 1 : i32
    %119 = vector.broadcast %c1_i32 : i32 to vector<1x128xi32>
    %120 = arith.cmpi eq, %111, %119 : vector<1x128xi32>
    %cst_42 = arith.constant 0.000000e+00 : f32
    %121 = vector.broadcast %110 : f32 to vector<1x128xf32>
    %122 = vector.broadcast %cst_42 : f32 to vector<1x128xf32>
    %123 = arith.select %120, %121, %122 : vector<1x128xi1>, vector<1x128xf32>
    %124 = arith.addf %118, %123 : vector<1x128xf32>
    %c1 = arith.constant 1 : index
    %c0_43 = arith.constant 0 : index
    %c0_44 = arith.constant 0 : index
    %125 = vector.load %arg4[%c1, %c0_43, %c0_44] : memref<2x128x128xf32, #tpu.memory_space<vmem>>, vector<1x128x128xf32>
    %126 = vector.shape_cast %125 : vector<1x128x128xf32> to vector<128x128xf32>
    %cst_45 = arith.constant dense<0.000000e+00> : vector<16x128xf32>
    %127 = tpu.matmul %66, %126, %cst_45 {dimension_numbers = #tpu.dot_dimension_numbers<[1], [0], [0], [1], [0, 0, 1, 1], [], []>} : vector<16x128xf32>, vector<128x128xf32>, vector<16x128xf32> -> vector<16x128xf32>
    %cst_46 = arith.constant dense<0.000000e+00> : vector<16x128xf32>
    %128 = tpu.matmul %7, %127, %cst_46 {dimension_numbers = #tpu.dot_dimension_numbers<[1], [0], [0], [1], [0, 0, 1, 1], [], []>} : vector<16x16xf32>, vector<16x128xf32>, vector<16x128xf32> -> vector<16x128xf32>
    %c1_47 = arith.constant 1 : index
    %c0_48 = arith.constant 0 : index
    %c0_49 = arith.constant 0 : index
    %129 = vector.load %arg5[%c1_47, %c0_48, %c0_49] : memref<2x1x128xf32, #tpu.memory_space<vmem>>, vector<1x1x128xf32>
    %130 = vector.shape_cast %129 : vector<1x1x128xf32> to vector<1x128xf32>
    %131 = vector.broadcast %130 : vector<1x128xf32> to vector<16x128xf32>
    %132 = arith.addf %128, %131 : vector<16x128xf32>
    %cst_50 = arith.constant 0.000000e+00 : f32
    %133 = vector.broadcast %cst_50 : f32 to vector<16x128xf32>
    %134 = arith.maximumf %132, %133 : vector<16x128xf32>
    %c1_51 = arith.constant 1 : index
    %c0_52 = arith.constant 0 : index
    %c0_53 = arith.constant 0 : index
    %135 = vector.load %arg9[%c1_51, %c0_52, %c0_53] : memref<2x16x128xf32, #tpu.memory_space<vmem>>, vector<1x16x128xf32>
    %136 = vector.shape_cast %135 : vector<1x16x128xf32> to vector<16x128xf32>
    %137 = vector.shape_cast %134 : vector<16x128xf32> to vector<1x16x128xf32>
    tpu.vector_store %arg9[%c1_51, %c0_52, %c0_53], %137 {strides = array<i32>} : memref<2x16x128xf32, #tpu.memory_space<vmem>>, vector<1x16x128xf32>,
    %138 = arith.mulf %134, %134 : vector<16x128xf32>
    %139 = vector.shape_cast %138 : vector<16x128xf32> to vector<1x16x128xf32>
    %cst_54 = arith.constant dense<0.000000e+00> : vector<1xf32>
    %140 = vector.multi_reduction <add>, %139, %cst_54 [1, 2] : vector<1x16x128xf32> to vector<1xf32>
    %141 = vector.shape_cast %140 : vector<1xf32> to vector<1x1x1xf32>
    %142 = vector.extract %141[0, 0, 0] : f32 from vector<1x1x1xf32>
    %143 = math.rsqrt %142 : f32
    %144 = vector.broadcast %143 : f32 to vector<16x128xf32>
    %145 = arith.mulf %134, %144 : vector<16x128xf32>
    %146 = arith.mulf %145, %145 : vector<16x128xf32>
    %cst_55 = arith.constant dense<0.000000e+00> : vector<16xf32>
    %147 = vector.multi_reduction <add>, %146, %cst_55 [1] : vector<16x128xf32> to vector<16xf32>
    %148 = vector.shape_cast %147 : vector<16xf32> to vector<16x1xf32>
    %149 = arith.mulf %15, %148 : vector<16x1xf32>
    %150 = vector.shape_cast %149 : vector<16x1xf32> to vector<1x16x1xf32>
    %cst_56 = arith.constant dense<0.000000e+00> : vector<1xf32>
    %151 = vector.multi_reduction <add>, %150, %cst_56 [1, 2] : vector<1x16x1xf32> to vector<1xf32>
    %152 = vector.shape_cast %151 : vector<1xf32> to vector<1x1x1xf32>
    %153 = vector.extract %152[0, 0, 0] : f32 from vector<1x1x1xf32>
    %154 = vector.broadcast %3 : vector<16x1xf32> to vector<16x128xf32>
    %155 = arith.mulf %154, %145 : vector<16x128xf32>
    %156 = tpu.concatenate %145, %155 in 1 : vector<16x128xf32>, vector<16x128xf32> -> vector<16x256xf32>
    %cst_57 = arith.constant dense<0.000000e+00> : vector<16x256xf32>
    %157 = tpu.matmul %0, %156, %cst_57 {dimension_numbers = #tpu.dot_dimension_numbers<[1], [0], [0], [1], [0, 0, 1, 1], [], []>} : vector<16x16xf32>, vector<16x256xf32>, vector<16x256xf32> -> vector<16x256xf32>
    %158 = vector.extract_strided_slice %157 {offsets = [0, 0], sizes = [16, 128], strides = [1, 1]} : vector<16x256xf32> to vector<16x128xf32>
    %159 = arith.mulf %158, %145 : vector<16x128xf32>
    %160 = vector.shape_cast %159 : vector<16x128xf32> to vector<1x16x128xf32>
    %cst_58 = arith.constant dense<0.000000e+00> : vector<1xf32>
    %161 = vector.multi_reduction <add>, %160, %cst_58 [1, 2] : vector<1x16x128xf32> to vector<1xf32>
    %162 = vector.shape_cast %161 : vector<1xf32> to vector<1x1x1xf32>
    %163 = vector.extract %162[0, 0, 0] : f32 from vector<1x1x1xf32>
    %164 = vector.extract_strided_slice %157 {offsets = [0, 128], sizes = [16, 128], strides = [1, 1]} : vector<16x256xf32> to vector<16x128xf32>
    %165 = vector.broadcast %3 : vector<16x1xf32> to vector<16x128xf32>
    %166 = arith.mulf %165, %164 : vector<16x128xf32>
    %167 = arith.mulf %166, %145 : vector<16x128xf32>
    %168 = vector.shape_cast %167 : vector<16x128xf32> to vector<1x16x128xf32>
    %cst_59 = arith.constant dense<0.000000e+00> : vector<1xf32>
    %169 = vector.multi_reduction <add>, %168, %cst_59 [1, 2] : vector<1x16x128xf32> to vector<1xf32>
    %170 = vector.shape_cast %169 : vector<1xf32> to vector<1x1x1xf32>
    %171 = vector.extract %170[0, 0, 0] : f32 from vector<1x1x1xf32>
    %172 = arith.mulf %9, %148 : vector<16x1xf32>
    %173 = vector.shape_cast %172 : vector<16x1xf32> to vector<1x16x1xf32>
    %cst_60 = arith.constant dense<0.000000e+00> : vector<1xf32>
    %174 = vector.multi_reduction <add>, %173, %cst_60 [1, 2] : vector<1x16x1xf32> to vector<1xf32>
    %175 = vector.shape_cast %174 : vector<1xf32> to vector<1x1x1xf32>
    %176 = vector.extract %175[0, 0, 0] : f32 from vector<1x1x1xf32>
    %177 = arith.subf %176, %163 : f32
    %178 = arith.subf %153, %171 : f32
    %179 = tpu.iota {dimensions = array<i32: 1>} : vector<1x128xi32>
    %cst_61 = arith.constant 0.000000e+00 : f32
    %180 = vector.broadcast %cst_61 : f32 to vector<1x128xf32>
    %c0_i32_62 = arith.constant 0 : i32
    %181 = vector.broadcast %c0_i32_62 : i32 to vector<1x128xi32>
    %182 = arith.cmpi eq, %179, %181 : vector<1x128xi32>
    %cst_63 = arith.constant 0.000000e+00 : f32
    %183 = vector.broadcast %177 : f32 to vector<1x128xf32>
    %184 = vector.broadcast %cst_63 : f32 to vector<1x128xf32>
    %185 = arith.select %182, %183, %184 : vector<1x128xi1>, vector<1x128xf32>
    %186 = arith.addf %180, %185 : vector<1x128xf32>
    %c1_i32_64 = arith.constant 1 : i32
    %187 = vector.broadcast %c1_i32_64 : i32 to vector<1x128xi32>
    %188 = arith.cmpi eq, %179, %187 : vector<1x128xi32>
    %cst_65 = arith.constant 0.000000e+00 : f32
    %189 = vector.broadcast %178 : f32 to vector<1x128xf32>
    %190 = vector.broadcast %cst_65 : f32 to vector<1x128xf32>
    %191 = arith.select %188, %189, %190 : vector<1x128xi1>, vector<1x128xf32>
    %192 = arith.addf %186, %191 : vector<1x128xf32>
    %193 = tpu.concatenate %56, %124, %192 in 0 : vector<1x128xf32>, vector<1x128xf32>, vector<1x128xf32> -> vector<3x128xf32>
    %c0_66 = arith.constant 0 : index
    %c0_67 = arith.constant 0 : index
    %194 = vector.load %arg10[%c0_66, %c0_67] : memref<3x128xf32, #tpu.memory_space<vmem>>, vector<3x128xf32>
    tpu.vector_store %arg10[%c0_66, %c0_67], %193 {strides = array<i32>} : memref<3x128xf32, #tpu.memory_space<vmem>>, vector<3x128xf32>,
    return
  }
  func.func @transform_0(%arg0: i32) -> (i32, i32) {
    %c0_i32 = arith.constant 0 : i32
    %c0_i32_0 = arith.constant 0 : i32
    %c0_i32_1 = arith.constant 0 : i32
    return %c0_i32, %c0_i32_0 : i32, i32
  }
  func.func @transform_1(%arg0: i32) -> (i32, i32) {
    %c0_i32 = arith.constant 0 : i32
    %c0_i32_0 = arith.constant 0 : i32
    %c0_i32_1 = arith.constant 0 : i32
    return %c0_i32, %c0_i32_0 : i32, i32
  }
  func.func @transform_2(%arg0: i32) -> (i32, i32) {
    %c0_i32 = arith.constant 0 : i32
    %c0_i32_0 = arith.constant 0 : i32
    %c0_i32_1 = arith.constant 0 : i32
    return %c0_i32, %c0_i32_0 : i32, i32
  }
  func.func @transform_3(%arg0: i32) -> (i32, i32, i32) {
    %c0_i32 = arith.constant 0 : i32
    %c0_i32_0 = arith.constant 0 : i32
    %c0_i32_1 = arith.constant 0 : i32
    %c0_i32_2 = arith.constant 0 : i32
    return %c0_i32, %c0_i32_0, %c0_i32_1 : i32, i32, i32
  }
  func.func @transform_4(%arg0: i32) -> (i32, i32, i32) {
    %c0_i32 = arith.constant 0 : i32
    %c0_i32_0 = arith.constant 0 : i32
    %c0_i32_1 = arith.constant 0 : i32
    %c0_i32_2 = arith.constant 0 : i32
    return %c0_i32, %c0_i32_0, %c0_i32_1 : i32, i32, i32
  }
  func.func @transform_5(%arg0: i32) -> (i32, i32) {
    %c0_i32 = arith.constant 0 : i32
    %c0_i32_0 = arith.constant 0 : i32
    %c0_i32_1 = arith.constant 0 : i32
    return %c0_i32, %c0_i32_0 : i32, i32
  }
  func.func @transform_6(%arg0: i32) -> (i32, i32) {
    %c0_i32 = arith.constant 0 : i32
    %c0_i32_0 = arith.constant 0 : i32
    %c0_i32_1 = arith.constant 0 : i32
    return %c0_i32, %c0_i32_0 : i32, i32
  }
  func.func @transform_7(%arg0: i32) -> (i32, i32) {
    %c0_i32 = arith.constant 0 : i32
    %c0_i32_0 = arith.constant 0 : i32
    %c0_i32_1 = arith.constant 0 : i32
    return %c0_i32, %c0_i32_0 : i32, i32
  }
  func.func @transform_8(%arg0: i32) -> (i32, i32, i32) {
    %c0_i32 = arith.constant 0 : i32
    %c0_i32_0 = arith.constant 0 : i32
    %c0_i32_1 = arith.constant 0 : i32
    %c0_i32_2 = arith.constant 0 : i32
    return %c0_i32, %c0_i32_0, %c0_i32_1 : i32, i32, i32
  }
  func.func @transform_9(%arg0: i32) -> (i32, i32) {
    %c0_i32 = arith.constant 0 : i32
    %c0_i32_0 = arith.constant 0 : i32
    %c0_i32_1 = arith.constant 0 : i32
    return %c0_i32, %c0_i32_0 : i32, i32
  }
}

</mosaic_0001>

<llo_original>
// kernel: custom-call.184
$region0: #{custom-call.184}
  %s0 = inlined_call_operand.vmem [shape: f32[32,16], index: 0, kind: input, shape index: {}]
  %s1 = inlined_call_operand.vmem [shape: f32[32,16], index: 1, kind: output, shape index: {0}]
  %s2 = inlined_call_operand.vmem [shape: f32[16], index: 2, kind: output, shape index: {1}]
  %3 = xla_tuple %s1, %s2
  $region1: #{custom-call.184} parent=0
    #allocation0 [shape = 'u8[16384]{0}', space=vmem, size = 0x4000, scoped, tag = 'operand span for operand 0']
    #allocation1 [shape = 'u8[16384]{0}', space=vmem, size = 0x4000, scoped, tag = 'operand span for operand 1']
    #allocation2 [shape = 'u8[4096]{0}', space=vmem, size = 0x1000, scoped, tag = 'operand span for operand 2']
    #allocation3 [shape = 'u8[512]{0}', space=vmem, size = 0x400, scoped, tag = 'packed  for operand 2']
    #allocation4 [shape = 'f32[32,128]{1,0}', space=vmem, size = 0x4000, scoped, tag = 'scratch for Householder reflectors']
    // Predicated region
    $region2: #{custom-call.184} parent=1 // pred_check
      _
    $region3: #{custom-call.184} parent=1 // pred_check_branch
      %5 = sbr.rel (0) target = $region5
    $region4: #{custom-call.184} parent=1 // pred_region
      // Predicated region
      $region6: #{custom-call.184} parent=4 // pred_check
        _
      $region7: #{custom-call.184} parent=4 // pred_check_branch
        %7 = sbr.rel (0) target = $region9
      $region8: #{custom-call.184} parent=4 // pred_region
        // Predicated region
        $region21: #{custom-call.184} parent=8 // pred_check
          _
        $region22: #{custom-call.184} parent=8 // pred_check_branch
          %28 = sbr.rel (0) target = $region24
        $region23: #{custom-call.184} parent=8 // pred_region
          loop: start=0, step=1, limit=1
          $region25: #{custom-call.184} parent=23 // loop_pre_header
            _
          $region26: #{custom-call.184} parent=23 // loop_header
            %s30 = sphi 0, %s34
            %p31 = scmp.ge.s32.totalorder %s30, 1
            %s35 = sphi %s0, %s0
            %s36 = sphi [#allocation0], [#allocation0]
          $region27: #{custom-call.184} parent=23 // loop_header_branch
            %33 = sbr.rel (%p31) target = $region31
          $region28: #{custom-call.184} parent=23 // loop_body
            %v37 = vld [vmem:[%s35] sm:$0xff]
            %38 = vst [vmem:[%s36] sm:$0xff] %v37
            %v39 = vld [vmem:[%s35 + $0x8] sm:$0xff]
            %40 = vst [vmem:[%s36 + $0x8] sm:$0xff] %v39
            %v41 = vld [vmem:[%s35 + $0x10] sm:$0xff]
            %42 = vst [vmem:[%s36 + $0x10] sm:$0xff] %v41
            %v43 = vld [vmem:[%s35 + $0x18] sm:$0xff]
            %44 = vst [vmem:[%s36 + $0x18] sm:$0xff] %v43
          $region29: #{custom-call.184} parent=23 // loop_footer
            %s34 = sadd.s32 1, %s30
          $region30: #{custom-call.184} parent=23 // loop_footer_branch
            %29 = sbr.rel target = $region26
          $region31: #{custom-call.184} parent=23 // loop_exit
            _
        $region24: #{custom-call.184} parent=8 // pred_fallthru
          _
        // Predicated region
        $region32: #{custom-call.184} parent=8 // pred_check
          _
        $region33: #{custom-call.184} parent=8 // pred_check_branch
          %46 = sbr.rel target = $region35
        $region34: #{custom-call.184} parent=8 // pred_region
          _
        $region35: #{custom-call.184} parent=8 // pred_fallthru
          _
      $region9: #{custom-call.184} parent=4 // pred_fallthru
        _
      // Predicated region
      $region10: #{custom-call.184} parent=4 // pred_check
        _
      $region11: #{custom-call.184} parent=4 // pred_check_branch
        %9 = sbr.rel target = $region13
      $region12: #{custom-call.184} parent=4 // pred_region
        loop: start=0, step=1, limit=1
        $region14: #{custom-call.184} parent=12 // loop_pre_header
          _
        $region15: #{custom-call.184} parent=12 // loop_header
          %s12 = sphi 0, %s16
          %p13 = scmp.ge.s32.totalorder %s12, 1
          %s17 = sphi %s0, %s0
          %s18 = sphi [#allocation0], [#allocation0]
        $region16: #{custom-call.184} parent=12 // loop_header_branch
          %15 = sbr.rel (%p13) target = $region20
        $region17: #{custom-call.184} parent=12 // loop_body
          %v19 = vld [vmem:[%s17] sm:$0xff]
          %20 = vst [vmem:[%s18] sm:$0xff] %v19
          %v21 = vld [vmem:[%s17 + $0x8] sm:$0xff]
          %22 = vst [vmem:[%s18 + $0x8] sm:$0xff] %v21
          %v23 = vld [vmem:[%s17 + $0x10] sm:$0xff]
          %24 = vst [vmem:[%s18 + $0x10] sm:$0xff] %v23
          %v25 = vld [vmem:[%s17 + $0x18] sm:$0xff]
          %26 = vst [vmem:[%s18 + $0x18] sm:$0xff] %v25
        $region18: #{custom-call.184} parent=12 // loop_footer
          %s16 = sadd.s32 1, %s12
        $region19: #{custom-call.184} parent=12 // loop_footer_branch
          %11 = sbr.rel target = $region15
        $region20: #{custom-call.184} parent=12 // loop_exit
          _
      $region13: #{custom-call.184} parent=4 // pred_fallthru
        _
    $region5: #{custom-call.184} parent=1 // pred_fallthru
      _
    %47 = vnop
    %v48 = vld [vmem:[#allocation0] sm:$0xff]
    %49 = vst [vmem:[#allocation1] sm:$0xff] %v48
    %s50 = scalar_lea.vmem [#allocation1], 8
    %s51 = scalar_lea.vmem [#allocation0], 8
    %v52 = vld [vmem:[%s51] sm:$0xff]
    %53 = vst [vmem:[%s50] sm:$0xff] %v52
    %s54 = scalar_lea.vmem [#allocation1], 16
    %s55 = scalar_lea.vmem [#allocation0], 16
    %v56 = vld [vmem:[%s55] sm:$0xff]
    %57 = vst [vmem:[%s54] sm:$0xff] %v56
    %s58 = scalar_lea.vmem [#allocation1], 24
    %s59 = scalar_lea.vmem [#allocation0], 24
    %v60 = vld [vmem:[%s59] sm:$0xff]
    %61 = vst [vmem:[%s58] sm:$0xff] %v60
    %62 = vst [vmem:[#allocation2] sm:$0x1] 0.0
    loop: start=0, step=1, limit=16
    $region36: #{custom-call.184} parent=1 // loop_pre_header
      _
    $region37: #{custom-call.184} parent=1 // loop_header
      %s64 = sphi 0, %s68
      %p65 = scmp.ge.s32.totalorder %s64, 16
    $region38: #{custom-call.184} parent=1 // loop_header_branch
      %67 = sbr.rel (%p65) target = $region42
    $region39: #{custom-call.184} parent=1 // loop_body
      %v69 = vld [vmem:[#allocation1] sm:$0xff]
      %v70 = vlaneseq
      %v71 = vshrl.u32 %v70, 7
      %v73 = vstv %s64
      %vm74 = vcmp.gt.s32.totalorder %v71, %v73
      %v75 = vsel %vm74, %v69, 0.0
      %v76 = vmul.f32 %v75, %v75
      %s77 = scalar_lea.vmem [#allocation1], 8
      %v78 = vld [vmem:[%s77] sm:$0xff]
      %v79 = vlaneseq
      %v80 = vshrl.u32 %v79, 7
      %v81 = vadd.s32 %v80, 8
      %v82 = vstv %s64
      %vm83 = vcmp.gt.s32.totalorder %v81, %v82
      %v84 = vsel %vm83, %v78, 0.0
      %v85 = vmul.f32 %v84, %v84
      %v86 = vadd.f32 %v76, %v85
      %s87 = scalar_lea.vmem [#allocation1], 16
      %v88 = vld [vmem:[%s87] sm:$0xff]
      %v89 = vlaneseq
      %v90 = vshrl.u32 %v89, 7
      %v91 = vadd.s32 %v90, 16
      %v92 = vstv %s64
      %vm93 = vcmp.gt.s32.totalorder %v91, %v92
      %v94 = vsel %vm93, %v88, 0.0
      %v95 = vmul.f32 %v94, %v94
      %v96 = vadd.f32 %v86, %v95
      %s97 = scalar_lea.vmem [#allocation1], 24
      %v98 = vld [vmem:[%s97] sm:$0xff]
      %v99 = vlaneseq
      %v100 = vshrl.u32 %v99, 7
      %v101 = vadd.s32 %v100, 24
      %v102 = vstv %s64
      %vm103 = vcmp.gt.s32.totalorder %v101, %v102
      %vm104 = vcmp.lt.s32.totalorder %v101, 32
      %vm105 = vmand %vm103, %vm104
      %v106 = vsel %vm105, %v98, 0.0
      %v107 = vmul.f32 %v106, %v106
      %v108 = vadd.f32 %v96, %v107
      %v109 = vrot.slane %v108, 4
      %v110 = vadd.f32 %v108, %v109
      %v111 = vrot.slane %v110, 2
      %v112 = vadd.f32 %v110, %v111
      %v113 = vrot.slane %v112, 1
      %v114 = vadd.f32 %v112, %v113
      %v115 = vrsqrt.pop %v114
      %v116 = vmul.f32 %v114, %v115
      %vm117 = vcmp.eq.f32.partialorder %v114, inf
      %v118 = vsel %vm117, %v114, %v116
      %vm119 = vcmp.eq.f32.partialorder %v114, 0.0
      %v120 = vand.u32 %v114, 2147483648
      %v121 = vsel %vm119, %v120, %v118
      %vm122 = vcmp.eq.f32.partialorder %v114, 0.0
      %s123 = sshrl.u32 %s64, 3
      %s124 = sand.u32 %s64, 7
      %s125 = smul.addr %s123, 8
      %s126 = sadd.s32 %s124, %s125
      %s127 = scalar_lea.vmem [#allocation1], %s126
      %v128 = vld [vmem:[%s127] ss:$0 sm:$0xff]
      %v129 = vand.u32 2147483647, %v128
      %v130 = vmax.f32 %v129, 0.0
      %v131 = vand.u32 2147483647, %v121
      %v132 = vmax.f32 %v130, %v131
      %v133 = vrcp.pop %v132
      %v134 = vmul.f32 %v129, %v133
      %v135 = vmul.f32 %v134, %v134
      %v136 = vrcp.pop %v132
      %v137 = vmul.f32 0.0, %v136
      %v138 = vmul.f32 %v137, %v137
      %v139 = vadd.f32 %v135, %v138
      %v140 = vrcp.pop %v132
      %v141 = vmul.f32 %v131, %v140
      %v142 = vmul.f32 %v141, %v141
      %v143 = vadd.f32 %v139, %v142
      %vm144 = vcmp.eq.f32.partialorder %v132, 0.0
      %v145 = vrsqrt.pop %v143
      %v146 = vmul.f32 %v143, %v145
      %vm147 = vcmp.eq.f32.partialorder %v143, inf
      %v148 = vsel %vm147, %v143, %v146
      %vm149 = vcmp.eq.f32.partialorder %v143, 0.0
      %v150 = vand.u32 %v143, 2147483648
      %v151 = vsel %vm149, %v150, %v148
      %v152 = vmul.f32 %v132, %v151
      %v153 = vsel %vm144, 0.0, %v152
      %vm154 = vcmp.lt.f32.partialorder %v128, 0.0
      %v155 = vxor.u32 %v153, 2147483648
      %v156 = vsel %vm154, %v153, %v155
      %v157 = vsub.f32 %v156, %v128
      %v158 = vrcp.pop %v156
      %v159 = vmul.f32 %v157, %v158
      %v160 = vsel %vm122, %v128, %v156
      %v161 = vsel %vm122, 0.0, %v159
      %v162 = vsub.f32 %v128, %v160
      %s163 = smov [#allocation1]
      %v164 = vlaneseq
      %v165 = vshrl.u32 %v164, 7
      %v166 = vmov %v165
      %v167 = vld [vmem:[%s163] sm:$0xff]
      %v169 = vstv %s64
      %vm170 = vcmp.gt.s32.totalorder %v166, %v169
      %v171 = vsel %vm170, %v167, 0.0
      %v172 = vrcp.pop %v162
      %v173 = vmul.f32 %v171, %v172
      %v174 = vsel %vm122, 0.0, %v173
      %v175 = vstv %s64
      %v176 = vlaneseq
      %v177 = vand.u32 %v176, 127
      %vm178 = vcmp.eq.s32.totalorder %v177, %v175
      %v179 = vsel %vm178, %v174, 0.0
      %180 = vadd.xlane.f32.xlu0 %v179
      %v181 = vpop.xlane.xlu0 %180
      %182 = vst [vmem:[#allocation4] sm:$0xff] %v181
      %s183 = scalar_lea.vmem %s163, 8
      %v184 = vld [vmem:[%s183] sm:$0xff]
      %v185 = vadd.s32 %v166, 8
      %v186 = vstv %s64
      %vm187 = vcmp.gt.s32.totalorder %v185, %v186
      %v188 = vsel %vm187, %v184, 0.0
      %v189 = vrcp.pop %v162
      %v190 = vmul.f32 %v188, %v189
      %v191 = vsel %vm122, 0.0, %v190
      %v192 = vstv %s64
      %v193 = vlaneseq
      %v194 = vand.u32 %v193, 127
      %vm195 = vcmp.eq.s32.totalorder %v194, %v192
      %v196 = vsel %vm195, %v191, 0.0
      %197 = vadd.xlane.f32.xlu0 %v196
      %v198 = vpop.xlane.xlu0 %197
      %s199 = scalar_lea.vmem [#allocation4], 8
      %200 = vst [vmem:[%s199] sm:$0xff] %v198
      %s201 = scalar_lea.vmem %s163, 16
      %v202 = vld [vmem:[%s201] sm:$0xff]
      %v203 = vadd.s32 %v166, 16
      %v204 = vstv %s64
      %vm205 = vcmp.gt.s32.totalorder %v203, %v204
      %v206 = vsel %vm205, %v202, 0.0
      %v207 = vrcp.pop %v162
      %v208 = vmul.f32 %v206, %v207
      %v209 = vsel %vm122, 0.0, %v208
      %v210 = vstv %s64
      %v211 = vlaneseq
      %v212 = vand.u32 %v211, 127
      %vm213 = vcmp.eq.s32.totalorder %v212, %v210
      %v214 = vsel %vm213, %v209, 0.0
      %215 = vadd.xlane.f32.xlu0 %v214
      %v216 = vpop.xlane.xlu0 %215
      %s217 = scalar_lea.vmem [#allocation4], 16
      %218 = vst [vmem:[%s217] sm:$0xff] %v216
      %s219 = scalar_lea.vmem %s163, 24
      %v220 = vld [vmem:[%s219] sm:$0xff]
      %v221 = vadd.s32 %v166, 24
      %v222 = vstv %s64
      %vm223 = vcmp.gt.s32.totalorder %v221, %v222
      %vm224 = vcmp.lt.s32.totalorder %v221, 32
      %vm225 = vmand %vm223, %vm224
      %v226 = vsel %vm225, %v220, 0.0
      %v227 = vrcp.pop %v162
      %v228 = vmul.f32 %v226, %v227
      %v229 = vsel %vm122, 0.0, %v228
      %v230 = vstv %s64
      %v231 = vlaneseq
      %v232 = vand.u32 %v231, 127
      %vm233 = vcmp.eq.s32.totalorder %v232, %v230
      %v234 = vsel %vm233, %v229, 0.0
      %235 = vadd.xlane.f32.xlu0 %v234
      %v236 = vpop.xlane.xlu0 %235
      %s237 = scalar_lea.vmem [#allocation4], 24
      %238 = vst [vmem:[%s237] sm:$0xff] %v236
      %s239 = scalar_lea.vmem [#allocation4], %s64
      %240 = vst [vmem:[%s239] sm:$0x1] 1.0
      %v241 = vstv %s64
      %v242 = vlaneseq
      %v243 = vand.u32 %v242, 127
      %vm244 = vcmp.eq.s32.totalorder %v243, %v241
      %v245 = vsel %vm244, %v161, 0.0
      %246 = vadd.xlane.f32.xlu0 %v245
      %v247 = vpop.xlane.xlu0 %246
      %v248 = vstv %s64
      %v249 = vlaneseq
      %v250 = vand.u32 %v249, 127
      %vm251 = vcmp.eq.s32.totalorder %v250, %v248
      %v252 = vld [vmem:[#allocation2] ss:$0 sm:$0xff]
      %v253 = vsel %vm251, %v247, %v252
      %254 = vst [vmem:[#allocation2] sm:$0x1] %v253
      %s255 = smov [#allocation1]
      %s256 = smov [#allocation4]
      %v257 = vlaneseq
      %v258 = vshrl.u32 %v257, 7
      %v259 = vmov %v258
      %v261 = vld [vmem:[%s256] sm:$0xff]
      %v262 = vld [vmem:[%s255] sm:$0xff]
      %v263 = vmul.f32 %v261, %v262
      %v264 = vadd.s32 %v259, 8
      %s265 = scalar_lea.vmem %s256, 8
      %v266 = vld [vmem:[%s265] sm:$0xff]
      %s267 = scalar_lea.vmem %s255, 8
      %v268 = vld [vmem:[%s267] sm:$0xff]
      %v269 = vmul.f32 %v266, %v268
      %v270 = vadd.f32 %v263, %v269
      %v271 = vadd.s32 %v259, 16
      %s272 = scalar_lea.vmem %s256, 16
      %v273 = vld [vmem:[%s272] sm:$0xff]
      %s274 = scalar_lea.vmem %s255, 16
      %v275 = vld [vmem:[%s274] sm:$0xff]
      %v276 = vmul.f32 %v273, %v275
      %v277 = vadd.f32 %v270, %v276
      %v278 = vadd.s32 %v259, 24
      %s279 = scalar_lea.vmem %s256, 24
      %v280 = vld [vmem:[%s279] sm:$0xff]
      %s281 = scalar_lea.vmem %s255, 24
      %v282 = vld [vmem:[%s281] sm:$0xff]
      %v283 = vmul.f32 %v280, %v282
      %vm284 = vcmp.lt.s32.totalorder %v278, 32
      %v285 = vsel %vm284, %v283, 0.0
      %v286 = vadd.f32 %v277, %v285
      %v287 = vrot.slane %v286, 4
      %v288 = vadd.f32 %v286, %v287
      %v289 = vrot.slane %v288, 2
      %v290 = vadd.f32 %v288, %v289
      %v291 = vrot.slane %v290, 1
      %v292 = vadd.f32 %v290, %v291
      %s293 = smov %s255
      %s294 = smov %s256
      %v295 = vlaneseq
      %v296 = vshrl.u32 %v295, 7
      %v297 = vmov %v296
      %v298 = vmul.f32 %v292, %v247
      %v300 = vlaneseq
      %v301 = vand.u32 %v300, 127
      %v302 = vld [vmem:[%s294] sm:$0xff]
      %v303 = vmul.f32 %v302, %v298
      %v304 = vld [vmem:[%s293] sm:$0xff]
      %v305 = vstv %s64
      %vm306 = vcmp.gt.s32.totalorder %v301, %v305
      %v307 = vsub.f32 %v304, %v303
      %v308 = vsel %vm306, %v307, %v304
      %v309 = vstv %s64
      %v310 = vlaneseq
      %v311 = vand.u32 %v310, 127
      %vm312 = vcmp.eq.s32.totalorder %v311, %v309
      %v313 = vstv %s64
      %vm314 = vcmp.ge.s32.totalorder %v297, %v313
      %vm315 = vmand %vm312, %vm314
      %v316 = vsel %vm315, %v302, %v308
      %317 = vst [vmem:[%s293] sm:$0xff] %v316
      %v318 = vadd.s32 %v297, 8
      %v319 = vlaneseq
      %v320 = vand.u32 %v319, 127
      %s321 = scalar_lea.vmem %s294, 8
      %v322 = vld [vmem:[%s321] sm:$0xff]
      %v323 = vmul.f32 %v322, %v298
      %s324 = scalar_lea.vmem %s293, 8
      %v325 = vld [vmem:[%s324] sm:$0xff]
      %v326 = vstv %s64
      %vm327 = vcmp.gt.s32.totalorder %v320, %v326
      %v328 = vsub.f32 %v325, %v323
      %v329 = vsel %vm327, %v328, %v325
      %v330 = vstv %s64
      %v331 = vlaneseq
      %v332 = vand.u32 %v331, 127
      %vm333 = vcmp.eq.s32.totalorder %v332, %v330
      %v334 = vstv %s64
      %vm335 = vcmp.ge.s32.totalorder %v318, %v334
      %vm336 = vmand %vm333, %vm335
      %v337 = vsel %vm336, %v322, %v329
      %338 = vst [vmem:[%s324] sm:$0xff] %v337
      %v339 = vadd.s32 %v297, 16
      %v340 = vlaneseq
      %v341 = vand.u32 %v340, 127
      %s342 = scalar_lea.vmem %s294, 16
      %v343 = vld [vmem:[%s342] sm:$0xff]
      %v344 = vmul.f32 %v343, %v298
      %s345 = scalar_lea.vmem %s293, 16
      %v346 = vld [vmem:[%s345] sm:$0xff]
      %v347 = vstv %s64
      %vm348 = vcmp.gt.s32.totalorder %v341, %v347
      %v349 = vsub.f32 %v346, %v344
      %v350 = vsel %vm348, %v349, %v346
      %v351 = vstv %s64
      %v352 = vlaneseq
      %v353 = vand.u32 %v352, 127
      %vm354 = vcmp.eq.s32.totalorder %v353, %v351
      %v355 = vstv %s64
      %vm356 = vcmp.ge.s32.totalorder %v339, %v355
      %vm357 = vmand %vm354, %vm356
      %v358 = vsel %vm357, %v343, %v350
      %359 = vst [vmem:[%s345] sm:$0xff] %v358
      %v360 = vadd.s32 %v297, 24
      %v361 = vlaneseq
      %v362 = vand.u32 %v361, 127
      %s363 = scalar_lea.vmem %s294, 24
      %v364 = vld [vmem:[%s363] sm:$0xff]
      %v365 = vmul.f32 %v364, %v298
      %s366 = scalar_lea.vmem %s293, 24
      %v367 = vld [vmem:[%s366] sm:$0xff]
      %v368 = vstv %s64
      %vm369 = vcmp.gt.s32.totalorder %v362, %v368
      %v370 = vsub.f32 %v367, %v365
      %v371 = vsel %vm369, %v370, %v367
      %v372 = vstv %s64
      %v373 = vlaneseq
      %v374 = vand.u32 %v373, 127
      %vm375 = vcmp.eq.s32.totalorder %v374, %v372
      %v376 = vstv %s64
      %vm377 = vcmp.ge.s32.totalorder %v360, %v376
      %vm378 = vmand %vm375, %vm377
      %v379 = vsel %vm378, %v364, %v371
      %380 = vst [vmem:[%s366] sm:$0xff] %v379
      %s381 = scalar_lea.vmem %s293, %s64
      %v382 = vld [vmem:[%s381] ss:$0 sm:$0xff]
      %v383 = vstv %s64
      %v384 = vlaneseq
      %v385 = vand.u32 %v384, 127
      %vm386 = vcmp.eq.s32.totalorder %v385, %v383
      %v387 = vsel %vm386, %v160, %v382
      %388 = vst [vmem:[%s381] sm:$0x1] %v387
    $region40: #{custom-call.184} parent=1 // loop_footer
      %s68 = sadd.s32 1, %s64
    $region41: #{custom-call.184} parent=1 // loop_footer_branch
      %63 = sbr.rel target = $region37
    $region42: #{custom-call.184} parent=1 // loop_exit
      _
    %s390 = sshllo.u32 0, 1
    %v392 = vld [vmem:[#allocation2] sm:%s390]
    %s393 = sshllo.u32 0, 1
    %394 = vst [vmem:[#allocation3] sm:%s393] %v392
    // Predicated region
    $region43: #{custom-call.184} parent=1 // pred_check
      _
    $region44: #{custom-call.184} parent=1 // pred_check_branch
      %396 = sbr.rel (0) target = $region46
    $region45: #{custom-call.184} parent=1 // pred_region
      // Predicated region
      $region47: #{custom-call.184} parent=45 // pred_check
        _
      $region48: #{custom-call.184} parent=45 // pred_check_branch
        %398 = sbr.rel (0) target = $region50
      $region49: #{custom-call.184} parent=45 // pred_region
        // Predicated region
        $region62: #{custom-call.184} parent=49 // pred_check
          _
        $region63: #{custom-call.184} parent=49 // pred_check_branch
          %419 = sbr.rel (0) target = $region65
        $region64: #{custom-call.184} parent=49 // pred_region
          loop: start=0, step=1, limit=1
          $region66: #{custom-call.184} parent=64 // loop_pre_header
            _
          $region67: #{custom-call.184} parent=64 // loop_header
            %s421 = sphi 0, %s425
            %p422 = scmp.ge.s32.totalorder %s421, 1
            %s426 = sphi [#allocation1], [#allocation1]
            %s427 = sphi %s1, %s1
          $region68: #{custom-call.184} parent=64 // loop_header_branch
            %424 = sbr.rel (%p422) target = $region72
          $region69: #{custom-call.184} parent=64 // loop_body
            %v428 = vld [vmem:[%s426] sm:$0xff]
            %429 = vst [vmem:[%s427] sm:$0xff] %v428
            %v430 = vld [vmem:[%s426 + $0x8] sm:$0xff]
            %431 = vst [vmem:[%s427 + $0x8] sm:$0xff] %v430
            %v432 = vld [vmem:[%s426 + $0x10] sm:$0xff]
            %433 = vst [vmem:[%s427 + $0x10] sm:$0xff] %v432
            %v434 = vld [vmem:[%s426 + $0x18] sm:$0xff]
            %435 = vst [vmem:[%s427 + $0x18] sm:$0xff] %v434
          $region70: #{custom-call.184} parent=64 // loop_footer
            %s425 = sadd.s32 1, %s421
          $region71: #{custom-call.184} parent=64 // loop_footer_branch
            %420 = sbr.rel target = $region67
          $region72: #{custom-call.184} parent=64 // loop_exit
            _
        $region65: #{custom-call.184} parent=49 // pred_fallthru
          _
        // Predicated region
        $region73: #{custom-call.184} parent=49 // pred_check
          _
        $region74: #{custom-call.184} parent=49 // pred_check_branch
          %437 = sbr.rel target = $region76
        $region75: #{custom-call.184} parent=49 // pred_region
          _
        $region76: #{custom-call.184} parent=49 // pred_fallthru
          _
      $region50: #{custom-call.184} parent=45 // pred_fallthru
        _
      // Predicated region
      $region51: #{custom-call.184} parent=45 // pred_check
        _
      $region52: #{custom-call.184} parent=45 // pred_check_branch
        %400 = sbr.rel target = $region54
      $region53: #{custom-call.184} parent=45 // pred_region
        loop: start=0, step=1, limit=1
        $region55: #{custom-call.184} parent=53 // loop_pre_header
          _
        $region56: #{custom-call.184} parent=53 // loop_header
          %s403 = sphi 0, %s407
          %p404 = scmp.ge.s32.totalorder %s403, 1
          %s408 = sphi [#allocation1], [#allocation1]
          %s409 = sphi %s1, %s1
        $region57: #{custom-call.184} parent=53 // loop_header_branch
          %406 = sbr.rel (%p404) target = $region61
        $region58: #{custom-call.184} parent=53 // loop_body
          %v410 = vld [vmem:[%s408] sm:$0xff]
          %411 = vst [vmem:[%s409] sm:$0xff] %v410
          %v412 = vld [vmem:[%s408 + $0x8] sm:$0xff]
          %413 = vst [vmem:[%s409 + $0x8] sm:$0xff] %v412
          %v414 = vld [vmem:[%s408 + $0x10] sm:$0xff]
          %415 = vst [vmem:[%s409 + $0x10] sm:$0xff] %v414
          %v416 = vld [vmem:[%s408 + $0x18] sm:$0xff]
          %417 = vst [vmem:[%s409 + $0x18] sm:$0xff] %v416
        $region59: #{custom-call.184} parent=53 // loop_footer
          %s407 = sadd.s32 1, %s403
        $region60: #{custom-call.184} parent=53 // loop_footer_branch
          %402 = sbr.rel target = $region56
        $region61: #{custom-call.184} parent=53 // loop_exit
          _
      $region54: #{custom-call.184} parent=45 // pred_fallthru
        _
    $region46: #{custom-call.184} parent=1 // pred_fallthru
      _
    %438 = vnop
    // Predicated region
    $region77: #{custom-call.184} parent=1 // pred_check
      _
    $region78: #{custom-call.184} parent=1 // pred_check_branch
      %440 = sbr.rel (0) target = $region80
    $region79: #{custom-call.184} parent=1 // pred_region
      // Predicated region
      $region81: #{custom-call.184} parent=79 // pred_check
        _
      $region82: #{custom-call.184} parent=79 // pred_check_branch
        %442 = sbr.rel (0) target = $region84
      $region83: #{custom-call.184} parent=79 // pred_region
        // Predicated region
        $region85: #{custom-call.184} parent=83 // pred_check
          _
        $region86: #{custom-call.184} parent=83 // pred_check_branch
          %444 = sbr.rel target = $region88
        $region87: #{custom-call.184} parent=83 // pred_region
          // Predicated region
          $region100: #{custom-call.184} parent=87 // pred_check
            _
          $region101: #{custom-call.184} parent=87 // pred_check_branch
            %459 = sbr.rel (0) target = $region103
          $region102: #{custom-call.184} parent=87 // pred_region
            loop: start=0, step=1, limit=1
            $region104: #{custom-call.184} parent=102 // loop_pre_header
              _
            $region105: #{custom-call.184} parent=102 // loop_header
              %s462 = sphi 0, %s466
              %p463 = scmp.ge.s32.totalorder %s462, 1
              %s467 = sphi [#allocation3], [#allocation3]
              %s468 = sphi %s2, %s2
            $region106: #{custom-call.184} parent=102 // loop_header_branch
              %465 = sbr.rel (%p463) target = $region110
            $region107: #{custom-call.184} parent=102 // loop_body
              %v469 = vld [vmem:[%s467] sm:$0x1]
              %470 = vst [vmem:[%s468] sm:$0x1] %v469
            $region108: #{custom-call.184} parent=102 // loop_footer
              %s466 = sadd.s32 1, %s462
            $region109: #{custom-call.184} parent=102 // loop_footer_branch
              %461 = sbr.rel target = $region105
            $region110: #{custom-call.184} parent=102 // loop_exit
              _
          $region103: #{custom-call.184} parent=87 // pred_fallthru
            _
        $region88: #{custom-call.184} parent=83 // pred_fallthru
          _
        // Predicated region
        $region89: #{custom-call.184} parent=83 // pred_check
          _
        $region90: #{custom-call.184} parent=83 // pred_check_branch
          %446 = sbr.rel (0) target = $region92
        $region91: #{custom-call.184} parent=83 // pred_region
          loop: start=0, step=1, limit=1
          $region93: #{custom-call.184} parent=91 // loop_pre_header
            _
          $region94: #{custom-call.184} parent=91 // loop_header
            %s449 = sphi 0, %s453
            %p450 = scmp.ge.s32.totalorder %s449, 1
            %s454 = sphi [#allocation3], [#allocation3]
            %s455 = sphi %s2, %s2
          $region95: #{custom-call.184} parent=91 // loop_header_branch
            %452 = sbr.rel (%p450) target = $region99
          $region96: #{custom-call.184} parent=91 // loop_body
            %v456 = vld [vmem:[%s454] sm:$0x1]
            %457 = vst [vmem:[%s455] sm:$0x1] %v456
          $region97: #{custom-call.184} parent=91 // loop_footer
            %s453 = sadd.s32 1, %s449
          $region98: #{custom-call.184} parent=91 // loop_footer_branch
            %448 = sbr.rel target = $region94
          $region99: #{custom-call.184} parent=91 // loop_exit
            _
        $region92: #{custom-call.184} parent=83 // pred_fallthru
          _
      $region84: #{custom-call.184} parent=79 // pred_fallthru
        _
      %471 = vnop
    $region80: #{custom-call.184} parent=1 // pred_fallthru
      _
    // Predicated region
    $region111: #{custom-call.184} parent=1 // pred_check
      _
    $region112: #{custom-call.184} parent=1 // pred_check_branch
      %473 = sbr.rel (0) target = $region114
    $region113: #{custom-call.184} parent=1 // pred_region
      _
    $region114: #{custom-call.184} parent=1 // pred_fallthru
      _

// kernel: custom-call.185
$region0: #{custom-call.185}
  %s0 = inlined_call_operand.vmem [shape: f32[16,16], index: 0, kind: input, shape index: {}]
  %s1 = inlined_call_operand.vmem [shape: f32[16,16], index: 1, kind: output, shape index: {}]
  $region1: #{custom-call.185} parent=0
    #allocation0 [shape = 'u8[8192]{0}', space=vmem, size = 0x2000, scoped, tag = 'operand span for operand 0']
    #allocation1 [shape = 'u8[8192]{0}', space=vmem, size = 0x2000, scoped, tag = 'operand span for operand 1']
    %p3 = scmp.gt.s32.totalorder 16, 0
    // Predicated region
    $region2: #{custom-call.185} parent=1 // pred_check
      %p4 = pneg %p3
    $region3: #{custom-call.185} parent=1 // pred_check_branch
      %6 = sbr.rel (%p4) target = $region5
    $region4: #{custom-call.185} parent=1 // pred_region
      %s7 = sshra.s32 16, 3
      %p8 = scmp.gt.s32.totalorder %s7, 0
      // Predicated region
      $region6: #{custom-call.185} parent=4 // pred_check
        %p9 = pneg %p8
      $region7: #{custom-call.185} parent=4 // pred_check_branch
        %11 = sbr.rel (%p9) target = $region9
      $region8: #{custom-call.185} parent=4 // pred_region
        %s12 = ssub.s32 %s7, 1
        %s13 = smul.u32 %s12, 128
        %s14 = sshra.s32 %s13, 4
        %s15 = scalar_lea.vmem %s0, %s14
        %v16 = vld [vmem:[%s0] sm:$0xff]
        // While loop
        $region10: #{custom-call.185} parent=8 // loop_pre_header
          _
        $region11: #{custom-call.185} parent=8 // loop_header
          %s17 = sphi %s0, %s39
          %s18 = sphi [#allocation0], %s40
          %v19 = vphi %v16, %v41
          %s20 = ssub.s32 %s15, 64
          %p21 = scmp.gt.s32.totalorder %s17, %s20
        $region12: #{custom-call.185} parent=8 // loop_header_branch
          %23 = sbr.rel (%p21) target = $region16
        $region13: #{custom-call.185} parent=8 // loop_body
          %24 = vst [vmem:[%s18] sm:$0xff] %v19
          %v25 = vld [vmem:[%s17 + $0x8] sm:$0xff]
          %26 = vst [vmem:[%s18 + $0x8] sm:$0xff] %v25
          %v27 = vld [vmem:[%s17 + $0x10] sm:$0xff]
          %28 = vst [vmem:[%s18 + $0x10] sm:$0xff] %v27
          %v29 = vld [vmem:[%s17 + $0x18] sm:$0xff]
          %30 = vst [vmem:[%s18 + $0x18] sm:$0xff] %v29
          %v31 = vld [vmem:[%s17 + $0x20] sm:$0xff]
          %32 = vst [vmem:[%s18 + $0x20] sm:$0xff] %v31
          %v33 = vld [vmem:[%s17 + $0x28] sm:$0xff]
          %34 = vst [vmem:[%s18 + $0x28] sm:$0xff] %v33
          %v35 = vld [vmem:[%s17 + $0x30] sm:$0xff]
          %36 = vst [vmem:[%s18 + $0x30] sm:$0xff] %v35
          %v37 = vld [vmem:[%s17 + $0x38] sm:$0xff]
          %38 = vst [vmem:[%s18 + $0x38] sm:$0xff] %v37
        $region14: #{custom-call.185} parent=8 // loop_footer
          %s39 = scalar_lea.vmem %s17, 64
          %s40 = scalar_lea.vmem %s18, 64
          %v41 = vld [vmem:[%s17 + $0x40] sm:$0xff]
        $region15: #{custom-call.185} parent=8 // loop_footer_branch
          %42 = sbr.rel target = $region11
        $region16: #{custom-call.185} parent=8 // loop_exit
          _
        // While loop
        $region17: #{custom-call.185} parent=8 // loop_pre_header
          _
        $region18: #{custom-call.185} parent=8 // loop_header
          %s43 = sphi %s17, %s51
          %s44 = sphi %s18, %s52
          %v45 = vphi %v19, %v45
          %p46 = scmp.gt.s32.totalorder %s43, %s15
        $region19: #{custom-call.185} parent=8 // loop_header_branch
          %48 = sbr.rel (%p46) target = $region23
        $region20: #{custom-call.185} parent=8 // loop_body
          %v49 = vld [vmem:[%s43] sm:$0xff]
          %50 = vst [vmem:[%s44] sm:$0xff] %v49
        $region21: #{custom-call.185} parent=8 // loop_footer
          %s51 = scalar_lea.vmem %s43, 8
          %s52 = scalar_lea.vmem %s44, 8
        $region22: #{custom-call.185} parent=8 // loop_footer_branch
          %53 = sbr.rel target = $region18
        $region23: #{custom-call.185} parent=8 // loop_exit
          _
      $region9: #{custom-call.185} parent=4 // pred_fallthru
        _
      %s54 = sand.u32 16, 7
      %s55 = sshllo.u32 0, %s54
      %s56 = smul.u32 %s7, 128
      %s57 = sshra.s32 %s56, 4
      %s58 = scalar_lea.vmem [#allocation0], %s57
      %s59 = smul.u32 %s7, 128
      %s60 = sshra.s32 %s59, 4
      %s61 = scalar_lea.vmem %s0, %s60
      %v62 = vld [vmem:[%s61] sm:%s55]
      %63 = vst [vmem:[%s58] sm:%s55] %v62
    $region5: #{custom-call.185} parent=1 // pred_fallthru
      _
    %v64 = vlaneseq
    %v65 = vand.u32 %v64, 127
    %v66 = vlaneseq
    %v67 = vshrl.u32 %v66, 7
    %vm69 = vcmp.eq.s32.totalorder %v65, %v67
    %v70 = vld [vmem:[#allocation0] sm:$0xff]
    %v71 = vlaneseq
    %v72 = vand.u32 %v71, 127
    %vm73 = vcmp.eq.s32.totalorder %v72, 0
    %v74 = vsel %vm73, %v70, 1.0
    %v75 = vsel %vm69, %v74, 0.0
    %v76 = vlaneseq
    %v77 = vand.u32 %v76, 127
    %v78 = vlaneseq
    %v79 = vshrl.u32 %v78, 7
    %v80 = vadd.s32 %v79, 8
    %vm81 = vcmp.eq.s32.totalorder %v77, %v80
    %v82 = vsel %vm81, 1.0, 0.0
    %s83 = scalar_lea.vmem [#allocation0], 1
    %v84 = vld [vmem:[%s83] ss:$0 sm:$0xff]
    %vm85 = vcmask 130048
    %v86 = vsel %vm85, %v84, 0.0
    %v87 = vlaneseq
    %v88 = vand.u32 %v87, 127
    %vm89 = vcmp.eq.s32.totalorder %v88, 1
    %v90 = vmul.f32 %v86, %v75
    %91 = vadd.xlane.f32.xlu0 %v90
    %v92 = vpop.xlane.xlu0 %91
    %v93 = vsel %vm89, %v92, %v75
    %s94 = scalar_lea.vmem [#allocation0], 2
    %v95 = vld [vmem:[%s94] ss:$0 sm:$0xff]
    %vm96 = vcmask 130048
    %v97 = vsel %vm96, %v95, 0.0
    %v98 = vlaneseq
    %v99 = vand.u32 %v98, 127
    %vm100 = vcmp.eq.s32.totalorder %v99, 2
    %v101 = vmul.f32 %v97, %v93
    %102 = vadd.xlane.f32.xlu0 %v101
    %v103 = vpop.xlane.xlu0 %102
    %v104 = vsel %vm100, %v103, %v93
    %s105 = scalar_lea.vmem [#allocation0], 3
    %v106 = vld [vmem:[%s105] ss:$0 sm:$0xff]
    %vm107 = vcmask 130048
    %v108 = vsel %vm107, %v106, 0.0
    %v109 = vlaneseq
    %v110 = vand.u32 %v109, 127
    %vm111 = vcmp.eq.s32.totalorder %v110, 3
    %v112 = vmul.f32 %v108, %v104
    %113 = vadd.xlane.f32.xlu0 %v112
    %v114 = vpop.xlane.xlu0 %113
    %v115 = vsel %vm111, %v114, %v104
    %s116 = scalar_lea.vmem [#allocation0], 4
    %v117 = vld [vmem:[%s116] ss:$0 sm:$0xff]
    %vm118 = vcmask 130048
    %v119 = vsel %vm118, %v117, 0.0
    %v120 = vlaneseq
    %v121 = vand.u32 %v120, 127
    %vm122 = vcmp.eq.s32.totalorder %v121, 4
    %v123 = vmul.f32 %v119, %v115
    %124 = vadd.xlane.f32.xlu0 %v123
    %v125 = vpop.xlane.xlu0 %124
    %v126 = vsel %vm122, %v125, %v115
    %s127 = scalar_lea.vmem [#allocation0], 5
    %v128 = vld [vmem:[%s127] ss:$0 sm:$0xff]
    %vm129 = vcmask 130048
    %v130 = vsel %vm129, %v128, 0.0
    %v131 = vlaneseq
    %v132 = vand.u32 %v131, 127
    %vm133 = vcmp.eq.s32.totalorder %v132, 5
    %v134 = vmul.f32 %v130, %v126
    %135 = vadd.xlane.f32.xlu0 %v134
    %v136 = vpop.xlane.xlu0 %135
    %v137 = vsel %vm133, %v136, %v126
    %s138 = scalar_lea.vmem [#allocation0], 6
    %v139 = vld [vmem:[%s138] ss:$0 sm:$0xff]
    %vm140 = vcmask 130048
    %v141 = vsel %vm140, %v139, 0.0
    %v142 = vlaneseq
    %v143 = vand.u32 %v142, 127
    %vm144 = vcmp.eq.s32.totalorder %v143, 6
    %v145 = vmul.f32 %v141, %v137
    %146 = vadd.xlane.f32.xlu0 %v145
    %v147 = vpop.xlane.xlu0 %146
    %v148 = vsel %vm144, %v147, %v137
    %s149 = scalar_lea.vmem [#allocation0], 7
    %v150 = vld [vmem:[%s149] ss:$0 sm:$0xff]
    %vm151 = vcmask 130048
    %v152 = vsel %vm151, %v150, 0.0
    %v153 = vlaneseq
    %v154 = vand.u32 %v153, 127
    %vm155 = vcmp.eq.s32.totalorder %v154, 7
    %v156 = vmul.f32 %v152, %v148
    %157 = vadd.xlane.f32.xlu0 %v156
    %v158 = vpop.xlane.xlu0 %157
    %v159 = vsel %vm155, %v158, %v148
    %s160 = scalar_lea.vmem [#allocation0], 8
    %v161 = vld [vmem:[%s160] ss:$0 sm:$0xff]
    %vm162 = vcmask 130048
    %v163 = vsel %vm162, %v161, 0.0
    %v164 = vlaneseq
    %v165 = vand.u32 %v164, 127
    %vm166 = vcmp.eq.s32.totalorder %v165, 8
    %v167 = vmul.f32 %v163, %v159
    %168 = vadd.xlane.f32.xlu0 %v167
    %v169 = vpop.xlane.xlu0 %168
    %v170 = vsel %vm166, %v169, %v159
    %v171 = vmul.f32 %v163, %v82
    %172 = vadd.xlane.f32.xlu0 %v171
    %v173 = vpop.xlane.xlu0 %172
    %v174 = vsel %vm166, %v173, %v82
    %s175 = scalar_lea.vmem [#allocation0], 9
    %v176 = vld [vmem:[%s175] ss:$0 sm:$0xff]
    %vm177 = vcmask 130048
    %v178 = vsel %vm177, %v176, 0.0
    %v179 = vlaneseq
    %v180 = vand.u32 %v179, 127
    %vm181 = vcmp.eq.s32.totalorder %v180, 9
    %v182 = vmul.f32 %v178, %v170
    %183 = vadd.xlane.f32.xlu0 %v182
    %v184 = vpop.xlane.xlu0 %183
    %v185 = vsel %vm181, %v184, %v170
    %v186 = vmul.f32 %v178, %v174
    %187 = vadd.xlane.f32.xlu0 %v186
    %v188 = vpop.xlane.xlu0 %187
    %v189 = vsel %vm181, %v188, %v174
    %s190 = scalar_lea.vmem [#allocation0], 10
    %v191 = vld [vmem:[%s190] ss:$0 sm:$0xff]
    %vm192 = vcmask 130048
    %v193 = vsel %vm192, %v191, 0.0
    %v194 = vlaneseq
    %v195 = vand.u32 %v194, 127
    %vm196 = vcmp.eq.s32.totalorder %v195, 10
    %v197 = vmul.f32 %v193, %v185
    %198 = vadd.xlane.f32.xlu0 %v197
    %v199 = vpop.xlane.xlu0 %198
    %v200 = vsel %vm196, %v199, %v185
    %v201 = vmul.f32 %v193, %v189
    %202 = vadd.xlane.f32.xlu0 %v201
    %v203 = vpop.xlane.xlu0 %202
    %v204 = vsel %vm196, %v203, %v189
    %s205 = scalar_lea.vmem [#allocation0], 11
    %v206 = vld [vmem:[%s205] ss:$0 sm:$0xff]
    %vm207 = vcmask 130048
    %v208 = vsel %vm207, %v206, 0.0
    %v209 = vlaneseq
    %v210 = vand.u32 %v209, 127
    %vm211 = vcmp.eq.s32.totalorder %v210, 11
    %v212 = vmul.f32 %v208, %v200
    %213 = vadd.xlane.f32.xlu0 %v212
    %v214 = vpop.xlane.xlu0 %213
    %v215 = vsel %vm211, %v214, %v200
    %v216 = vmul.f32 %v208, %v204
    %217 = vadd.xlane.f32.xlu0 %v216
    %v218 = vpop.xlane.xlu0 %217
    %v219 = vsel %vm211, %v218, %v204
    %s220 = scalar_lea.vmem [#allocation0], 12
    %v221 = vld [vmem:[%s220] ss:$0 sm:$0xff]
    %vm222 = vcmask 130048
    %v223 = vsel %vm222, %v221, 0.0
    %v224 = vlaneseq
    %v225 = vand.u32 %v224, 127
    %vm226 = vcmp.eq.s32.totalorder %v225, 12
    %v227 = vmul.f32 %v223, %v215
    %228 = vadd.xlane.f32.xlu0 %v227
    %v229 = vpop.xlane.xlu0 %228
    %v230 = vsel %vm226, %v229, %v215
    %v231 = vmul.f32 %v223, %v219
    %232 = vadd.xlane.f32.xlu0 %v231
    %v233 = vpop.xlane.xlu0 %232
    %v234 = vsel %vm226, %v233, %v219
    %s235 = scalar_lea.vmem [#allocation0], 13
    %v236 = vld [vmem:[%s235] ss:$0 sm:$0xff]
    %vm237 = vcmask 130048
    %v238 = vsel %vm237, %v236, 0.0
    %v239 = vlaneseq
    %v240 = vand.u32 %v239, 127
    %vm241 = vcmp.eq.s32.totalorder %v240, 13
    %v242 = vmul.f32 %v238, %v230
    %243 = vadd.xlane.f32.xlu0 %v242
    %v244 = vpop.xlane.xlu0 %243
    %v245 = vsel %vm241, %v244, %v230
    %v246 = vmul.f32 %v238, %v234
    %247 = vadd.xlane.f32.xlu0 %v246
    %v248 = vpop.xlane.xlu0 %247
    %v249 = vsel %vm241, %v248, %v234
    %s250 = scalar_lea.vmem [#allocation0], 14
    %v251 = vld [vmem:[%s250] ss:$0 sm:$0xff]
    %vm252 = vcmask 130048
    %v253 = vsel %vm252, %v251, 0.0
    %v254 = vlaneseq
    %v255 = vand.u32 %v254, 127
    %vm256 = vcmp.eq.s32.totalorder %v255, 14
    %v257 = vmul.f32 %v253, %v245
    %258 = vadd.xlane.f32.xlu0 %v257
    %v259 = vpop.xlane.xlu0 %258
    %v260 = vsel %vm256, %v259, %v245
    %v261 = vmul.f32 %v253, %v249
    %262 = vadd.xlane.f32.xlu0 %v261
    %v263 = vpop.xlane.xlu0 %262
    %v264 = vsel %vm256, %v263, %v249
    %s265 = scalar_lea.vmem [#allocation0], 15
    %v266 = vld [vmem:[%s265] ss:$0 sm:$0xff]
    %vm267 = vcmask 130048
    %v268 = vsel %vm267, %v266, 0.0
    %v269 = vlaneseq
    %v270 = vand.u32 %v269, 127
    %vm271 = vcmp.eq.s32.totalorder %v270, 15
    %v272 = vmul.f32 %v268, %v260
    %273 = vadd.xlane.f32.xlu0 %v272
    %v274 = vpop.xlane.xlu0 %273
    %v275 = vsel %vm271, %v274, %v260
    %v276 = vmul.f32 %v268, %v264
    %277 = vadd.xlane.f32.xlu0 %v276
    %v278 = vpop.xlane.xlu0 %277
    %v279 = vsel %vm271, %v278, %v264
    %280 = vst [vmem:[#allocation1] sm:$0xff] %v275
    %s281 = scalar_lea.vmem [#allocation1], 8
    %282 = vst [vmem:[%s281] sm:$0xff] %v279
    %p284 = scmp.gt.s32.totalorder 16, 0
    // Predicated region
    $region24: #{custom-call.185} parent=1 // pred_check
      %p285 = pneg %p284
    $region25: #{custom-call.185} parent=1 // pred_check_branch
      %287 = sbr.rel (%p285) target = $region27
    $region26: #{custom-call.185} parent=1 // pred_region
      %s288 = sshra.s32 16, 3
      %p289 = scmp.gt.s32.totalorder %s288, 0
      // Predicated region
      $region28: #{custom-call.185} parent=26 // pred_check
        %p290 = pneg %p289
      $region29: #{custom-call.185} parent=26 // pred_check_branch
        %292 = sbr.rel (%p290) target = $region31
      $region30: #{custom-call.185} parent=26 // pred_region
        %s293 = ssub.s32 %s288, 1
        %s294 = smul.u32 %s293, 128
        %s295 = sshra.s32 %s294, 4
        %s296 = scalar_lea.vmem [#allocation1], %s295
        %v297 = vld [vmem:[#allocation1] sm:$0xff]
        // While loop
        $region32: #{custom-call.185} parent=30 // loop_pre_header
          _
        $region33: #{custom-call.185} parent=30 // loop_header
          %s298 = sphi [#allocation1], %s320
          %s299 = sphi %s1, %s321
          %v300 = vphi %v297, %v322
          %s301 = ssub.s32 %s296, 64
          %p302 = scmp.gt.s32.totalorder %s298, %s301
        $region34: #{custom-call.185} parent=30 // loop_header_branch
          %304 = sbr.rel (%p302) target = $region38
        $region35: #{custom-call.185} parent=30 // loop_body
          %305 = vst [vmem:[%s299] sm:$0xff] %v300
          %v306 = vld [vmem:[%s298 + $0x8] sm:$0xff]
          %307 = vst [vmem:[%s299 + $0x8] sm:$0xff] %v306
          %v308 = vld [vmem:[%s298 + $0x10] sm:$0xff]
          %309 = vst [vmem:[%s299 + $0x10] sm:$0xff] %v308
          %v310 = vld [vmem:[%s298 + $0x18] sm:$0xff]
          %311 = vst [vmem:[%s299 + $0x18] sm:$0xff] %v310
          %v312 = vld [vmem:[%s298 + $0x20] sm:$0xff]
          %313 = vst [vmem:[%s299 + $0x20] sm:$0xff] %v312
          %v314 = vld [vmem:[%s298 + $0x28] sm:$0xff]
          %315 = vst [vmem:[%s299 + $0x28] sm:$0xff] %v314
          %v316 = vld [vmem:[%s298 + $0x30] sm:$0xff]
          %317 = vst [vmem:[%s299 + $0x30] sm:$0xff] %v316
          %v318 = vld [vmem:[%s298 + $0x38] sm:$0xff]
          %319 = vst [vmem:[%s299 + $0x38] sm:$0xff] %v318
        $region36: #{custom-call.185} parent=30 // loop_footer
          %s320 = scalar_lea.vmem %s298, 64
          %s321 = scalar_lea.vmem %s299, 64
          %v322 = vld [vmem:[%s298 + $0x40] sm:$0xff]
        $region37: #{custom-call.185} parent=30 // loop_footer_branch
          %323 = sbr.rel target = $region33
        $region38: #{custom-call.185} parent=30 // loop_exit
          _
        // While loop
        $region39: #{custom-call.185} parent=30 // loop_pre_header
          _
        $region40: #{custom-call.185} parent=30 // loop_header
          %s324 = sphi %s298, %s332
          %s325 = sphi %s299, %s333
          %v326 = vphi %v300, %v326
          %p327 = scmp.gt.s32.totalorder %s324, %s296
        $region41: #{custom-call.185} parent=30 // loop_header_branch
          %329 = sbr.rel (%p327) target = $region45
        $region42: #{custom-call.185} parent=30 // loop_body
          %v330 = vld [vmem:[%s324] sm:$0xff]
          %331 = vst [vmem:[%s325] sm:$0xff] %v330
        $region43: #{custom-call.185} parent=30 // loop_footer
          %s332 = scalar_lea.vmem %s324, 8
          %s333 = scalar_lea.vmem %s325, 8
        $region44: #{custom-call.185} parent=30 // loop_footer_branch
          %334 = sbr.rel target = $region40
        $region45: #{custom-call.185} parent=30 // loop_exit
          _
      $region31: #{custom-call.185} parent=26 // pred_fallthru
        _
      %s335 = sand.u32 16, 7
      %s336 = sshllo.u32 0, %s335
      %s337 = smul.u32 %s288, 128
      %s338 = sshra.s32 %s337, 4
      %s339 = scalar_lea.vmem %s1, %s338
      %s340 = smul.u32 %s288, 128
      %s341 = sshra.s32 %s340, 4
      %s342 = scalar_lea.vmem [#allocation1], %s341
      %v343 = vld [vmem:[%s342] sm:%s336]
      %344 = vst [vmem:[%s339] sm:%s336] %v343
    $region27: #{custom-call.185} parent=1 // pred_fallthru
      _

// kernel: custom-call.186
$region0: #{custom-call.186}
  %s0 = inlined_call_operand.vmem [shape: f32[16,16], index: 0, kind: input, shape index: {}]
  %s1 = inlined_call_operand.vmem [shape: f32[16,16], index: 1, kind: output, shape index: {}]
  $region1: #{custom-call.186} parent=0
    #allocation0 [shape = 'u8[8192]{0}', space=vmem, size = 0x2000, scoped, tag = 'operand span for operand 0']
    #allocation1 [shape = 'u8[8192]{0}', space=vmem, size = 0x2000, scoped, tag = 'operand span for operand 1']
    // Predicated region
    $region2: #{custom-call.186} parent=1 // pred_check
      _
    $region3: #{custom-call.186} parent=1 // pred_check_branch
      %3 = sbr.rel (0) target = $region5
    $region4: #{custom-call.186} parent=1 // pred_region
      // Predicated region
      $region6: #{custom-call.186} parent=4 // pred_check
        _
      $region7: #{custom-call.186} parent=4 // pred_check_branch
        %5 = sbr.rel (0) target = $region9
      $region8: #{custom-call.186} parent=4 // pred_region
        // Predicated region
        $region21: #{custom-call.186} parent=8 // pred_check
          _
        $region22: #{custom-call.186} parent=8 // pred_check_branch
          %22 = sbr.rel (0) target = $region24
        $region23: #{custom-call.186} parent=8 // pred_region
          loop: start=0, step=1, limit=1
          $region25: #{custom-call.186} parent=23 // loop_pre_header
            _
          $region26: #{custom-call.186} parent=23 // loop_header
            %s24 = sphi 0, %s28
            %p25 = scmp.ge.s32.totalorder %s24, 1
            %s29 = sphi %s0, %s0
            %s30 = sphi [#allocation0], [#allocation0]
          $region27: #{custom-call.186} parent=23 // loop_header_branch
            %27 = sbr.rel (%p25) target = $region31
          $region28: #{custom-call.186} parent=23 // loop_body
            %v31 = vld [vmem:[%s29] sm:$0xff]
            %32 = vst [vmem:[%s30] sm:$0xff] %v31
            %v33 = vld [vmem:[%s29 + $0x8] sm:$0xff]
            %34 = vst [vmem:[%s30 + $0x8] sm:$0xff] %v33
          $region29: #{custom-call.186} parent=23 // loop_footer
            %s28 = sadd.s32 1, %s24
          $region30: #{custom-call.186} parent=23 // loop_footer_branch
            %23 = sbr.rel target = $region26
          $region31: #{custom-call.186} parent=23 // loop_exit
            _
        $region24: #{custom-call.186} parent=8 // pred_fallthru
          _
        // Predicated region
        $region32: #{custom-call.186} parent=8 // pred_check
          _
        $region33: #{custom-call.186} parent=8 // pred_check_branch
          %36 = sbr.rel target = $region35
        $region34: #{custom-call.186} parent=8 // pred_region
          _
        $region35: #{custom-call.186} parent=8 // pred_fallthru
          _
      $region9: #{custom-call.186} parent=4 // pred_fallthru
        _
      // Predicated region
      $region10: #{custom-call.186} parent=4 // pred_check
        _
      $region11: #{custom-call.186} parent=4 // pred_check_branch
        %7 = sbr.rel target = $region13
      $region12: #{custom-call.186} parent=4 // pred_region
        loop: start=0, step=1, limit=1
        $region14: #{custom-call.186} parent=12 // loop_pre_header
          _
        $region15: #{custom-call.186} parent=12 // loop_header
          %s10 = sphi 0, %s14
          %p11 = scmp.ge.s32.totalorder %s10, 1
          %s15 = sphi %s0, %s0
          %s16 = sphi [#allocation0], [#allocation0]
        $region16: #{custom-call.186} parent=12 // loop_header_branch
          %13 = sbr.rel (%p11) target = $region20
        $region17: #{custom-call.186} parent=12 // loop_body
          %v17 = vld [vmem:[%s15] sm:$0xff]
          %18 = vst [vmem:[%s16] sm:$0xff] %v17
          %v19 = vld [vmem:[%s15 + $0x8] sm:$0xff]
          %20 = vst [vmem:[%s16 + $0x8] sm:$0xff] %v19
        $region18: #{custom-call.186} parent=12 // loop_footer
          %s14 = sadd.s32 1, %s10
        $region19: #{custom-call.186} parent=12 // loop_footer_branch
          %9 = sbr.rel target = $region15
        $region20: #{custom-call.186} parent=12 // loop_exit
          _
      $region13: #{custom-call.186} parent=4 // pred_fallthru
        _
    $region5: #{custom-call.186} parent=1 // pred_fallthru
      _
    %37 = vnop
    %38 = vst [vmem:[#allocation1] sm:$0xff] 0.0
    %s39 = scalar_lea.vmem [#allocation1], 8
    %40 = vst [vmem:[%s39] sm:$0xff] 0.0
    %vm41 = vcmask 7168
    %v42 = vld [vmem:[#allocation1] ss:$0 sm:$0xff]
    %v43 = vld [vmem:[#allocation0] ss:$0 sm:$0xff]
    %v44 = vmul.f32 %v42, %v42
    %45 = vadd.xlane.f32.xlu0 %v44
    %v46 = vpop.xlane.xlu0 %45
    %v47 = vsub.f32 %v43, %v46
    %v48 = vrsqrt.pop %v47
    %v49 = vld [vmem:[#allocation0] sm:$0xff]
    %v50 = vld [vmem:[#allocation1] sm:$0xff]
    %v51 = vmul.f32 %v50, %v42
    %52 = vadd.xlane.f32.xlu0 %v51
    %v53 = vpop.xlane.xlu0 %52
    %v54 = vsub.f32 %v49, %v53
    %v55 = vmul.f32 %v54, %v48
    %v56 = vsel %vm41, %v55, 0.0
    %v57 = vadd.f32 %v50, %v56
    %58 = vst [vmem:[#allocation1] sm:$0xff] %v57
    %s59 = scalar_lea.vmem [#allocation0], 8
    %v60 = vld [vmem:[%s59] sm:$0xff]
    %s61 = scalar_lea.vmem [#allocation1], 8
    %v62 = vld [vmem:[%s61] sm:$0xff]
    %v63 = vmul.f32 %v62, %v42
    %64 = vadd.xlane.f32.xlu0 %v63
    %v65 = vpop.xlane.xlu0 %64
    %v66 = vsub.f32 %v60, %v65
    %v67 = vmul.f32 %v66, %v48
    %v68 = vsel %vm41, %v67, 0.0
    %v69 = vadd.f32 %v62, %v68
    %s70 = scalar_lea.vmem [#allocation1], 8
    %71 = vst [vmem:[%s70] sm:$0xff] %v69
    %vm72 = vcmask 15368
    %s73 = scalar_lea.vmem [#allocation1], 1
    %v74 = vld [vmem:[%s73] ss:$0 sm:$0xff]
    %s75 = scalar_lea.vmem [#allocation0], 1
    %v76 = vld [vmem:[%s75] ss:$0 sm:$0xff]
    %v77 = vmul.f32 %v74, %v74
    %78 = vadd.xlane.f32.xlu0 %v77
    %v79 = vpop.xlane.xlu0 %78
    %v80 = vsub.f32 %v76, %v79
    %v81 = vrsqrt.pop %v80
    %v82 = vld [vmem:[#allocation0] sm:$0xff]
    %v83 = vld [vmem:[#allocation1] sm:$0xff]
    %v84 = vmul.f32 %v83, %v74
    %85 = vadd.xlane.f32.xlu0 %v84
    %v86 = vpop.xlane.xlu0 %85
    %v87 = vsub.f32 %v82, %v86
    %v88 = vmul.f32 %v87, %v81
    %vm89 = vcmask 1047553
    %vm90 = vmand %vm72, %vm89
    %v91 = vsel %vm90, %v88, 0.0
    %v92 = vadd.f32 %v83, %v91
    %93 = vst [vmem:[#allocation1] sm:$0xff] %v92
    %s94 = scalar_lea.vmem [#allocation0], 8
    %v95 = vld [vmem:[%s94] sm:$0xff]
    %s96 = scalar_lea.vmem [#allocation1], 8
    %v97 = vld [vmem:[%s96] sm:$0xff]
    %v98 = vmul.f32 %v97, %v74
    %99 = vadd.xlane.f32.xlu0 %v98
    %v100 = vpop.xlane.xlu0 %99
    %v101 = vsub.f32 %v95, %v100
    %v102 = vmul.f32 %v101, %v81
    %v103 = vsel %vm72, %v102, 0.0
    %v104 = vadd.f32 %v97, %v103
    %s105 = scalar_lea.vmem [#allocation1], 8
    %106 = vst [vmem:[%s105] sm:$0xff] %v104
    %vm107 = vcmask 23568
    %s108 = scalar_lea.vmem [#allocation1], 2
    %v109 = vld [vmem:[%s108] ss:$0 sm:$0xff]
    %s110 = scalar_lea.vmem [#allocation0], 2
    %v111 = vld [vmem:[%s110] ss:$0 sm:$0xff]
    %v112 = vmul.f32 %v109, %v109
    %113 = vadd.xlane.f32.xlu0 %v112
    %v114 = vpop.xlane.xlu0 %113
    %v115 = vsub.f32 %v111, %v114
    %v116 = vrsqrt.pop %v115
    %v117 = vld [vmem:[#allocation0] sm:$0xff]
    %v118 = vld [vmem:[#allocation1] sm:$0xff]
    %v119 = vmul.f32 %v118, %v109
    %120 = vadd.xlane.f32.xlu0 %v119
    %v121 = vpop.xlane.xlu0 %120
    %v122 = vsub.f32 %v117, %v121
    %v123 = vmul.f32 %v122, %v116
    %vm124 = vcmask 1047554
    %vm125 = vmand %vm107, %vm124
    %v126 = vsel %vm125, %v123, 0.0
    %v127 = vadd.f32 %v118, %v126
    %128 = vst [vmem:[#allocation1] sm:$0xff] %v127
    %s129 = scalar_lea.vmem [#allocation0], 8
    %v130 = vld [vmem:[%s129] sm:$0xff]
    %s131 = scalar_lea.vmem [#allocation1], 8
    %v132 = vld [vmem:[%s131] sm:$0xff]
    %v133 = vmul.f32 %v132, %v109
    %134 = vadd.xlane.f32.xlu0 %v133
    %v135 = vpop.xlane.xlu0 %134
    %v136 = vsub.f32 %v130, %v135
    %v137 = vmul.f32 %v136, %v116
    %v138 = vsel %vm107, %v137, 0.0
    %v139 = vadd.f32 %v132, %v138
    %s140 = scalar_lea.vmem [#allocation1], 8
    %141 = vst [vmem:[%s140] sm:$0xff] %v139
    %vm142 = vcmask 31768
    %s143 = scalar_lea.vmem [#allocation1], 3
    %v144 = vld [vmem:[%s143] ss:$0 sm:$0xff]
    %s145 = scalar_lea.vmem [#allocation0], 3
    %v146 = vld [vmem:[%s145] ss:$0 sm:$0xff]
    %v147 = vmul.f32 %v144, %v144
    %148 = vadd.xlane.f32.xlu0 %v147
    %v149 = vpop.xlane.xlu0 %148
    %v150 = vsub.f32 %v146, %v149
    %v151 = vrsqrt.pop %v150
    %v152 = vld [vmem:[#allocation0] sm:$0xff]
    %v153 = vld [vmem:[#allocation1] sm:$0xff]
    %v154 = vmul.f32 %v153, %v144
    %155 = vadd.xlane.f32.xlu0 %v154
    %v156 = vpop.xlane.xlu0 %155
    %v157 = vsub.f32 %v152, %v156
    %v158 = vmul.f32 %v157, %v151
    %vm159 = vcmask 1047555
    %vm160 = vmand %vm142, %vm159
    %v161 = vsel %vm160, %v158, 0.0
    %v162 = vadd.f32 %v153, %v161
    %163 = vst [vmem:[#allocation1] sm:$0xff] %v162
    %s164 = scalar_lea.vmem [#allocation0], 8
    %v165 = vld [vmem:[%s164] sm:$0xff]
    %s166 = scalar_lea.vmem [#allocation1], 8
    %v167 = vld [vmem:[%s166] sm:$0xff]
    %v168 = vmul.f32 %v167, %v144
    %169 = vadd.xlane.f32.xlu0 %v168
    %v170 = vpop.xlane.xlu0 %169
    %v171 = vsub.f32 %v165, %v170
    %v172 = vmul.f32 %v171, %v151
    %v173 = vsel %vm142, %v172, 0.0
    %v174 = vadd.f32 %v167, %v173
    %s175 = scalar_lea.vmem [#allocation1], 8
    %176 = vst [vmem:[%s175] sm:$0xff] %v174
    %vm177 = vcmask 39968
    %s178 = scalar_lea.vmem [#allocation1], 4
    %v179 = vld [vmem:[%s178] ss:$0 sm:$0xff]
    %s180 = scalar_lea.vmem [#allocation0], 4
    %v181 = vld [vmem:[%s180] ss:$0 sm:$0xff]
    %v182 = vmul.f32 %v179, %v179
    %183 = vadd.xlane.f32.xlu0 %v182
    %v184 = vpop.xlane.xlu0 %183
    %v185 = vsub.f32 %v181, %v184
    %v186 = vrsqrt.pop %v185
    %v187 = vld [vmem:[#allocation0] sm:$0xff]
    %v188 = vld [vmem:[#allocation1] sm:$0xff]
    %v189 = vmul.f32 %v188, %v179
    %190 = vadd.xlane.f32.xlu0 %v189
    %v191 = vpop.xlane.xlu0 %190
    %v192 = vsub.f32 %v187, %v191
    %v193 = vmul.f32 %v192, %v186
    %vm194 = vcmask 1047556
    %vm195 = vmand %vm177, %vm194
    %v196 = vsel %vm195, %v193, 0.0
    %v197 = vadd.f32 %v188, %v196
    %198 = vst [vmem:[#allocation1] sm:$0xff] %v197
    %s199 = scalar_lea.vmem [#allocation0], 8
    %v200 = vld [vmem:[%s199] sm:$0xff]
    %s201 = scalar_lea.vmem [#allocation1], 8
    %v202 = vld [vmem:[%s201] sm:$0xff]
    %v203 = vmul.f32 %v202, %v179
    %204 = vadd.xlane.f32.xlu0 %v203
    %v205 = vpop.xlane.xlu0 %204
    %v206 = vsub.f32 %v200, %v205
    %v207 = vmul.f32 %v206, %v186
    %v208 = vsel %vm177, %v207, 0.0
    %v209 = vadd.f32 %v202, %v208
    %s210 = scalar_lea.vmem [#allocation1], 8
    %211 = vst [vmem:[%s210] sm:$0xff] %v209
    %vm212 = vcmask 48168
    %s213 = scalar_lea.vmem [#allocation1], 5
    %v214 = vld [vmem:[%s213] ss:$0 sm:$0xff]
    %s215 = scalar_lea.vmem [#allocation0], 5
    %v216 = vld [vmem:[%s215] ss:$0 sm:$0xff]
    %v217 = vmul.f32 %v214, %v214
    %218 = vadd.xlane.f32.xlu0 %v217
    %v219 = vpop.xlane.xlu0 %218
    %v220 = vsub.f32 %v216, %v219
    %v221 = vrsqrt.pop %v220
    %v222 = vld [vmem:[#allocation0] sm:$0xff]
    %v223 = vld [vmem:[#allocation1] sm:$0xff]
    %v224 = vmul.f32 %v223, %v214
    %225 = vadd.xlane.f32.xlu0 %v224
    %v226 = vpop.xlane.xlu0 %225
    %v227 = vsub.f32 %v222, %v226
    %v228 = vmul.f32 %v227, %v221
    %vm229 = vcmask 1047557
    %vm230 = vmand %vm212, %vm229
    %v231 = vsel %vm230, %v228, 0.0
    %v232 = vadd.f32 %v223, %v231
    %233 = vst [vmem:[#allocation1] sm:$0xff] %v232
    %s234 = scalar_lea.vmem [#allocation0], 8
    %v235 = vld [vmem:[%s234] sm:$0xff]
    %s236 = scalar_lea.vmem [#allocation1], 8
    %v237 = vld [vmem:[%s236] sm:$0xff]
    %v238 = vmul.f32 %v237, %v214
    %239 = vadd.xlane.f32.xlu0 %v238
    %v240 = vpop.xlane.xlu0 %239
    %v241 = vsub.f32 %v235, %v240
    %v242 = vmul.f32 %v241, %v221
    %v243 = vsel %vm212, %v242, 0.0
    %v244 = vadd.f32 %v237, %v243
    %s245 = scalar_lea.vmem [#allocation1], 8
    %246 = vst [vmem:[%s245] sm:$0xff] %v244
    %vm247 = vcmask 56368
    %s248 = scalar_lea.vmem [#allocation1], 6
    %v249 = vld [vmem:[%s248] ss:$0 sm:$0xff]
    %s250 = scalar_lea.vmem [#allocation0], 6
    %v251 = vld [vmem:[%s250] ss:$0 sm:$0xff]
    %v252 = vmul.f32 %v249, %v249
    %253 = vadd.xlane.f32.xlu0 %v252
    %v254 = vpop.xlane.xlu0 %253
    %v255 = vsub.f32 %v251, %v254
    %v256 = vrsqrt.pop %v255
    %v257 = vld [vmem:[#allocation0] sm:$0xff]
    %v258 = vld [vmem:[#allocation1] sm:$0xff]
    %v259 = vmul.f32 %v258, %v249
    %260 = vadd.xlane.f32.xlu0 %v259
    %v261 = vpop.xlane.xlu0 %260
    %v262 = vsub.f32 %v257, %v261
    %v263 = vmul.f32 %v262, %v256
    %vm264 = vcmask 1047558
    %vm265 = vmand %vm247, %vm264
    %v266 = vsel %vm265, %v263, 0.0
    %v267 = vadd.f32 %v258, %v266
    %268 = vst [vmem:[#allocation1] sm:$0xff] %v267
    %s269 = scalar_lea.vmem [#allocation0], 8
    %v270 = vld [vmem:[%s269] sm:$0xff]
    %s271 = scalar_lea.vmem [#allocation1], 8
    %v272 = vld [vmem:[%s271] sm:$0xff]
    %v273 = vmul.f32 %v272, %v249
    %274 = vadd.xlane.f32.xlu0 %v273
    %v275 = vpop.xlane.xlu0 %274
    %v276 = vsub.f32 %v270, %v275
    %v277 = vmul.f32 %v276, %v256
    %v278 = vsel %vm247, %v277, 0.0
    %v279 = vadd.f32 %v272, %v278
    %s280 = scalar_lea.vmem [#allocation1], 8
    %281 = vst [vmem:[%s280] sm:$0xff] %v279
    %vm282 = vcmask 64568
    %s283 = scalar_lea.vmem [#allocation1], 7
    %v284 = vld [vmem:[%s283] ss:$0 sm:$0xff]
    %s285 = scalar_lea.vmem [#allocation0], 7
    %v286 = vld [vmem:[%s285] ss:$0 sm:$0xff]
    %v287 = vmul.f32 %v284, %v284
    %288 = vadd.xlane.f32.xlu0 %v287
    %v289 = vpop.xlane.xlu0 %288
    %v290 = vsub.f32 %v286, %v289
    %v291 = vrsqrt.pop %v290
    %v292 = vld [vmem:[#allocation0] sm:$0xff]
    %v293 = vld [vmem:[#allocation1] sm:$0xff]
    %v294 = vmul.f32 %v293, %v284
    %295 = vadd.xlane.f32.xlu0 %v294
    %v296 = vpop.xlane.xlu0 %295
    %v297 = vsub.f32 %v292, %v296
    %v298 = vmul.f32 %v297, %v291
    %vm299 = vcmask 1047559
    %vm300 = vmand %vm282, %vm299
    %v301 = vsel %vm300, %v298, 0.0
    %v302 = vadd.f32 %v293, %v301
    %303 = vst [vmem:[#allocation1] sm:$0xff] %v302
    %s304 = scalar_lea.vmem [#allocation0], 8
    %v305 = vld [vmem:[%s304] sm:$0xff]
    %s306 = scalar_lea.vmem [#allocation1], 8
    %v307 = vld [vmem:[%s306] sm:$0xff]
    %v308 = vmul.f32 %v307, %v284
    %309 = vadd.xlane.f32.xlu0 %v308
    %v310 = vpop.xlane.xlu0 %309
    %v311 = vsub.f32 %v305, %v310
    %v312 = vmul.f32 %v311, %v291
    %v313 = vsel %vm282, %v312, 0.0
    %v314 = vadd.f32 %v307, %v313
    %s315 = scalar_lea.vmem [#allocation1], 8
    %316 = vst [vmem:[%s315] sm:$0xff] %v314
    %vm317 = vcmask 72768
    %s318 = scalar_lea.vmem [#allocation1], 8
    %v319 = vld [vmem:[%s318] ss:$0 sm:$0xff]
    %s320 = scalar_lea.vmem [#allocation0], 8
    %v321 = vld [vmem:[%s320] ss:$0 sm:$0xff]
    %v322 = vmul.f32 %v319, %v319
    %323 = vadd.xlane.f32.xlu0 %v322
    %v324 = vpop.xlane.xlu0 %323
    %v325 = vsub.f32 %v321, %v324
    %v326 = vrsqrt.pop %v325
    %s327 = scalar_lea.vmem [#allocation0], 8
    %v328 = vld [vmem:[%s327] sm:$0xff]
    %s329 = scalar_lea.vmem [#allocation1], 8
    %v330 = vld [vmem:[%s329] sm:$0xff]
    %v331 = vmul.f32 %v330, %v319
    %332 = vadd.xlane.f32.xlu0 %v331
    %v333 = vpop.xlane.xlu0 %332
    %v334 = vsub.f32 %v328, %v333
    %v335 = vmul.f32 %v334, %v326
    %v336 = vsel %vm317, %v335, 0.0
    %v337 = vadd.f32 %v330, %v336
    %s338 = scalar_lea.vmem [#allocation1], 8
    %339 = vst [vmem:[%s338] sm:$0xff] %v337
    %vm340 = vcmask 80968
    %s341 = scalar_lea.vmem [#allocation1], 9
    %v342 = vld [vmem:[%s341] ss:$0 sm:$0xff]
    %s343 = scalar_lea.vmem [#allocation0], 9
    %v344 = vld [vmem:[%s343] ss:$0 sm:$0xff]
    %v345 = vmul.f32 %v342, %v342
    %346 = vadd.xlane.f32.xlu0 %v345
    %v347 = vpop.xlane.xlu0 %346
    %v348 = vsub.f32 %v344, %v347
    %v349 = vrsqrt.pop %v348
    %s350 = scalar_lea.vmem [#allocation0], 8
    %v351 = vld [vmem:[%s350] sm:$0xff]
    %s352 = scalar_lea.vmem [#allocation1], 8
    %v353 = vld [vmem:[%s352] sm:$0xff]
    %v354 = vmul.f32 %v353, %v342
    %355 = vadd.xlane.f32.xlu0 %v354
    %v356 = vpop.xlane.xlu0 %355
    %v357 = vsub.f32 %v351, %v356
    %v358 = vmul.f32 %v357, %v349
    %vm359 = vcmask 1047553
    %vm360 = vmand %vm340, %vm359
    %v361 = vsel %vm360, %v358, 0.0
    %v362 = vadd.f32 %v353, %v361
    %s363 = scalar_lea.vmem [#allocation1], 8
    %364 = vst [vmem:[%s363] sm:$0xff] %v362
    %vm365 = vcmask 89168
    %s366 = scalar_lea.vmem [#allocation1], 10
    %v367 = vld [vmem:[%s366] ss:$0 sm:$0xff]
    %s368 = scalar_lea.vmem [#allocation0], 10
    %v369 = vld [vmem:[%s368] ss:$0 sm:$0xff]
    %v370 = vmul.f32 %v367, %v367
    %371 = vadd.xlane.f32.xlu0 %v370
    %v372 = vpop.xlane.xlu0 %371
    %v373 = vsub.f32 %v369, %v372
    %v374 = vrsqrt.pop %v373
    %s375 = scalar_lea.vmem [#allocation0], 8
    %v376 = vld [vmem:[%s375] sm:$0xff]
    %s377 = scalar_lea.vmem [#allocation1], 8
    %v378 = vld [vmem:[%s377] sm:$0xff]
    %v379 = vmul.f32 %v378, %v367
    %380 = vadd.xlane.f32.xlu0 %v379
    %v381 = vpop.xlane.xlu0 %380
    %v382 = vsub.f32 %v376, %v381
    %v383 = vmul.f32 %v382, %v374
    %vm384 = vcmask 1047554
    %vm385 = vmand %vm365, %vm384
    %v386 = vsel %vm385, %v383, 0.0
    %v387 = vadd.f32 %v378, %v386
    %s388 = scalar_lea.vmem [#allocation1], 8
    %389 = vst [vmem:[%s388] sm:$0xff] %v387
    %vm390 = vcmask 97368
    %s391 = scalar_lea.vmem [#allocation1], 11
    %v392 = vld [vmem:[%s391] ss:$0 sm:$0xff]
    %s393 = scalar_lea.vmem [#allocation0], 11
    %v394 = vld [vmem:[%s393] ss:$0 sm:$0xff]
    %v395 = vmul.f32 %v392, %v392
    %396 = vadd.xlane.f32.xlu0 %v395
    %v397 = vpop.xlane.xlu0 %396
    %v398 = vsub.f32 %v394, %v397
    %v399 = vrsqrt.pop %v398
    %s400 = scalar_lea.vmem [#allocation0], 8
    %v401 = vld [vmem:[%s400] sm:$0xff]
    %s402 = scalar_lea.vmem [#allocation1], 8
    %v403 = vld [vmem:[%s402] sm:$0xff]
    %v404 = vmul.f32 %v403, %v392
    %405 = vadd.xlane.f32.xlu0 %v404
    %v406 = vpop.xlane.xlu0 %405
    %v407 = vsub.f32 %v401, %v406
    %v408 = vmul.f32 %v407, %v399
    %vm409 = vcmask 1047555
    %vm410 = vmand %vm390, %vm409
    %v411 = vsel %vm410, %v408, 0.0
    %v412 = vadd.f32 %v403, %v411
    %s413 = scalar_lea.vmem [#allocation1], 8
    %414 = vst [vmem:[%s413] sm:$0xff] %v412
    %vm415 = vcmask 105568
    %s416 = scalar_lea.vmem [#allocation1], 12
    %v417 = vld [vmem:[%s416] ss:$0 sm:$0xff]
    %s418 = scalar_lea.vmem [#allocation0], 12
    %v419 = vld [vmem:[%s418] ss:$0 sm:$0xff]
    %v420 = vmul.f32 %v417, %v417
    %421 = vadd.xlane.f32.xlu0 %v420
    %v422 = vpop.xlane.xlu0 %421
    %v423 = vsub.f32 %v419, %v422
    %v424 = vrsqrt.pop %v423
    %s425 = scalar_lea.vmem [#allocation0], 8
    %v426 = vld [vmem:[%s425] sm:$0xff]
    %s427 = scalar_lea.vmem [#allocation1], 8
    %v428 = vld [vmem:[%s427] sm:$0xff]
    %v429 = vmul.f32 %v428, %v417
    %430 = vadd.xlane.f32.xlu0 %v429
    %v431 = vpop.xlane.xlu0 %430
    %v432 = vsub.f32 %v426, %v431
    %v433 = vmul.f32 %v432, %v424
    %vm434 = vcmask 1047556
    %vm435 = vmand %vm415, %vm434
    %v436 = vsel %vm435, %v433, 0.0
    %v437 = vadd.f32 %v428, %v436
    %s438 = scalar_lea.vmem [#allocation1], 8
    %439 = vst [vmem:[%s438] sm:$0xff] %v437
    %vm440 = vcmask 113768
    %s441 = scalar_lea.vmem [#allocation1], 13
    %v442 = vld [vmem:[%s441] ss:$0 sm:$0xff]
    %s443 = scalar_lea.vmem [#allocation0], 13
    %v444 = vld [vmem:[%s443] ss:$0 sm:$0xff]
    %v445 = vmul.f32 %v442, %v442
    %446 = vadd.xlane.f32.xlu0 %v445
    %v447 = vpop.xlane.xlu0 %446
    %v448 = vsub.f32 %v444, %v447
    %v449 = vrsqrt.pop %v448
    %s450 = scalar_lea.vmem [#allocation0], 8
    %v451 = vld [vmem:[%s450] sm:$0xff]
    %s452 = scalar_lea.vmem [#allocation1], 8
    %v453 = vld [vmem:[%s452] sm:$0xff]
    %v454 = vmul.f32 %v453, %v442
    %455 = vadd.xlane.f32.xlu0 %v454
    %v456 = vpop.xlane.xlu0 %455
    %v457 = vsub.f32 %v451, %v456
    %v458 = vmul.f32 %v457, %v449
    %vm459 = vcmask 1047557
    %vm460 = vmand %vm440, %vm459
    %v461 = vsel %vm460, %v458, 0.0
    %v462 = vadd.f32 %v453, %v461
    %s463 = scalar_lea.vmem [#allocation1], 8
    %464 = vst [vmem:[%s463] sm:$0xff] %v462
    %vm465 = vcmask 121968
    %s466 = scalar_lea.vmem [#allocation1], 14
    %v467 = vld [vmem:[%s466] ss:$0 sm:$0xff]
    %s468 = scalar_lea.vmem [#allocation0], 14
    %v469 = vld [vmem:[%s468] ss:$0 sm:$0xff]
    %v470 = vmul.f32 %v467, %v467
    %471 = vadd.xlane.f32.xlu0 %v470
    %v472 = vpop.xlane.xlu0 %471
    %v473 = vsub.f32 %v469, %v472
    %v474 = vrsqrt.pop %v473
    %s475 = scalar_lea.vmem [#allocation0], 8
    %v476 = vld [vmem:[%s475] sm:$0xff]
    %s477 = scalar_lea.vmem [#allocation1], 8
    %v478 = vld [vmem:[%s477] sm:$0xff]
    %v479 = vmul.f32 %v478, %v467
    %480 = vadd.xlane.f32.xlu0 %v479
    %v481 = vpop.xlane.xlu0 %480
    %v482 = vsub.f32 %v476, %v481
    %v483 = vmul.f32 %v482, %v474
    %vm484 = vcmask 1047558
    %vm485 = vmand %vm465, %vm484
    %v486 = vsel %vm485, %v483, 0.0
    %v487 = vadd.f32 %v478, %v486
    %s488 = scalar_lea.vmem [#allocation1], 8
    %489 = vst [vmem:[%s488] sm:$0xff] %v487
    %vm490 = vcmask 130168
    %s491 = scalar_lea.vmem [#allocation1], 15
    %v492 = vld [vmem:[%s491] ss:$0 sm:$0xff]
    %s493 = scalar_lea.vmem [#allocation0], 15
    %v494 = vld [vmem:[%s493] ss:$0 sm:$0xff]
    %v495 = vmul.f32 %v492, %v492
    %496 = vadd.xlane.f32.xlu0 %v495
    %v497 = vpop.xlane.xlu0 %496
    %v498 = vsub.f32 %v494, %v497
    %v499 = vrsqrt.pop %v498
    %s500 = scalar_lea.vmem [#allocation0], 8
    %v501 = vld [vmem:[%s500] sm:$0xff]
    %s502 = scalar_lea.vmem [#allocation1], 8
    %v503 = vld [vmem:[%s502] sm:$0xff]
    %v504 = vmul.f32 %v503, %v492
    %505 = vadd.xlane.f32.xlu0 %v504
    %v506 = vpop.xlane.xlu0 %505
    %v507 = vsub.f32 %v501, %v506
    %v508 = vmul.f32 %v507, %v499
    %vm509 = vcmask 1047559
    %vm510 = vmand %vm490, %vm509
    %v511 = vsel %vm510, %v508, 0.0
    %v512 = vadd.f32 %v503, %v511
    %s513 = scalar_lea.vmem [#allocation1], 8
    %514 = vst [vmem:[%s513] sm:$0xff] %v512
    // Predicated region
    $region36: #{custom-call.186} parent=1 // pred_check
      _
    $region37: #{custom-call.186} parent=1 // pred_check_branch
      %516 = sbr.rel (0) target = $region39
    $region38: #{custom-call.186} parent=1 // pred_region
      // Predicated region
      $region40: #{custom-call.186} parent=38 // pred_check
        _
      $region41: #{custom-call.186} parent=38 // pred_check_branch
        %518 = sbr.rel (0) target = $region43
      $region42: #{custom-call.186} parent=38 // pred_region
        // Predicated region
        $region55: #{custom-call.186} parent=42 // pred_check
          _
        $region56: #{custom-call.186} parent=42 // pred_check_branch
          %535 = sbr.rel (0) target = $region58
        $region57: #{custom-call.186} parent=42 // pred_region
          loop: start=0, step=1, limit=1
          $region59: #{custom-call.186} parent=57 // loop_pre_header
            _
          $region60: #{custom-call.186} parent=57 // loop_header
            %s537 = sphi 0, %s541
            %p538 = scmp.ge.s32.totalorder %s537, 1
            %s542 = sphi [#allocation1], [#allocation1]
            %s543 = sphi %s1, %s1
          $region61: #{custom-call.186} parent=57 // loop_header_branch
            %540 = sbr.rel (%p538) target = $region65
          $region62: #{custom-call.186} parent=57 // loop_body
            %v544 = vld [vmem:[%s542] sm:$0xff]
            %545 = vst [vmem:[%s543] sm:$0xff] %v544
            %v546 = vld [vmem:[%s542 + $0x8] sm:$0xff]
            %547 = vst [vmem:[%s543 + $0x8] sm:$0xff] %v546
          $region63: #{custom-call.186} parent=57 // loop_footer
            %s541 = sadd.s32 1, %s537
          $region64: #{custom-call.186} parent=57 // loop_footer_branch
            %536 = sbr.rel target = $region60
          $region65: #{custom-call.186} parent=57 // loop_exit
            _
        $region58: #{custom-call.186} parent=42 // pred_fallthru
          _
        // Predicated region
        $region66: #{custom-call.186} parent=42 // pred_check
          _
        $region67: #{custom-call.186} parent=42 // pred_check_branch
          %549 = sbr.rel target = $region69
        $region68: #{custom-call.186} parent=42 // pred_region
          _
        $region69: #{custom-call.186} parent=42 // pred_fallthru
          _
      $region43: #{custom-call.186} parent=38 // pred_fallthru
        _
      // Predicated region
      $region44: #{custom-call.186} parent=38 // pred_check
        _
      $region45: #{custom-call.186} parent=38 // pred_check_branch
        %520 = sbr.rel target = $region47
      $region46: #{custom-call.186} parent=38 // pred_region
        loop: start=0, step=1, limit=1
        $region48: #{custom-call.186} parent=46 // loop_pre_header
          _
        $region49: #{custom-call.186} parent=46 // loop_header
          %s523 = sphi 0, %s527
          %p524 = scmp.ge.s32.totalorder %s523, 1
          %s528 = sphi [#allocation1], [#allocation1]
          %s529 = sphi %s1, %s1
        $region50: #{custom-call.186} parent=46 // loop_header_branch
          %526 = sbr.rel (%p524) target = $region54
        $region51: #{custom-call.186} parent=46 // loop_body
          %v530 = vld [vmem:[%s528] sm:$0xff]
          %531 = vst [vmem:[%s529] sm:$0xff] %v530
          %v532 = vld [vmem:[%s528 + $0x8] sm:$0xff]
          %533 = vst [vmem:[%s529 + $0x8] sm:$0xff] %v532
        $region52: #{custom-call.186} parent=46 // loop_footer
          %s527 = sadd.s32 1, %s523
        $region53: #{custom-call.186} parent=46 // loop_footer_branch
          %522 = sbr.rel target = $region49
        $region54: #{custom-call.186} parent=46 // loop_exit
          _
      $region47: #{custom-call.186} parent=38 // pred_fallthru
        _
    $region39: #{custom-call.186} parent=1 // pred_fallthru
      _
    %550 = vnop

// kernel: custom-call.187
$region0: #{custom-call.187}
  %s0 = inlined_call_operand.vmem [shape: f32[1,16,16], index: 0, kind: input, shape index: {}]
  %s1 = inlined_call_operand.vmem [shape: f32[1,16,16], index: 1, kind: output, shape index: {}]
  $region1: #{custom-call.187} parent=0
    #allocation0 [shape = 'u8[8192]{0}', space=vmem, size = 0x2000, scoped, tag = 'operand span for operand 0']
    #allocation1 [shape = 'u8[8192]{0}', space=vmem, size = 0x2000, scoped, tag = 'operand span for operand 1']
    #allocation2 [shape = 'f32[16,16]{1,0}', space=vmem, size = 0x2000, scoped, tag = 'rescaled input a']
    // Predicated region
    $region2: #{custom-call.187} parent=1 // pred_check
      _
    $region3: #{custom-call.187} parent=1 // pred_check_branch
      %3 = sbr.rel (0) target = $region5
    $region4: #{custom-call.187} parent=1 // pred_region
      // Predicated region
      $region6: #{custom-call.187} parent=4 // pred_check
        _
      $region7: #{custom-call.187} parent=4 // pred_check_branch
        %5 = sbr.rel (0) target = $region9
      $region8: #{custom-call.187} parent=4 // pred_region
        // Predicated region
        $region21: #{custom-call.187} parent=8 // pred_check
          _
        $region22: #{custom-call.187} parent=8 // pred_check_branch
          %22 = sbr.rel (0) target = $region24
        $region23: #{custom-call.187} parent=8 // pred_region
          loop: start=0, step=1, limit=1
          $region25: #{custom-call.187} parent=23 // loop_pre_header
            _
          $region26: #{custom-call.187} parent=23 // loop_header
            %s24 = sphi 0, %s28
            %p25 = scmp.ge.s32.totalorder %s24, 1
            %s29 = sphi %s0, %s0
            %s30 = sphi [#allocation0], [#allocation0]
          $region27: #{custom-call.187} parent=23 // loop_header_branch
            %27 = sbr.rel (%p25) target = $region31
          $region28: #{custom-call.187} parent=23 // loop_body
            %v31 = vld [vmem:[%s29] sm:$0xff]
            %32 = vst [vmem:[%s30] sm:$0xff] %v31
            %v33 = vld [vmem:[%s29 + $0x8] sm:$0xff]
            %34 = vst [vmem:[%s30 + $0x8] sm:$0xff] %v33
          $region29: #{custom-call.187} parent=23 // loop_footer
            %s28 = sadd.s32 1, %s24
          $region30: #{custom-call.187} parent=23 // loop_footer_branch
            %23 = sbr.rel target = $region26
          $region31: #{custom-call.187} parent=23 // loop_exit
            _
        $region24: #{custom-call.187} parent=8 // pred_fallthru
          _
        // Predicated region
        $region32: #{custom-call.187} parent=8 // pred_check
          _
        $region33: #{custom-call.187} parent=8 // pred_check_branch
          %36 = sbr.rel target = $region35
        $region34: #{custom-call.187} parent=8 // pred_region
          _
        $region35: #{custom-call.187} parent=8 // pred_fallthru
          _
      $region9: #{custom-call.187} parent=4 // pred_fallthru
        _
      // Predicated region
      $region10: #{custom-call.187} parent=4 // pred_check
        _
      $region11: #{custom-call.187} parent=4 // pred_check_branch
        %7 = sbr.rel target = $region13
      $region12: #{custom-call.187} parent=4 // pred_region
        loop: start=0, step=1, limit=1
        $region14: #{custom-call.187} parent=12 // loop_pre_header
          _
        $region15: #{custom-call.187} parent=12 // loop_header
          %s10 = sphi 0, %s14
          %p11 = scmp.ge.s32.totalorder %s10, 1
          %s15 = sphi %s0, %s0
          %s16 = sphi [#allocation0], [#allocation0]
        $region16: #{custom-call.187} parent=12 // loop_header_branch
          %13 = sbr.rel (%p11) target = $region20
        $region17: #{custom-call.187} parent=12 // loop_body
          %v17 = vld [vmem:[%s15] sm:$0xff]
          %18 = vst [vmem:[%s16] sm:$0xff] %v17
          %v19 = vld [vmem:[%s15 + $0x8] sm:$0xff]
          %20 = vst [vmem:[%s16 + $0x8] sm:$0xff] %v19
        $region18: #{custom-call.187} parent=12 // loop_footer
          %s14 = sadd.s32 1, %s10
        $region19: #{custom-call.187} parent=12 // loop_footer_branch
          %9 = sbr.rel target = $region15
        $region20: #{custom-call.187} parent=12 // loop_exit
          _
      $region13: #{custom-call.187} parent=4 // pred_fallthru
        _
    $region5: #{custom-call.187} parent=1 // pred_fallthru
      _
    %37 = vnop
    %v38 = vlaneseq
    %v39 = vand.u32 %v38, 127
    %vm40 = vcmp.lt.s32.totalorder %v39, 16
    %v41 = vlaneseq
    %v42 = vshrl.u32 %v41, 7
    %vm44 = vcmp.eq.s32.totalorder %v42, %v39
    %v45 = vld [vmem:[#allocation0] sm:$0xff]
    %v46 = vsel %vm44, %v45, 0.0
    %47 = vadd.xlane.f32.xlu0 %v46
    %v48 = vpop.xlane.xlu0 %47
    %vm49 = vcmp.ge.s32.totalorder %v42, %v39
    %vm50 = vmand %vm49, %vm40
    %v51 = vsel %vm50, %v45, 0.0
    %v52 = vrcp.pop %v48
    %v53 = vmul.f32 %v51, %v52
    %54 = vst [vmem:[#allocation2] sm:$0xff] %v53
    %s55 = scalar_lea.vmem [#allocation0], 8
    %s56 = scalar_lea.vmem [#allocation2], 8
    %v57 = vlaneseq
    %v58 = vshrl.u32 %v57, 7
    %v59 = vadd.s32 %v58, 8
    %vm60 = vcmp.eq.s32.totalorder %v59, %v39
    %v61 = vld [vmem:[%s55] sm:$0xff]
    %v62 = vsel %vm60, %v61, 0.0
    %63 = vadd.xlane.f32.xlu0 %v62
    %v64 = vpop.xlane.xlu0 %63
    %vm65 = vcmp.ge.s32.totalorder %v59, %v39
    %vm66 = vmand %vm65, %vm40
    %v67 = vsel %vm66, %v61, 0.0
    %v68 = vrcp.pop %v64
    %v69 = vmul.f32 %v67, %v68
    %70 = vst [vmem:[%s56] sm:$0xff] %v69
    %v71 = vlaneseq
    %v72 = vand.u32 %v71, 127
    %v73 = vlaneseq
    %v74 = vshrl.u32 %v73, 7
    %vm76 = vcmp.eq.s32.totalorder %v72, %v74
    %v77 = vlaneseq
    %v78 = vand.u32 %v77, 127
    %vm79 = vcmp.eq.s32.totalorder %v78, 0
    %v80 = vsel %vm79, 1.0, -1.0
    %v81 = vsel %vm76, %v80, 0.0
    %v82 = vlaneseq
    %v83 = vand.u32 %v82, 127
    %v84 = vlaneseq
    %v85 = vshrl.u32 %v84, 7
    %v86 = vadd.s32 %v85, 8
    %vm87 = vcmp.eq.s32.totalorder %v83, %v86
    %v88 = vsel %vm87, -1.0, 0.0
    %s89 = scalar_lea.vmem [#allocation2], 1
    %v90 = vld [vmem:[%s89] ss:$0 sm:$0xff]
    %v91 = vxor.u32 %v90, 2147483648
    %v92 = vlaneseq
    %v93 = vand.u32 %v92, 127
    %vm94 = vcmp.eq.s32.totalorder %v93, 1
    %v95 = vmul.f32 %v91, %v81
    %96 = vadd.xlane.f32.xlu0 %v95
    %v97 = vpop.xlane.xlu0 %96
    %v98 = vsel %vm94, %v97, %v81
    %s99 = scalar_lea.vmem [#allocation2], 2
    %v100 = vld [vmem:[%s99] ss:$0 sm:$0xff]
    %v101 = vxor.u32 %v100, 2147483648
    %v102 = vlaneseq
    %v103 = vand.u32 %v102, 127
    %vm104 = vcmp.eq.s32.totalorder %v103, 2
    %v105 = vmul.f32 %v101, %v98
    %106 = vadd.xlane.f32.xlu0 %v105
    %v107 = vpop.xlane.xlu0 %106
    %v108 = vsel %vm104, %v107, %v98
    %s109 = scalar_lea.vmem [#allocation2], 3
    %v110 = vld [vmem:[%s109] ss:$0 sm:$0xff]
    %v111 = vxor.u32 %v110, 2147483648
    %v112 = vlaneseq
    %v113 = vand.u32 %v112, 127
    %vm114 = vcmp.eq.s32.totalorder %v113, 3
    %v115 = vmul.f32 %v111, %v108
    %116 = vadd.xlane.f32.xlu0 %v115
    %v117 = vpop.xlane.xlu0 %116
    %v118 = vsel %vm114, %v117, %v108
    %s119 = scalar_lea.vmem [#allocation2], 4
    %v120 = vld [vmem:[%s119] ss:$0 sm:$0xff]
    %v121 = vxor.u32 %v120, 2147483648
    %v122 = vlaneseq
    %v123 = vand.u32 %v122, 127
    %vm124 = vcmp.eq.s32.totalorder %v123, 4
    %v125 = vmul.f32 %v121, %v118
    %126 = vadd.xlane.f32.xlu0 %v125
    %v127 = vpop.xlane.xlu0 %126
    %v128 = vsel %vm124, %v127, %v118
    %s129 = scalar_lea.vmem [#allocation2], 5
    %v130 = vld [vmem:[%s129] ss:$0 sm:$0xff]
    %v131 = vxor.u32 %v130, 2147483648
    %v132 = vlaneseq
    %v133 = vand.u32 %v132, 127
    %vm134 = vcmp.eq.s32.totalorder %v133, 5
    %v135 = vmul.f32 %v131, %v128
    %136 = vadd.xlane.f32.xlu0 %v135
    %v137 = vpop.xlane.xlu0 %136
    %v138 = vsel %vm134, %v137, %v128
    %s139 = scalar_lea.vmem [#allocation2], 6
    %v140 = vld [vmem:[%s139] ss:$0 sm:$0xff]
    %v141 = vxor.u32 %v140, 2147483648
    %v142 = vlaneseq
    %v143 = vand.u32 %v142, 127
    %vm144 = vcmp.eq.s32.totalorder %v143, 6
    %v145 = vmul.f32 %v141, %v138
    %146 = vadd.xlane.f32.xlu0 %v145
    %v147 = vpop.xlane.xlu0 %146
    %v148 = vsel %vm144, %v147, %v138
    %s149 = scalar_lea.vmem [#allocation2], 7
    %v150 = vld [vmem:[%s149] ss:$0 sm:$0xff]
    %v151 = vxor.u32 %v150, 2147483648
    %v152 = vlaneseq
    %v153 = vand.u32 %v152, 127
    %vm154 = vcmp.eq.s32.totalorder %v153, 7
    %v155 = vmul.f32 %v151, %v148
    %156 = vadd.xlane.f32.xlu0 %v155
    %v157 = vpop.xlane.xlu0 %156
    %v158 = vsel %vm154, %v157, %v148
    %s159 = scalar_lea.vmem [#allocation2], 8
    %v160 = vld [vmem:[%s159] ss:$0 sm:$0xff]
    %v161 = vxor.u32 %v160, 2147483648
    %v162 = vlaneseq
    %v163 = vand.u32 %v162, 127
    %vm164 = vcmp.eq.s32.totalorder %v163, 8
    %v165 = vmul.f32 %v161, %v158
    %166 = vadd.xlane.f32.xlu0 %v165
    %v167 = vpop.xlane.xlu0 %166
    %v168 = vsel %vm164, %v167, %v158
    %v169 = vmul.f32 %v161, %v88
    %170 = vadd.xlane.f32.xlu0 %v169
    %v171 = vpop.xlane.xlu0 %170
    %v172 = vsel %vm164, %v171, %v88
    %s173 = scalar_lea.vmem [#allocation2], 9
    %v174 = vld [vmem:[%s173] ss:$0 sm:$0xff]
    %v175 = vxor.u32 %v174, 2147483648
    %v176 = vlaneseq
    %v177 = vand.u32 %v176, 127
    %vm178 = vcmp.eq.s32.totalorder %v177, 9
    %v179 = vmul.f32 %v175, %v168
    %180 = vadd.xlane.f32.xlu0 %v179
    %v181 = vpop.xlane.xlu0 %180
    %v182 = vsel %vm178, %v181, %v168
    %v183 = vmul.f32 %v175, %v172
    %184 = vadd.xlane.f32.xlu0 %v183
    %v185 = vpop.xlane.xlu0 %184
    %v186 = vsel %vm178, %v185, %v172
    %s187 = scalar_lea.vmem [#allocation2], 10
    %v188 = vld [vmem:[%s187] ss:$0 sm:$0xff]
    %v189 = vxor.u32 %v188, 2147483648
    %v190 = vlaneseq
    %v191 = vand.u32 %v190, 127
    %vm192 = vcmp.eq.s32.totalorder %v191, 10
    %v193 = vmul.f32 %v189, %v182
    %194 = vadd.xlane.f32.xlu0 %v193
    %v195 = vpop.xlane.xlu0 %194
    %v196 = vsel %vm192, %v195, %v182
    %v197 = vmul.f32 %v189, %v186
    %198 = vadd.xlane.f32.xlu0 %v197
    %v199 = vpop.xlane.xlu0 %198
    %v200 = vsel %vm192, %v199, %v186
    %s201 = scalar_lea.vmem [#allocation2], 11
    %v202 = vld [vmem:[%s201] ss:$0 sm:$0xff]
    %v203 = vxor.u32 %v202, 2147483648
    %v204 = vlaneseq
    %v205 = vand.u32 %v204, 127
    %vm206 = vcmp.eq.s32.totalorder %v205, 11
    %v207 = vmul.f32 %v203, %v196
    %208 = vadd.xlane.f32.xlu0 %v207
    %v209 = vpop.xlane.xlu0 %208
    %v210 = vsel %vm206, %v209, %v196
    %v211 = vmul.f32 %v203, %v200
    %212 = vadd.xlane.f32.xlu0 %v211
    %v213 = vpop.xlane.xlu0 %212
    %v214 = vsel %vm206, %v213, %v200
    %s215 = scalar_lea.vmem [#allocation2], 12
    %v216 = vld [vmem:[%s215] ss:$0 sm:$0xff]
    %v217 = vxor.u32 %v216, 2147483648
    %v218 = vlaneseq
    %v219 = vand.u32 %v218, 127
    %vm220 = vcmp.eq.s32.totalorder %v219, 12
    %v221 = vmul.f32 %v217, %v210
    %222 = vadd.xlane.f32.xlu0 %v221
    %v223 = vpop.xlane.xlu0 %222
    %v224 = vsel %vm220, %v223, %v210
    %v225 = vmul.f32 %v217, %v214
    %226 = vadd.xlane.f32.xlu0 %v225
    %v227 = vpop.xlane.xlu0 %226
    %v228 = vsel %vm220, %v227, %v214
    %s229 = scalar_lea.vmem [#allocation2], 13
    %v230 = vld [vmem:[%s229] ss:$0 sm:$0xff]
    %v231 = vxor.u32 %v230, 2147483648
    %v232 = vlaneseq
    %v233 = vand.u32 %v232, 127
    %vm234 = vcmp.eq.s32.totalorder %v233, 13
    %v235 = vmul.f32 %v231, %v224
    %236 = vadd.xlane.f32.xlu0 %v235
    %v237 = vpop.xlane.xlu0 %236
    %v238 = vsel %vm234, %v237, %v224
    %v239 = vmul.f32 %v231, %v228
    %240 = vadd.xlane.f32.xlu0 %v239
    %v241 = vpop.xlane.xlu0 %240
    %v242 = vsel %vm234, %v241, %v228
    %s243 = scalar_lea.vmem [#allocation2], 14
    %v244 = vld [vmem:[%s243] ss:$0 sm:$0xff]
    %v245 = vxor.u32 %v244, 2147483648
    %v246 = vlaneseq
    %v247 = vand.u32 %v246, 127
    %vm248 = vcmp.eq.s32.totalorder %v247, 14
    %v249 = vmul.f32 %v245, %v238
    %250 = vadd.xlane.f32.xlu0 %v249
    %v251 = vpop.xlane.xlu0 %250
    %v252 = vsel %vm248, %v251, %v238
    %v253 = vmul.f32 %v245, %v242
    %254 = vadd.xlane.f32.xlu0 %v253
    %v255 = vpop.xlane.xlu0 %254
    %v256 = vsel %vm248, %v255, %v242
    %s257 = scalar_lea.vmem [#allocation2], 15
    %v258 = vld [vmem:[%s257] ss:$0 sm:$0xff]
    %v259 = vxor.u32 %v258, 2147483648
    %v260 = vlaneseq
    %v261 = vand.u32 %v260, 127
    %vm262 = vcmp.eq.s32.totalorder %v261, 15
    %v263 = vmul.f32 %v259, %v252
    %264 = vadd.xlane.f32.xlu0 %v263
    %v265 = vpop.xlane.xlu0 %264
    %v266 = vsel %vm262, %v265, %v252
    %v267 = vmul.f32 %v259, %v256
    %268 = vadd.xlane.f32.xlu0 %v267
    %v269 = vpop.xlane.xlu0 %268
    %v270 = vsel %vm262, %v269, %v256
    %v271 = vrcp.pop %v48
    %v272 = vmul.f32 %v266, %v271
    %vm273 = vweird.f32 %v48
    %v274 = vsel %vm273, %v266, %v272
    %275 = vst [vmem:[#allocation1] sm:$0xff] %v274
    %v276 = vrcp.pop %v64
    %v277 = vmul.f32 %v270, %v276
    %vm278 = vweird.f32 %v64
    %v279 = vsel %vm278, %v270, %v277
    %s280 = scalar_lea.vmem [#allocation1], 8
    %281 = vst [vmem:[%s280] sm:$0xff] %v279
    // Predicated region
    $region36: #{custom-call.187} parent=1 // pred_check
      _
    $region37: #{custom-call.187} parent=1 // pred_check_branch
      %283 = sbr.rel (0) target = $region39
    $region38: #{custom-call.187} parent=1 // pred_region
      // Predicated region
      $region40: #{custom-call.187} parent=38 // pred_check
        _
      $region41: #{custom-call.187} parent=38 // pred_check_branch
        %285 = sbr.rel (0) target = $region43
      $region42: #{custom-call.187} parent=38 // pred_region
        // Predicated region
        $region55: #{custom-call.187} parent=42 // pred_check
          _
        $region56: #{custom-call.187} parent=42 // pred_check_branch
          %302 = sbr.rel (0) target = $region58
        $region57: #{custom-call.187} parent=42 // pred_region
          loop: start=0, step=1, limit=1
          $region59: #{custom-call.187} parent=57 // loop_pre_header
            _
          $region60: #{custom-call.187} parent=57 // loop_header
            %s304 = sphi 0, %s308
            %p305 = scmp.ge.s32.totalorder %s304, 1
            %s309 = sphi [#allocation1], [#allocation1]
            %s310 = sphi %s1, %s1
          $region61: #{custom-call.187} parent=57 // loop_header_branch
            %307 = sbr.rel (%p305) target = $region65
          $region62: #{custom-call.187} parent=57 // loop_body
            %v311 = vld [vmem:[%s309] sm:$0xff]
            %312 = vst [vmem:[%s310] sm:$0xff] %v311
            %v313 = vld [vmem:[%s309 + $0x8] sm:$0xff]
            %314 = vst [vmem:[%s310 + $0x8] sm:$0xff] %v313
          $region63: #{custom-call.187} parent=57 // loop_footer
            %s308 = sadd.s32 1, %s304
          $region64: #{custom-call.187} parent=57 // loop_footer_branch
            %303 = sbr.rel target = $region60
          $region65: #{custom-call.187} parent=57 // loop_exit
            _
        $region58: #{custom-call.187} parent=42 // pred_fallthru
          _
        // Predicated region
        $region66: #{custom-call.187} parent=42 // pred_check
          _
        $region67: #{custom-call.187} parent=42 // pred_check_branch
          %316 = sbr.rel target = $region69
        $region68: #{custom-call.187} parent=42 // pred_region
          _
        $region69: #{custom-call.187} parent=42 // pred_fallthru
          _
      $region43: #{custom-call.187} parent=38 // pred_fallthru
        _
      // Predicated region
      $region44: #{custom-call.187} parent=38 // pred_check
        _
      $region45: #{custom-call.187} parent=38 // pred_check_branch
        %287 = sbr.rel target = $region47
      $region46: #{custom-call.187} parent=38 // pred_region
        loop: start=0, step=1, limit=1
        $region48: #{custom-call.187} parent=46 // loop_pre_header
          _
        $region49: #{custom-call.187} parent=46 // loop_header
          %s290 = sphi 0, %s294
          %p291 = scmp.ge.s32.totalorder %s290, 1
          %s295 = sphi [#allocation1], [#allocation1]
          %s296 = sphi %s1, %s1
        $region50: #{custom-call.187} parent=46 // loop_header_branch
          %293 = sbr.rel (%p291) target = $region54
        $region51: #{custom-call.187} parent=46 // loop_body
          %v297 = vld [vmem:[%s295] sm:$0xff]
          %298 = vst [vmem:[%s296] sm:$0xff] %v297
          %v299 = vld [vmem:[%s295 + $0x8] sm:$0xff]
          %300 = vst [vmem:[%s296 + $0x8] sm:$0xff] %v299
        $region52: #{custom-call.187} parent=46 // loop_footer
          %s294 = sadd.s32 1, %s290
        $region53: #{custom-call.187} parent=46 // loop_footer_branch
          %289 = sbr.rel target = $region49
        $region54: #{custom-call.187} parent=46 // loop_exit
          _
      $region47: #{custom-call.187} parent=38 // pred_fallthru
        _
    $region39: #{custom-call.187} parent=1 // pred_fallthru
      _
    %317 = vnop

// kernel: reverse.9
$region0: #{reverse.9}
  %s0 = inlined_call_operand.vmem [shape: f32[16], index: 0, kind: input, shape index: {}]
  %s1 = inlined_call_operand.vmem [shape: f32[16], index: 1, kind: output, shape index: {}]
  %v2 = vlaneseq
  %v3 = vsub.s32 15, %v2
  %4 = vset.pattern.permute.xlu0 %v3
  $region1: #{reverse.9} parent=0
    #allocation0 [shape = 'u8[8192]{0}', space=vmem, size = 0x2000, scoped, tag = 'operand span for operand 0']
    #allocation1 [shape = 'u8[1024]{0}', space=vmem, size = 0x400, scoped, tag = 'packed  for operand 0']
    #allocation2 [shape = 'u8[4096]{0}', space=vmem, size = 0x1000, scoped, tag = 'operand span for operand 1']
    #allocation3 [shape = 'u8[512]{0}', space=vmem, size = 0x400, scoped, tag = 'packed  for operand 1']
    %s5 = scalar_lea.vmem [#allocation1], 1
    // Predicated region
    $region2: #{reverse.9} parent=1 // pred_check
      _
    $region3: #{reverse.9} parent=1 // pred_check_branch
      %7 = sbr.rel (0) target = $region5
    $region4: #{reverse.9} parent=1 // pred_region
      // Predicated region
      $region6: #{reverse.9} parent=4 // pred_check
        _
      $region7: #{reverse.9} parent=4 // pred_check_branch
        %9 = sbr.rel target = $region9
      $region8: #{reverse.9} parent=4 // pred_region
        // Predicated region
        $region21: #{reverse.9} parent=8 // pred_check
          _
        $region22: #{reverse.9} parent=8 // pred_check_branch
          %24 = sbr.rel (0) target = $region24
        $region23: #{reverse.9} parent=8 // pred_region
          loop: start=0, step=1, limit=1
          $region25: #{reverse.9} parent=23 // loop_pre_header
            _
          $region26: #{reverse.9} parent=23 // loop_header
            %s27 = sphi 0, %s31
            %p28 = scmp.ge.s32.totalorder %s27, 1
            %s32 = sphi %s0, %s0
            %s33 = sphi %s5, %s5
          $region27: #{reverse.9} parent=23 // loop_header_branch
            %30 = sbr.rel (%p28) target = $region31
          $region28: #{reverse.9} parent=23 // loop_body
            %v34 = vld [vmem:[%s32] sm:$0x1]
            %35 = vst [vmem:[%s33] sm:$0x1] %v34
          $region29: #{reverse.9} parent=23 // loop_footer
            %s31 = sadd.s32 1, %s27
          $region30: #{reverse.9} parent=23 // loop_footer_branch
            %26 = sbr.rel target = $region26
          $region31: #{reverse.9} parent=23 // loop_exit
            _
        $region24: #{reverse.9} parent=8 // pred_fallthru
          _
      $region9: #{reverse.9} parent=4 // pred_fallthru
        _
      // Predicated region
      $region10: #{reverse.9} parent=4 // pred_check
        _
      $region11: #{reverse.9} parent=4 // pred_check_branch
        %11 = sbr.rel (0) target = $region13
      $region12: #{reverse.9} parent=4 // pred_region
        loop: start=0, step=1, limit=1
        $region14: #{reverse.9} parent=12 // loop_pre_header
          _
        $region15: #{reverse.9} parent=12 // loop_header
          %s14 = sphi 0, %s18
          %p15 = scmp.ge.s32.totalorder %s14, 1
          %s19 = sphi %s0, %s0
          %s20 = sphi %s5, %s5
        $region16: #{reverse.9} parent=12 // loop_header_branch
          %17 = sbr.rel (%p15) target = $region20
        $region17: #{reverse.9} parent=12 // loop_body
          %v21 = vld [vmem:[%s19] sm:$0x1]
          %22 = vst [vmem:[%s20] sm:$0x1] %v21
        $region18: #{reverse.9} parent=12 // loop_footer
          %s18 = sadd.s32 1, %s14
        $region19: #{reverse.9} parent=12 // loop_footer_branch
          %13 = sbr.rel target = $region15
        $region20: #{reverse.9} parent=12 // loop_exit
          _
      $region13: #{reverse.9} parent=4 // pred_fallthru
        _
    $region5: #{reverse.9} parent=1 // pred_fallthru
      _
    %36 = vnop
    %s38 = sshllo.u32 0, 1
    %s39 = scalar_lea.vmem [#allocation1], 1
    %v40 = vld [vmem:[%s39] sm:%s38]
    %s41 = scalar_lea.vmem [#allocation0], 8
    %42 = vst [vmem:[%s41] sm:%s38] %v40
    %v43 = vld [vmem:[#allocation1] sm:%s38]
    %44 = vst [vmem:[#allocation0] sm:%s38] %v43
    %s45 = scalar_lea.vmem [#allocation0], 7
    %v46 = vld [vmem:[%s45] ss:$-1 sm:$0xff]
    %v47 = vrot.slane %v46, 7
    %48 = vperm.xlu0 %4, %v47
    %v49 = vpop.permute.xlu0 %48
    %50 = vst [vmem:[#allocation2] sm:$0xff] %v49
    %s51 = scalar_lea.vmem [#allocation0], 8
    %s52 = scalar_lea.vmem %s51, 7 [#allocation0]
    %v53 = vld [vmem:[%s52] ss:$-1 sm:$0xff]
    %v54 = vrot.slane %v53, 7
    %55 = vperm.xlu0 %4, %v54
    %v56 = vpop.permute.xlu0 %55
    %v57 = vlaneseq
    %v58 = vshrl.u32 %v57, 7
    %vm59 = vcmp.lt.s32.totalorder %v58, 1
    %60 = vst.msk [vmem:[#allocation2] sm:$0xff] %vm59, %v56
    %s62 = sshllo.u32 0, 1
    %v64 = vld [vmem:[#allocation2] sm:%s62]
    %s65 = sshllo.u32 0, 1
    %66 = vst [vmem:[#allocation3] sm:%s65] %v64
    // Predicated region
    $region32: #{reverse.9} parent=1 // pred_check
      _
    $region33: #{reverse.9} parent=1 // pred_check_branch
      %68 = sbr.rel (0) target = $region35
    $region34: #{reverse.9} parent=1 // pred_region
      // Predicated region
      $region36: #{reverse.9} parent=34 // pred_check
        _
      $region37: #{reverse.9} parent=34 // pred_check_branch
        %70 = sbr.rel target = $region39
      $region38: #{reverse.9} parent=34 // pred_region
        // Predicated region
        $region51: #{reverse.9} parent=38 // pred_check
          _
        $region52: #{reverse.9} parent=38 // pred_check_branch
          %85 = sbr.rel (0) target = $region54
        $region53: #{reverse.9} parent=38 // pred_region
          loop: start=0, step=1, limit=1
          $region55: #{reverse.9} parent=53 // loop_pre_header
            _
          $region56: #{reverse.9} parent=53 // loop_header
            %s88 = sphi 0, %s92
            %p89 = scmp.ge.s32.totalorder %s88, 1
            %s93 = sphi [#allocation3], [#allocation3]
            %s94 = sphi %s1, %s1
          $region57: #{reverse.9} parent=53 // loop_header_branch
            %91 = sbr.rel (%p89) target = $region61
          $region58: #{reverse.9} parent=53 // loop_body
            %v95 = vld [vmem:[%s93] sm:$0x1]
            %96 = vst [vmem:[%s94] sm:$0x1] %v95
          $region59: #{reverse.9} parent=53 // loop_footer
            %s92 = sadd.s32 1, %s88
          $region60: #{reverse.9} parent=53 // loop_footer_branch
            %87 = sbr.rel target = $region56
          $region61: #{reverse.9} parent=53 // loop_exit
            _
        $region54: #{reverse.9} parent=38 // pred_fallthru
          _
      $region39: #{reverse.9} parent=34 // pred_fallthru
        _
      // Predicated region
      $region40: #{reverse.9} parent=34 // pred_check
        _
      $region41: #{reverse.9} parent=34 // pred_check_branch
        %72 = sbr.rel (0) target = $region43
      $region42: #{reverse.9} parent=34 // pred_region
        loop: start=0, step=1, limit=1
        $region44: #{reverse.9} parent=42 // loop_pre_header
          _
        $region45: #{reverse.9} parent=42 // loop_header
          %s75 = sphi 0, %s79
          %p76 = scmp.ge.s32.totalorder %s75, 1
          %s80 = sphi [#allocation3], [#allocation3]
          %s81 = sphi %s1, %s1
        $region46: #{reverse.9} parent=42 // loop_header_branch
          %78 = sbr.rel (%p76) target = $region50
        $region47: #{reverse.9} parent=42 // loop_body
          %v82 = vld [vmem:[%s80] sm:$0x1]
          %83 = vst [vmem:[%s81] sm:$0x1] %v82
        $region48: #{reverse.9} parent=42 // loop_footer
          %s79 = sadd.s32 1, %s75
        $region49: #{reverse.9} parent=42 // loop_footer_branch
          %74 = sbr.rel target = $region45
        $region50: #{reverse.9} parent=42 // loop_exit
          _
      $region43: #{reverse.9} parent=34 // pred_fallthru
        _
    $region35: #{reverse.9} parent=1 // pred_fallthru
      _
    %97 = vnop

// kernel: custom-call.115
$region0: #{custom-call.115}
  %s0 = inlined_call_operand.vmem [shape: f32[8,8], index: 0, kind: input, shape index: {}]
  %s1 = inlined_call_operand.vmem [shape: f32[8,8], index: 1, kind: input, shape index: {}]
  %s2 = inlined_call_operand.vmem [shape: f32[8,8], index: 2, kind: input, shape index: {}]
  %s3 = inlined_call_operand.vmem [shape: f32[8,8], index: 3, kind: input, shape index: {}]
  %s4 = inlined_call_operand.vmem [shape: f32[8], index: 4, kind: output, shape index: {0}]
  %s5 = inlined_call_operand.vmem [shape: f32[8], index: 5, kind: output, shape index: {1}]
  %s6 = inlined_call_operand.hbm [shape: f32[8,8], index: 6, kind: output, shape index: {2}]
  %s7 = inlined_call_operand.hbm [shape: f32[8,8], index: 7, kind: output, shape index: {3}]
  %s8 = inlined_call_operand.hbm [shape: f32[8,8], index: 8, kind: output, shape index: {4}]
  %s9 = inlined_call_operand.hbm [shape: f32[8,8], index: 9, kind: output, shape index: {5}]
  %10 = xla_tuple %s4, %s5, %s6, %s7, %s8, %s9
  $region1: #{custom-call.115} parent=0
    #allocation0 [shape = 'u8[4096]{0}', space=vmem, size = 0x1000, scoped, tag = 'operand span for operand 0']
    #allocation1 [shape = 'u8[4096]{0}', space=vmem, size = 0x1000, scoped, tag = 'operand span for operand 1']
    #allocation2 [shape = 'u8[4096]{0}', space=vmem, size = 0x1000, scoped, tag = 'operand span for operand 2']
    #allocation3 [shape = 'u8[4096]{0}', space=vmem, size = 0x1000, scoped, tag = 'operand span for operand 3']
    #allocation4 [shape = 'u8[4096]{0}', space=vmem, size = 0x1000, scoped, tag = 'operand span for operand 4']
    #allocation5 [shape = 'u8[512]{0}', space=vmem, size = 0x400, scoped, tag = 'packed  for operand 4']
    #allocation6 [shape = 'u8[4096]{0}', space=vmem, size = 0x1000, scoped, tag = 'operand span for operand 5']
    #allocation7 [shape = 'u8[512]{0}', space=vmem, size = 0x400, scoped, tag = 'packed  for operand 5']
    #allocation8 [shape = 'u8[4096]{0}', space=vmem, size = 0x1000, scoped, tag = 'operand span for operand 6']
    #allocation9 [shape = 's32[1]{0}', space=sflag, size = 0x4, scoped, tag = 'scoped memory for custom-call.115']
    #allocation10 [shape = 'u8[4096]{0}', space=vmem, size = 0x1000, scoped, tag = 'operand span for operand 7']
    #allocation11 [shape = 's32[1]{0}', space=sflag, size = 0x4, scoped, tag = 'scoped memory for custom-call.115']
    #allocation12 [shape = 'u8[4096]{0}', space=vmem, size = 0x1000, scoped, tag = 'operand span for operand 8']
    #allocation13 [shape = 'u8[4096]{0}', space=vmem, size = 0x1000, scoped, tag = 'operand span for operand 9']
    #allocation14 [shape = 's32[1]{0}', space=sflag, size = 0x4, scoped, tag = 'scoped memory for custom-call.115']
    #allocation15 [shape = 'f32[8,8]{1,0}', space=vmem, size = 0x1000, scoped, tag = 'a top-left matrix']
    #allocation16 [shape = 'f32[8,8]{1,0}', space=vmem, size = 0x1000, scoped, tag = 'a top-right matrix']
    #allocation17 [shape = 'f32[8,8]{1,0}', space=vmem, size = 0x1000, scoped, tag = 'a bottom-left matrix']
    #allocation18 [shape = 'f32[8,8]{1,0}', space=vmem, size = 0x1000, scoped, tag = 'a bottom-right matrix']
    %11 = vsyncpa [#allocation9], 0
    %12 = vsyncpa [#allocation11], 0
    %13 = vsyncpa [#allocation14], 0
    %p15 = scmp.gt.s32.totalorder 8, 0
    // Predicated region
    $region2: #{custom-call.115} parent=1 // pred_check
      %p16 = pneg %p15
    $region3: #{custom-call.115} parent=1 // pred_check_branch
      %18 = sbr.rel (%p16) target = $region5
    $region4: #{custom-call.115} parent=1 // pred_region
      %s19 = sshra.s32 8, 3
      %p20 = scmp.gt.s32.totalorder %s19, 0
      // Predicated region
      $region6: #{custom-call.115} parent=4 // pred_check
        %p21 = pneg %p20
      $region7: #{custom-call.115} parent=4 // pred_check_branch
        %23 = sbr.rel (%p21) target = $region9
      $region8: #{custom-call.115} parent=4 // pred_region
        %s24 = ssub.s32 %s19, 1
        %s25 = smul.u32 %s24, 128
        %s26 = sshra.s32 %s25, 4
        %s27 = scalar_lea.vmem %s0, %s26
        %v28 = vld [vmem:[%s0] sm:$0xff]
        // While loop
        $region10: #{custom-call.115} parent=8 // loop_pre_header
          _
        $region11: #{custom-call.115} parent=8 // loop_header
          %s29 = sphi %s0, %s51
          %s30 = sphi [#allocation0], %s52
          %v31 = vphi %v28, %v53
          %s32 = ssub.s32 %s27, 64
          %p33 = scmp.gt.s32.totalorder %s29, %s32
        $region12: #{custom-call.115} parent=8 // loop_header_branch
          %35 = sbr.rel (%p33) target = $region16
        $region13: #{custom-call.115} parent=8 // loop_body
          %36 = vst [vmem:[%s30] sm:$0xff] %v31
          %v37 = vld [vmem:[%s29 + $0x8] sm:$0xff]
          %38 = vst [vmem:[%s30 + $0x8] sm:$0xff] %v37
          %v39 = vld [vmem:[%s29 + $0x10] sm:$0xff]
          %40 = vst [vmem:[%s30 + $0x10] sm:$0xff] %v39
          %v41 = vld [vmem:[%s29 + $0x18] sm:$0xff]
          %42 = vst [vmem:[%s30 + $0x18] sm:$0xff] %v41
          %v43 = vld [vmem:[%s29 + $0x20] sm:$0xff]
          %44 = vst [vmem:[%s30 + $0x20] sm:$0xff] %v43
          %v45 = vld [vmem:[%s29 + $0x28] sm:$0xff]
          %46 = vst [vmem:[%s30 + $0x28] sm:$0xff] %v45
          %v47 = vld [vmem:[%s29 + $0x30] sm:$0xff]
          %48 = vst [vmem:[%s30 + $0x30] sm:$0xff] %v47
          %v49 = vld [vmem:[%s29 + $0x38] sm:$0xff]
          %50 = vst [vmem:[%s30 + $0x38] sm:$0xff] %v49
        $region14: #{custom-call.115} parent=8 // loop_footer
          %s51 = scalar_lea.vmem %s29, 64
          %s52 = scalar_lea.vmem %s30, 64
          %v53 = vld [vmem:[%s29 + $0x40] sm:$0xff]
        $region15: #{custom-call.115} parent=8 // loop_footer_branch
          %54 = sbr.rel target = $region11
        $region16: #{custom-call.115} parent=8 // loop_exit
          _
        // While loop
        $region17: #{custom-call.115} parent=8 // loop_pre_header
          _
        $region18: #{custom-call.115} parent=8 // loop_header
          %s55 = sphi %s29, %s63
          %s56 = sphi %s30, %s64
          %v57 = vphi %v31, %v57
          %p58 = scmp.gt.s32.totalorder %s55, %s27
        $region19: #{custom-call.115} parent=8 // loop_header_branch
          %60 = sbr.rel (%p58) target = $region23
        $region20: #{custom-call.115} parent=8 // loop_body
          %v61 = vld [vmem:[%s55] sm:$0xff]
          %62 = vst [vmem:[%s56] sm:$0xff] %v61
        $region21: #{custom-call.115} parent=8 // loop_footer
          %s63 = scalar_lea.vmem %s55, 8
          %s64 = scalar_lea.vmem %s56, 8
        $region22: #{custom-call.115} parent=8 // loop_footer_branch
          %65 = sbr.rel target = $region18
        $region23: #{custom-call.115} parent=8 // loop_exit
          _
      $region9: #{custom-call.115} parent=4 // pred_fallthru
        _
      %s66 = sand.u32 8, 7
      %s67 = sshllo.u32 0, %s66
      %s68 = smul.u32 %s19, 128
      %s69 = sshra.s32 %s68, 4
      %s70 = scalar_lea.vmem [#allocation0], %s69
      %s71 = smul.u32 %s19, 128
      %s72 = sshra.s32 %s71, 4
      %s73 = scalar_lea.vmem %s0, %s72
      %v74 = vld [vmem:[%s73] sm:%s67]
      %75 = vst [vmem:[%s70] sm:%s67] %v74
    $region5: #{custom-call.115} parent=1 // pred_fallthru
      _
    %p77 = scmp.gt.s32.totalorder 8, 0
    // Predicated region
    $region24: #{custom-call.115} parent=1 // pred_check
      %p78 = pneg %p77
    $region25: #{custom-call.115} parent=1 // pred_check_branch
      %80 = sbr.rel (%p78) target = $region27
    $region26: #{custom-call.115} parent=1 // pred_region
      %s81 = sshra.s32 8, 3
      %p82 = scmp.gt.s32.totalorder %s81, 0
      // Predicated region
      $region28: #{custom-call.115} parent=26 // pred_check
        %p83 = pneg %p82
      $region29: #{custom-call.115} parent=26 // pred_check_branch
        %85 = sbr.rel (%p83) target = $region31
      $region30: #{custom-call.115} parent=26 // pred_region
        %s86 = ssub.s32 %s81, 1
        %s87 = smul.u32 %s86, 128
        %s88 = sshra.s32 %s87, 4
        %s89 = scalar_lea.vmem %s1, %s88
        %v90 = vld [vmem:[%s1] sm:$0xff]
        // While loop
        $region32: #{custom-call.115} parent=30 // loop_pre_header
          _
        $region33: #{custom-call.115} parent=30 // loop_header
          %s91 = sphi %s1, %s113
          %s92 = sphi [#allocation1], %s114
          %v93 = vphi %v90, %v115
          %s94 = ssub.s32 %s89, 64
          %p95 = scmp.gt.s32.totalorder %s91, %s94
        $region34: #{custom-call.115} parent=30 // loop_header_branch
          %97 = sbr.rel (%p95) target = $region38
        $region35: #{custom-call.115} parent=30 // loop_body
          %98 = vst [vmem:[%s92] sm:$0xff] %v93
          %v99 = vld [vmem:[%s91 + $0x8] sm:$0xff]
          %100 = vst [vmem:[%s92 + $0x8] sm:$0xff] %v99
          %v101 = vld [vmem:[%s91 + $0x10] sm:$0xff]
          %102 = vst [vmem:[%s92 + $0x10] sm:$0xff] %v101
          %v103 = vld [vmem:[%s91 + $0x18] sm:$0xff]
          %104 = vst [vmem:[%s92 + $0x18] sm:$0xff] %v103
          %v105 = vld [vmem:[%s91 + $0x20] sm:$0xff]
          %106 = vst [vmem:[%s92 + $0x20] sm:$0xff] %v105
          %v107 = vld [vmem:[%s91 + $0x28] sm:$0xff]
          %108 = vst [vmem:[%s92 + $0x28] sm:$0xff] %v107
          %v109 = vld [vmem:[%s91 + $0x30] sm:$0xff]
          %110 = vst [vmem:[%s92 + $0x30] sm:$0xff] %v109
          %v111 = vld [vmem:[%s91 + $0x38] sm:$0xff]
          %112 = vst [vmem:[%s92 + $0x38] sm:$0xff] %v111
        $region36: #{custom-call.115} parent=30 // loop_footer
          %s113 = scalar_lea.vmem %s91, 64
          %s114 = scalar_lea.vmem %s92, 64
          %v115 = vld [vmem:[%s91 + $0x40] sm:$0xff]
        $region37: #{custom-call.115} parent=30 // loop_footer_branch
          %116 = sbr.rel target = $region33
        $region38: #{custom-call.115} parent=30 // loop_exit
          _
        // While loop
        $region39: #{custom-call.115} parent=30 // loop_pre_header
          _
        $region40: #{custom-call.115} parent=30 // loop_header
          %s117 = sphi %s91, %s125
          %s118 = sphi %s92, %s126
          %v119 = vphi %v93, %v119
          %p120 = scmp.gt.s32.totalorder %s117, %s89
        $region41: #{custom-call.115} parent=30 // loop_header_branch
          %122 = sbr.rel (%p120) target = $region45
        $region42: #{custom-call.115} parent=30 // loop_body
          %v123 = vld [vmem:[%s117] sm:$0xff]
          %124 = vst [vmem:[%s118] sm:$0xff] %v123
        $region43: #{custom-call.115} parent=30 // loop_footer
          %s125 = scalar_lea.vmem %s117, 8
          %s126 = scalar_lea.vmem %s118, 8
        $region44: #{custom-call.115} parent=30 // loop_footer_branch
          %127 = sbr.rel target = $region40
        $region45: #{custom-call.115} parent=30 // loop_exit
          _
      $region31: #{custom-call.115} parent=26 // pred_fallthru
        _
      %s128 = sand.u32 8, 7
      %s129 = sshllo.u32 0, %s128
      %s130 = smul.u32 %s81, 128
      %s131 = sshra.s32 %s130, 4
      %s132 = scalar_lea.vmem [#allocation1], %s131
      %s133 = smul.u32 %s81, 128
      %s134 = sshra.s32 %s133, 4
      %s135 = scalar_lea.vmem %s1, %s134
      %v136 = vld [vmem:[%s135] sm:%s129]
      %137 = vst [vmem:[%s132] sm:%s129] %v136
    $region27: #{custom-call.115} parent=1 // pred_fallthru
      _
    %p139 = scmp.gt.s32.totalorder 8, 0
    // Predicated region
    $region46: #{custom-call.115} parent=1 // pred_check
      %p140 = pneg %p139
    $region47: #{custom-call.115} parent=1 // pred_check_branch
      %142 = sbr.rel (%p140) target = $region49
    $region48: #{custom-call.115} parent=1 // pred_region
      %s143 = sshra.s32 8, 3
      %p144 = scmp.gt.s32.totalorder %s143, 0
      // Predicated region
      $region50: #{custom-call.115} parent=48 // pred_check
        %p145 = pneg %p144
      $region51: #{custom-call.115} parent=48 // pred_check_branch
        %147 = sbr.rel (%p145) target = $region53
      $region52: #{custom-call.115} parent=48 // pred_region
        %s148 = ssub.s32 %s143, 1
        %s149 = smul.u32 %s148, 128
        %s150 = sshra.s32 %s149, 4
        %s151 = scalar_lea.vmem %s2, %s150
        %v152 = vld [vmem:[%s2] sm:$0xff]
        // While loop
        $region54: #{custom-call.115} parent=52 // loop_pre_header
          _
        $region55: #{custom-call.115} parent=52 // loop_header
          %s153 = sphi %s2, %s175
          %s154 = sphi [#allocation2], %s176
          %v155 = vphi %v152, %v177
          %s156 = ssub.s32 %s151, 64
          %p157 = scmp.gt.s32.totalorder %s153, %s156
        $region56: #{custom-call.115} parent=52 // loop_header_branch
          %159 = sbr.rel (%p157) target = $region60
        $region57: #{custom-call.115} parent=52 // loop_body
          %160 = vst [vmem:[%s154] sm:$0xff] %v155
          %v161 = vld [vmem:[%s153 + $0x8] sm:$0xff]
          %162 = vst [vmem:[%s154 + $0x8] sm:$0xff] %v161
          %v163 = vld [vmem:[%s153 + $0x10] sm:$0xff]
          %164 = vst [vmem:[%s154 + $0x10] sm:$0xff] %v163
          %v165 = vld [vmem:[%s153 + $0x18] sm:$0xff]
          %166 = vst [vmem:[%s154 + $0x18] sm:$0xff] %v165
          %v167 = vld [vmem:[%s153 + $0x20] sm:$0xff]
          %168 = vst [vmem:[%s154 + $0x20] sm:$0xff] %v167
          %v169 = vld [vmem:[%s153 + $0x28] sm:$0xff]
          %170 = vst [vmem:[%s154 + $0x28] sm:$0xff] %v169
          %v171 = vld [vmem:[%s153 + $0x30] sm:$0xff]
          %172 = vst [vmem:[%s154 + $0x30] sm:$0xff] %v171
          %v173 = vld [vmem:[%s153 + $0x38] sm:$0xff]
          %174 = vst [vmem:[%s154 + $0x38] sm:$0xff] %v173
        $region58: #{custom-call.115} parent=52 // loop_footer
          %s175 = scalar_lea.vmem %s153, 64
          %s176 = scalar_lea.vmem %s154, 64
          %v177 = vld [vmem:[%s153 + $0x40] sm:$0xff]
        $region59: #{custom-call.115} parent=52 // loop_footer_branch
          %178 = sbr.rel target = $region55
        $region60: #{custom-call.115} parent=52 // loop_exit
          _
        // While loop
        $region61: #{custom-call.115} parent=52 // loop_pre_header
          _
        $region62: #{custom-call.115} parent=52 // loop_header
          %s179 = sphi %s153, %s187
          %s180 = sphi %s154, %s188
          %v181 = vphi %v155, %v181
          %p182 = scmp.gt.s32.totalorder %s179, %s151
        $region63: #{custom-call.115} parent=52 // loop_header_branch
          %184 = sbr.rel (%p182) target = $region67
        $region64: #{custom-call.115} parent=52 // loop_body
          %v185 = vld [vmem:[%s179] sm:$0xff]
          %186 = vst [vmem:[%s180] sm:$0xff] %v185
        $region65: #{custom-call.115} parent=52 // loop_footer
          %s187 = scalar_lea.vmem %s179, 8
          %s188 = scalar_lea.vmem %s180, 8
        $region66: #{custom-call.115} parent=52 // loop_footer_branch
          %189 = sbr.rel target = $region62
        $region67: #{custom-call.115} parent=52 // loop_exit
          _
      $region53: #{custom-call.115} parent=48 // pred_fallthru
        _
      %s190 = sand.u32 8, 7
      %s191 = sshllo.u32 0, %s190
      %s192 = smul.u32 %s143, 128
      %s193 = sshra.s32 %s192, 4
      %s194 = scalar_lea.vmem [#allocation2], %s193
      %s195 = smul.u32 %s143, 128
      %s196 = sshra.s32 %s195, 4
      %s197 = scalar_lea.vmem %s2, %s196
      %v198 = vld [vmem:[%s197] sm:%s191]
      %199 = vst [vmem:[%s194] sm:%s191] %v198
    $region49: #{custom-call.115} parent=1 // pred_fallthru
      _
    %p201 = scmp.gt.s32.totalorder 8, 0
    // Predicated region
    $region68: #{custom-call.115} parent=1 // pred_check
      %p202 = pneg %p201
    $region69: #{custom-call.115} parent=1 // pred_check_branch
      %204 = sbr.rel (%p202) target = $region71
    $region70: #{custom-call.115} parent=1 // pred_region
      %s205 = sshra.s32 8, 3
      %p206 = scmp.gt.s32.totalorder %s205, 0
      // Predicated region
      $region72: #{custom-call.115} parent=70 // pred_check
        %p207 = pneg %p206
      $region73: #{custom-call.115} parent=70 // pred_check_branch
        %209 = sbr.rel (%p207) target = $region75
      $region74: #{custom-call.115} parent=70 // pred_region
        %s210 = ssub.s32 %s205, 1
        %s211 = smul.u32 %s210, 128
        %s212 = sshra.s32 %s211, 4
        %s213 = scalar_lea.vmem %s3, %s212
        %v214 = vld [vmem:[%s3] sm:$0xff]
        // While loop
        $region76: #{custom-call.115} parent=74 // loop_pre_header
          _
        $region77: #{custom-call.115} parent=74 // loop_header
          %s215 = sphi %s3, %s237
          %s216 = sphi [#allocation3], %s238
          %v217 = vphi %v214, %v239
          %s218 = ssub.s32 %s213, 64
          %p219 = scmp.gt.s32.totalorder %s215, %s218
        $region78: #{custom-call.115} parent=74 // loop_header_branch
          %221 = sbr.rel (%p219) target = $region82
        $region79: #{custom-call.115} parent=74 // loop_body
          %222 = vst [vmem:[%s216] sm:$0xff] %v217
          %v223 = vld [vmem:[%s215 + $0x8] sm:$0xff]
          %224 = vst [vmem:[%s216 + $0x8] sm:$0xff] %v223
          %v225 = vld [vmem:[%s215 + $0x10] sm:$0xff]
          %226 = vst [vmem:[%s216 + $0x10] sm:$0xff] %v225
          %v227 = vld [vmem:[%s215 + $0x18] sm:$0xff]
          %228 = vst [vmem:[%s216 + $0x18] sm:$0xff] %v227
          %v229 = vld [vmem:[%s215 + $0x20] sm:$0xff]
          %230 = vst [vmem:[%s216 + $0x20] sm:$0xff] %v229
          %v231 = vld [vmem:[%s215 + $0x28] sm:$0xff]
          %232 = vst [vmem:[%s216 + $0x28] sm:$0xff] %v231
          %v233 = vld [vmem:[%s215 + $0x30] sm:$0xff]
          %234 = vst [vmem:[%s216 + $0x30] sm:$0xff] %v233
          %v235 = vld [vmem:[%s215 + $0x38] sm:$0xff]
          %236 = vst [vmem:[%s216 + $0x38] sm:$0xff] %v235
        $region80: #{custom-call.115} parent=74 // loop_footer
          %s237 = scalar_lea.vmem %s215, 64
          %s238 = scalar_lea.vmem %s216, 64
          %v239 = vld [vmem:[%s215 + $0x40] sm:$0xff]
        $region81: #{custom-call.115} parent=74 // loop_footer_branch
          %240 = sbr.rel target = $region77
        $region82: #{custom-call.115} parent=74 // loop_exit
          _
        // While loop
        $region83: #{custom-call.115} parent=74 // loop_pre_header
          _
        $region84: #{custom-call.115} parent=74 // loop_header
          %s241 = sphi %s215, %s249
          %s242 = sphi %s216, %s250
          %v243 = vphi %v217, %v243
          %p244 = scmp.gt.s32.totalorder %s241, %s213
        $region85: #{custom-call.115} parent=74 // loop_header_branch
          %246 = sbr.rel (%p244) target = $region89
        $region86: #{custom-call.115} parent=74 // loop_body
          %v247 = vld [vmem:[%s241] sm:$0xff]
          %248 = vst [vmem:[%s242] sm:$0xff] %v247
        $region87: #{custom-call.115} parent=74 // loop_footer
          %s249 = scalar_lea.vmem %s241, 8
          %s250 = scalar_lea.vmem %s242, 8
        $region88: #{custom-call.115} parent=74 // loop_footer_branch
          %251 = sbr.rel target = $region84
        $region89: #{custom-call.115} parent=74 // loop_exit
          _
      $region75: #{custom-call.115} parent=70 // pred_fallthru
        _
      %s252 = sand.u32 8, 7
      %s253 = sshllo.u32 0, %s252
      %s254 = smul.u32 %s205, 128
      %s255 = sshra.s32 %s254, 4
      %s256 = scalar_lea.vmem [#allocation3], %s255
      %s257 = smul.u32 %s205, 128
      %s258 = sshra.s32 %s257, 4
      %s259 = scalar_lea.vmem %s3, %s258
      %v260 = vld [vmem:[%s259] sm:%s253]
      %261 = vst [vmem:[%s256] sm:%s253] %v260
    $region71: #{custom-call.115} parent=1 // pred_fallthru
      _
    %s262 = smov [#allocation15]
    %v263 = vld [vmem:[#allocation0] sm:$0xff]
    %264 = vst [vmem:[%s262] sm:$0xff] %v263
    %s265 = smov [#allocation16]
    %v266 = vld [vmem:[#allocation1] sm:$0xff]
    %267 = vst [vmem:[%s265] sm:$0xff] %v266
    %s268 = smov [#allocation17]
    %v269 = vld [vmem:[#allocation2] sm:$0xff]
    %270 = vst [vmem:[%s268] sm:$0xff] %v269
    %s271 = smov [#allocation18]
    %v272 = vld [vmem:[#allocation3] sm:$0xff]
    %273 = vst [vmem:[%s271] sm:$0xff] %v272
    %274 = vst [vmem:[#allocation8] sm:$0xff] 0.0
    %275 = vst [vmem:[#allocation10] sm:$0xff] 0.0
    %276 = vst [vmem:[#allocation12] sm:$0xff] 0.0
    %277 = vst [vmem:[#allocation13] sm:$0xff] 0.0
    %s278 = smov [#allocation8]
    %v279 = vlaneseq
    %v280 = vand.u32 %v279, 127
    %v281 = vmov %v280
    %v282 = vlaneseq
    %v283 = vshrl.u32 %v282, 7
    %v284 = vmov %v283
    %v285 = vld [vmem:[%s278] sm:$0xff]
    %vm288 = vcmp.eq.s32.totalorder %v284, %v281
    %v289 = vsel %vm288, 1.0, %v285
    %290 = vst [vmem:[%s278] sm:$0xff] %v289
    %s291 = smov [#allocation13]
    %v292 = vlaneseq
    %v293 = vand.u32 %v292, 127
    %v294 = vmov %v293
    %v295 = vlaneseq
    %v296 = vshrl.u32 %v295, 7
    %v297 = vmov %v296
    %v298 = vld [vmem:[%s291] sm:$0xff]
    %vm301 = vcmp.eq.s32.totalorder %v297, %v294
    %v302 = vsel %vm301, 1.0, %v298
    %303 = vst [vmem:[%s291] sm:$0xff] %v302
    // While loop
    $region90: #{custom-call.115} parent=1 // loop_pre_header
      _
    $region91: #{custom-call.115} parent=1 // loop_header
      %s305 = sphi 0, %s847
      %v306 = vlaneseq
      %v307 = vand.u32 %v306, 127
      %v308 = vmov %v307
      %v309 = vlaneseq
      %v310 = vshrl.u32 %v309, 7
      %v311 = vmov %v310
      %s312 = smov [#allocation15]
      %v313 = vlaneseq
      %v314 = vand.u32 %v313, 127
      %vm315 = vcmp.ge.s32.totalorder %v314, 0
      %vm316 = vcmp.lt.s32.totalorder %v314, 8
      %vm317 = vmand %vm315, %vm316
      %v318 = vld [vmem:[%s312] sm:$0xff]
      %v319 = vsel %vm317, %v318, 0.0
      %v320 = vmul.f32 %v319, %v319
      %vm323 = vcmp.eq.s32.totalorder %v311, %v308
      %v324 = vsel %vm323, 0.0, %v320
      %v325 = vlaneseq
      %v326 = vand.u32 %v325, 127
      %v327 = vmov %v326
      %v328 = vlaneseq
      %v329 = vshrl.u32 %v328, 7
      %v330 = vmov %v329
      %s331 = smov [#allocation16]
      %v332 = vlaneseq
      %v333 = vand.u32 %v332, 127
      %vm334 = vcmp.ge.s32.totalorder %v333, 0
      %vm335 = vcmp.lt.s32.totalorder %v333, 8
      %vm336 = vmand %vm334, %vm335
      %v337 = vld [vmem:[%s331] sm:$0xff]
      %v338 = vsel %vm336, %v337, 0.0
      %v339 = vmul.f32 %v338, %v338
      %v340 = vadd.f32 %v324, %v339
      %v341 = vadd.f32 %v320, %v339
      %v342 = vlaneseq
      %v343 = vand.u32 %v342, 127
      %v344 = vmov %v343
      %v345 = vlaneseq
      %v346 = vshrl.u32 %v345, 7
      %v347 = vmov %v346
      %s348 = smov [#allocation17]
      %v349 = vlaneseq
      %v350 = vand.u32 %v349, 127
      %vm351 = vcmp.ge.s32.totalorder %v350, 0
      %vm352 = vcmp.lt.s32.totalorder %v350, 8
      %vm353 = vmand %vm351, %vm352
      %v354 = vld [vmem:[%s348] sm:$0xff]
      %v355 = vsel %vm353, %v354, 0.0
      %v356 = vmul.f32 %v355, %v355
      %v357 = vadd.f32 %v340, %v356
      %v358 = vadd.f32 %v341, %v356
      %v359 = vlaneseq
      %v360 = vand.u32 %v359, 127
      %v361 = vmov %v360
      %v362 = vlaneseq
      %v363 = vshrl.u32 %v362, 7
      %v364 = vmov %v363
      %s365 = smov [#allocation18]
      %v366 = vlaneseq
      %v367 = vand.u32 %v366, 127
      %vm368 = vcmp.ge.s32.totalorder %v367, 0
      %vm369 = vcmp.lt.s32.totalorder %v367, 8
      %vm370 = vmand %vm368, %vm369
      %v371 = vld [vmem:[%s365] sm:$0xff]
      %v372 = vsel %vm370, %v371, 0.0
      %v373 = vmul.f32 %v372, %v372
      %vm376 = vcmp.eq.s32.totalorder %v364, %v361
      %v377 = vsel %vm376, 0.0, %v373
      %v378 = vadd.f32 %v357, %v377
      %v379 = vadd.f32 %v358, %v373
      %380 = vadd.xlane.f32.xlu0 %v379
      %v381 = vpop.xlane.xlu0 %380
      %v382 = vrot.slane %v381, 4
      %v383 = vadd.f32 %v381, %v382
      %v384 = vrot.slane %v383, 2
      %v385 = vadd.f32 %v383, %v384
      %v386 = vrot.slane %v385, 1
      %v387 = vadd.f32 %v385, %v386
      %388 = vadd.xlane.f32.xlu0 %v378
      %v389 = vpop.xlane.xlu0 %388
      %v390 = vrot.slane %v389, 4
      %v391 = vadd.f32 %v389, %v390
      %v392 = vrot.slane %v391, 2
      %v393 = vadd.f32 %v391, %v392
      %v394 = vrot.slane %v393, 1
      %v395 = vadd.f32 %v393, %v394
      %s396 = vtos %v395
      %s397 = vtos %v387
      %s398 = smul.f32 1e-10, %s397
      %p399 = scmp.le.f32.partialorder %s396, %s398
      %p400 = scmp.ge.s32.totalorder %s305, 15
      %p401 = por %p399, %p400
    $region92: #{custom-call.115} parent=1 // loop_header_branch
      %849 = sbr.rel (%p401) target = $region96
    $region93: #{custom-call.115} parent=1 // loop_body
      loop: start=0, step=1, limit=15
      $region97: #{custom-call.115} parent=93 // loop_pre_header
        _
      $region98: #{custom-call.115} parent=93 // loop_header
        %s403 = sphi 0, %s407
        %p404 = scmp.ge.s32.totalorder %s403, 15
      $region99: #{custom-call.115} parent=93 // loop_header_branch
        %406 = sbr.rel (%p404) target = $region103
      $region100: #{custom-call.115} parent=93 // loop_body
        #allocation19 [shape = 'f32[1024]{0}', space=vmem, size = 0x1000, scoped, tag = 'a_tl_diag vmem']
        #allocation20 [shape = 'f32[1024]{0}', space=vmem, size = 0x1000, scoped, tag = 'a_tr_diag vmem']
        #allocation21 [shape = 'f32[1024]{0}', space=vmem, size = 0x1000, scoped, tag = 'a_br_diag vmem']
        #allocation22 [shape = 'f32[1024]{0}', space=vmem, size = 0x1000, scoped, tag = 'rt1 vmem']
        #allocation23 [shape = 'f32[1024]{0}', space=vmem, size = 0x1000, scoped, tag = 'rt2 vmem']
        #allocation24 [shape = 'f32[1024]{0}', space=vmem, size = 0x1000, scoped, tag = 'c vmem']
        #allocation25 [shape = 'f32[1024]{0}', space=vmem, size = 0x1000, scoped, tag = 's vmem']
        #allocation26 [shape = 'f32[4096]{0}', space=vmem, size = 0x4000, scoped, tag = 'c broadcast']
        #allocation27 [shape = 'f32[4096]{0}', space=vmem, size = 0x4000, scoped, tag = 's broadcast']
        %s408 = smov [#allocation15]
        %s409 = smov [#allocation19]
        %v410 = vlaneseq
        %v411 = vand.u32 %v410, 127
        %v412 = vmov %v411
        %v413 = vlaneseq
        %v414 = vshrl.u32 %v413, 7
        %v415 = vmov %v414
        %v416 = vld [vmem:[%s408] sm:$0xff]
        %vm419 = vcmp.eq.s32.totalorder %v415, %v412
        %v420 = vsel %vm419, %v416, 0.0
        %v421 = vrot.slane %v420, 4
        %v422 = vadd.f32 %v420, %v421
        %v423 = vrot.slane %v422, 2
        %v424 = vadd.f32 %v422, %v423
        %v425 = vrot.slane %v424, 1
        %v426 = vadd.f32 %v424, %v425
        %427 = vst [vmem:[%s409] sm:$0x1] %v426
        %s428 = smov [#allocation16]
        %s429 = smov [#allocation20]
        %v430 = vlaneseq
        %v431 = vand.u32 %v430, 127
        %v432 = vmov %v431
        %v433 = vlaneseq
        %v434 = vshrl.u32 %v433, 7
        %v435 = vmov %v434
        %v436 = vld [vmem:[%s428] sm:$0xff]
        %vm439 = vcmp.eq.s32.totalorder %v435, %v432
        %v440 = vsel %vm439, %v436, 0.0
        %v441 = vrot.slane %v440, 4
        %v442 = vadd.f32 %v440, %v441
        %v443 = vrot.slane %v442, 2
        %v444 = vadd.f32 %v442, %v443
        %v445 = vrot.slane %v444, 1
        %v446 = vadd.f32 %v444, %v445
        %447 = vst [vmem:[%s429] sm:$0x1] %v446
        %s448 = smov [#allocation18]
        %s449 = smov [#allocation21]
        %v450 = vlaneseq
        %v451 = vand.u32 %v450, 127
        %v452 = vmov %v451
        %v453 = vlaneseq
        %v454 = vshrl.u32 %v453, 7
        %v455 = vmov %v454
        %v456 = vld [vmem:[%s448] sm:$0xff]
        %vm459 = vcmp.eq.s32.totalorder %v455, %v452
        %v460 = vsel %vm459, %v456, 0.0
        %v461 = vrot.slane %v460, 4
        %v462 = vadd.f32 %v460, %v461
        %v463 = vrot.slane %v462, 2
        %v464 = vadd.f32 %v462, %v463
        %v465 = vrot.slane %v464, 1
        %v466 = vadd.f32 %v464, %v465
        %467 = vst [vmem:[%s449] sm:$0x1] %v466
        %s468 = smov [#allocation24]
        %s469 = smov [#allocation25]
        %s470 = smov [#allocation19]
        %v471 = vld [vmem:[%s470] sm:$0xff]
        %s472 = smov [#allocation20]
        %v473 = vld [vmem:[%s472] sm:$0xff]
        %s474 = smov [#allocation21]
        %v475 = vld [vmem:[%s474] sm:$0xff]
        %v476 = vsub.f32 %v475, %v471
        %v477 = vmul.f32 2.0, %v473
        %v478 = vrcp.pop %v477
        %v479 = vmul.f32 %v476, %v478
        %vm480 = vcmp.ge.f32.partialorder %v479, 0.0
        %v481 = vmul.f32 %v479, %v479
        %v482 = vadd.f32 1.0, %v481
        %v483 = vrsqrt.pop %v482
        %v484 = vmul.f32 %v482, %v483
        %vm485 = vcmp.eq.f32.partialorder %v482, inf
        %v486 = vsel %vm485, %v482, %v484
        %vm487 = vcmp.eq.f32.partialorder %v482, 0.0
        %v488 = vand.u32 %v482, 2147483648
        %v489 = vsel %vm487, %v488, %v486
        %v490 = vxor.u32 %v489, 2147483648
        %v491 = vsel %vm480, %v489, %v490
        %v492 = vadd.f32 %v479, %v491
        %v493 = vrcp.pop %v492
        %v494 = vand.u32 2147483647, %v471
        %v495 = vand.u32 2147483647, %v473
        %v496 = vand.u32 2147483647, %v475
        %v497 = vmin.f32 %v494, %v496
        %v498 = vmul.f32 1.1920929e-08, %v497
        %vm499 = vcmp.le.f32.partialorder %v495, %v498
        %v500 = vsel %vm499, 0.0, %v493
        %v501 = vmul.f32 %v500, %v500
        %v502 = vadd.f32 1.0, %v501
        %v503 = vrsqrt.pop %v502
        %v504 = vmul.f32 %v500, %v503
        %v505 = vmul.f32 %v500, %v473
        %v506 = vsub.f32 %v471, %v505
        %v507 = vmul.f32 %v500, %v473
        %v508 = vadd.f32 %v475, %v507
        %s509 = smov [#allocation22]
        %510 = vst [vmem:[%s509] sm:$0xff] %v506
        %s511 = smov [#allocation23]
        %512 = vst [vmem:[%s511] sm:$0xff] %v508
        %s513 = smov %s468
        %514 = vst [vmem:[%s513] sm:$0xff] %v503
        %s515 = smov %s469
        %516 = vst [vmem:[%s515] sm:$0xff] %v504
        %s517 = smov [#allocation24]
        %v518 = vld [vmem:[%s517] ss:$0 sm:$0xff]
        %v519 = vlaneseq
        %v520 = vand.u32 %v519, 127
        %v521 = vmov %v520
        %v522 = vlaneseq
        %v523 = vshrl.u32 %v522, 7
        %v524 = vmov %v523
        %vm526 = vcmp.eq.s32.totalorder %v524, %v521
        %v527 = vsel %vm526, %v518, 0.0
        %528 = vadd.xlane.f32.xlu0 %v527
        %v529 = vpop.xlane.xlu0 %528
        %s530 = smov [#allocation26]
        %531 = vst [vmem:[%s530] sm:$0xff] %v529
        %s532 = smov [#allocation25]
        %v533 = vld [vmem:[%s532] ss:$0 sm:$0xff]
        %v534 = vlaneseq
        %v535 = vand.u32 %v534, 127
        %v536 = vmov %v535
        %v537 = vlaneseq
        %v538 = vshrl.u32 %v537, 7
        %v539 = vmov %v538
        %vm541 = vcmp.eq.s32.totalorder %v539, %v536
        %v542 = vsel %vm541, %v533, 0.0
        %543 = vadd.xlane.f32.xlu0 %v542
        %v544 = vpop.xlane.xlu0 %543
        %s545 = smov [#allocation27]
        %546 = vst [vmem:[%s545] sm:$0xff] %v544
        %s547 = smov [#allocation26]
        %v548 = vld [vmem:[%s547] sm:$0xff]
        %s549 = smov [#allocation27]
        %v550 = vld [vmem:[%s549] sm:$0xff]
        %s551 = smov [#allocation15]
        %s552 = smov [#allocation16]
        %s553 = smov [#allocation17]
        %s554 = smov [#allocation18]
        %v555 = vld [vmem:[%s551] sm:$0xff]
        %v556 = vld [vmem:[%s552] sm:$0xff]
        %v557 = vld [vmem:[%s553] sm:$0xff]
        %v558 = vld [vmem:[%s554] sm:$0xff]
        %v559 = vmul.f32 %v548, %v555
        %v560 = vmul.f32 %v550, %v557
        %v561 = vsub.f32 %v559, %v560
        %v562 = vmul.f32 %v548, %v556
        %v563 = vmul.f32 %v550, %v558
        %v564 = vsub.f32 %v562, %v563
        %v565 = vmul.f32 %v550, %v555
        %v566 = vmul.f32 %v548, %v557
        %v567 = vadd.f32 %v565, %v566
        %v568 = vmul.f32 %v550, %v556
        %v569 = vmul.f32 %v548, %v558
        %v570 = vadd.f32 %v568, %v569
        %571 = vst [vmem:[%s551] sm:$0xff] %v561
        %572 = vst [vmem:[%s552] sm:$0xff] %v564
        %573 = vst [vmem:[%s553] sm:$0xff] %v567
        %574 = vst [vmem:[%s554] sm:$0xff] %v570
        %s575 = smov [#allocation24]
        %v576 = vld [vmem:[%s575] ss:$0 sm:$0xff]
        %s577 = smov [#allocation25]
        %v578 = vld [vmem:[%s577] ss:$0 sm:$0xff]
        %s579 = smov [#allocation15]
        %s580 = smov [#allocation16]
        %s581 = smov [#allocation17]
        %s582 = smov [#allocation18]
        %v583 = vld [vmem:[%s579] sm:$0xff]
        %v584 = vld [vmem:[%s580] sm:$0xff]
        %v585 = vld [vmem:[%s581] sm:$0xff]
        %v586 = vld [vmem:[%s582] sm:$0xff]
        %v587 = vmul.f32 %v576, %v583
        %v588 = vmul.f32 %v578, %v584
        %v589 = vsub.f32 %v587, %v588
        %v590 = vmul.f32 %v578, %v583
        %v591 = vmul.f32 %v576, %v584
        %v592 = vadd.f32 %v590, %v591
        %v593 = vmul.f32 %v576, %v585
        %v594 = vmul.f32 %v578, %v586
        %v595 = vsub.f32 %v593, %v594
        %v596 = vmul.f32 %v578, %v585
        %v597 = vmul.f32 %v576, %v586
        %v598 = vadd.f32 %v596, %v597
        %599 = vst [vmem:[%s579] sm:$0xff] %v589
        %600 = vst [vmem:[%s580] sm:$0xff] %v592
        %601 = vst [vmem:[%s581] sm:$0xff] %v595
        %602 = vst [vmem:[%s582] sm:$0xff] %v598
        %s603 = smov [#allocation15]
        %s604 = smov [#allocation22]
        %v605 = vlaneseq
        %v606 = vand.u32 %v605, 127
        %v607 = vmov %v606
        %v608 = vlaneseq
        %v609 = vshrl.u32 %v608, 7
        %v610 = vmov %v609
        %v611 = vld [vmem:[%s604] ss:$0 sm:$0xff]
        %v612 = vld [vmem:[%s603] sm:$0xff]
        %vm615 = vcmp.eq.s32.totalorder %v610, %v607
        %v616 = vsel %vm615, %v611, %v612
        %617 = vst [vmem:[%s603] sm:$0xff] %v616
        %s618 = smov [#allocation16]
        %v619 = vlaneseq
        %v620 = vand.u32 %v619, 127
        %v621 = vmov %v620
        %v622 = vlaneseq
        %v623 = vshrl.u32 %v622, 7
        %v624 = vmov %v623
        %v625 = vld [vmem:[%s618] sm:$0xff]
        %vm628 = vcmp.eq.s32.totalorder %v624, %v621
        %v629 = vsel %vm628, 0.0, %v625
        %630 = vst [vmem:[%s618] sm:$0xff] %v629
        %s631 = smov [#allocation17]
        %v632 = vlaneseq
        %v633 = vand.u32 %v632, 127
        %v634 = vmov %v633
        %v635 = vlaneseq
        %v636 = vshrl.u32 %v635, 7
        %v637 = vmov %v636
        %v638 = vld [vmem:[%s631] sm:$0xff]
        %vm641 = vcmp.eq.s32.totalorder %v637, %v634
        %v642 = vsel %vm641, 0.0, %v638
        %643 = vst [vmem:[%s631] sm:$0xff] %v642
        %s644 = smov [#allocation18]
        %s645 = smov [#allocation23]
        %v646 = vlaneseq
        %v647 = vand.u32 %v646, 127
        %v648 = vmov %v647
        %v649 = vlaneseq
        %v650 = vshrl.u32 %v649, 7
        %v651 = vmov %v650
        %v652 = vld [vmem:[%s645] ss:$0 sm:$0xff]
        %v653 = vld [vmem:[%s644] sm:$0xff]
        %vm656 = vcmp.eq.s32.totalorder %v651, %v648
        %v657 = vsel %vm656, %v652, %v653
        %658 = vst [vmem:[%s644] sm:$0xff] %v657
        %s659 = smov [#allocation15]
        %s660 = smov [#allocation16]
        %v661 = vld [vmem:[%s660] sm:$0xff]
        %662 = vrot.lane.b32.xlu0 %v661, 1
        %v663 = vpop.permute.xlu0 %662
        %v664 = vld [vmem:[%s659] sm:$0xff]
        %v665 = vld [vmem:[%s659] sm:$0xff]
        %666 = vrot.lane.b32.xlu0 %v665, 1
        %v667 = vpop.permute.xlu0 %666
        %v668 = vlaneseq
        %v669 = vand.u32 %v668, 127
        %vm670 = vcmp.eq.s32.totalorder %v669, 0
        %v671 = vsel %vm670, %v665, %v667
        %v672 = vlaneseq
        %v673 = vand.u32 %v672, 127
        %vm674 = vcmp.eq.s32.totalorder %v673, 1
        %v675 = vsel %vm674, %v663, %v671
        %v676 = vlaneseq
        %v677 = vand.u32 %v676, 127
        %vm678 = vcmp.ge.s32.totalorder %v677, 0
        %vm679 = vcmp.lt.s32.totalorder %v677, 8
        %vm680 = vmand %vm678, %vm679
        %v681 = vsel %vm680, %v675, 0.0
        %v682 = vld [vmem:[%s660] sm:$0xff]
        %683 = vrot.lane.b32.xlu0 %v682, 127
        %v684 = vpop.permute.xlu0 %683
        %v685 = vlaneseq
        %v686 = vand.u32 %v685, 127
        %vm687 = vcmp.eq.s32.totalorder %v686, 7
        %v688 = vsel %vm687, %v664, %v684
        %689 = vst [vmem:[%s659] sm:$0xff] %v681
        %690 = vst [vmem:[%s660] sm:$0xff] %v688
        %s691 = smov [#allocation17]
        %s692 = smov [#allocation18]
        %v693 = vld [vmem:[%s692] sm:$0xff]
        %694 = vrot.lane.b32.xlu0 %v693, 1
        %v695 = vpop.permute.xlu0 %694
        %v696 = vld [vmem:[%s691] sm:$0xff]
        %v697 = vld [vmem:[%s691] sm:$0xff]
        %698 = vrot.lane.b32.xlu0 %v697, 1
        %v699 = vpop.permute.xlu0 %698
        %v700 = vlaneseq
        %v701 = vand.u32 %v700, 127
        %vm702 = vcmp.eq.s32.totalorder %v701, 0
        %v703 = vsel %vm702, %v697, %v699
        %v704 = vlaneseq
        %v705 = vand.u32 %v704, 127
        %vm706 = vcmp.eq.s32.totalorder %v705, 1
        %v707 = vsel %vm706, %v695, %v703
        %v708 = vlaneseq
        %v709 = vand.u32 %v708, 127
        %vm710 = vcmp.ge.s32.totalorder %v709, 0
        %vm711 = vcmp.lt.s32.totalorder %v709, 8
        %vm712 = vmand %vm710, %vm711
        %v713 = vsel %vm712, %v707, 0.0
        %v714 = vld [vmem:[%s692] sm:$0xff]
        %715 = vrot.lane.b32.xlu0 %v714, 127
        %v716 = vpop.permute.xlu0 %715
        %v717 = vlaneseq
        %v718 = vand.u32 %v717, 127
        %vm719 = vcmp.eq.s32.totalorder %v718, 7
        %v720 = vsel %vm719, %v696, %v716
        %721 = vst [vmem:[%s691] sm:$0xff] %v713
        %722 = vst [vmem:[%s692] sm:$0xff] %v720
        %s723 = smov [#allocation15]
        %s724 = smov [#allocation17]
        %v725 = vld [vmem:[%s723] ss:$0 sm:$0xff]
        %s727 = scalar_lea.vmem %s723, 4294967295
        %v728 = vld [vmem:[%s727] sm:$0xfe]
        %v729 = vlaneseq
        %v730 = vshrl.u32 %v729, 7
        %vm731 = vcmp.eq.s32.totalorder %v730, 0
        %v732 = vsel %vm731, %v725, %v728
        %s733 = scalar_lea.vmem %s723, 7
        %v734 = vld [vmem:[%s733] ss:$0 sm:$0xff]
        %735 = vst [vmem:[%s723] sm:$0xff] %v732
        %v736 = vld [vmem:[%s724] ss:$0 sm:$0xff]
        %s737 = scalar_lea.vmem %s723, 1
        %738 = vst [vmem:[%s737] sm:$0x1] %v736
        %s739 = scalar_lea.vmem %s724, 1
        %v740 = vld [vmem:[%s739] sm:$0x7f]
        %v741 = vlaneseq
        %v742 = vshrl.u32 %v741, 7
        %vm743 = vcmp.eq.s32.totalorder %v742, 7
        %v744 = vsel %vm743, %v734, %v740
        %v745 = vld [vmem:[%s724] ss:$0 sm:$0xff]
        %746 = vst [vmem:[%s724] sm:$0xff] %v744
        %s747 = smov [#allocation16]
        %s748 = smov [#allocation18]
        %v749 = vld [vmem:[%s747] ss:$0 sm:$0xff]
        %s751 = scalar_lea.vmem %s747, 4294967295
        %v752 = vld [vmem:[%s751] sm:$0xfe]
        %v753 = vlaneseq
        %v754 = vshrl.u32 %v753, 7
        %vm755 = vcmp.eq.s32.totalorder %v754, 0
        %v756 = vsel %vm755, %v749, %v752
        %s757 = scalar_lea.vmem %s747, 7
        %v758 = vld [vmem:[%s757] ss:$0 sm:$0xff]
        %759 = vst [vmem:[%s747] sm:$0xff] %v756
        %v760 = vld [vmem:[%s748] ss:$0 sm:$0xff]
        %s761 = scalar_lea.vmem %s747, 1
        %762 = vst [vmem:[%s761] sm:$0x1] %v760
        %s763 = scalar_lea.vmem %s748, 1
        %v764 = vld [vmem:[%s763] sm:$0x7f]
        %v765 = vlaneseq
        %v766 = vshrl.u32 %v765, 7
        %vm767 = vcmp.eq.s32.totalorder %v766, 7
        %v768 = vsel %vm767, %v758, %v764
        %v769 = vld [vmem:[%s748] ss:$0 sm:$0xff]
        %770 = vst [vmem:[%s748] sm:$0xff] %v768
        %s771 = smov [#allocation26]
        %v772 = vld [vmem:[%s771] sm:$0xff]
        %s773 = smov [#allocation27]
        %v774 = vld [vmem:[%s773] sm:$0xff]
        %s775 = smov [#allocation8]
        %s776 = smov [#allocation10]
        %s777 = smov [#allocation12]
        %s778 = smov [#allocation13]
        %v779 = vld [vmem:[%s775] sm:$0xff]
        %v780 = vld [vmem:[%s776] sm:$0xff]
        %v781 = vld [vmem:[%s777] sm:$0xff]
        %v782 = vld [vmem:[%s778] sm:$0xff]
        %v783 = vmul.f32 %v772, %v779
        %v784 = vmul.f32 %v774, %v781
        %v785 = vsub.f32 %v783, %v784
        %v786 = vmul.f32 %v772, %v780
        %v787 = vmul.f32 %v774, %v782
        %v788 = vsub.f32 %v786, %v787
        %v789 = vmul.f32 %v774, %v779
        %v790 = vmul.f32 %v772, %v781
        %v791 = vadd.f32 %v789, %v790
        %v792 = vmul.f32 %v774, %v780
        %v793 = vmul.f32 %v772, %v782
        %v794 = vadd.f32 %v792, %v793
        %795 = vst [vmem:[%s775] sm:$0xff] %v785
        %796 = vst [vmem:[%s776] sm:$0xff] %v788
        %797 = vst [vmem:[%s777] sm:$0xff] %v791
        %798 = vst [vmem:[%s778] sm:$0xff] %v794
        %s799 = smov [#allocation8]
        %s800 = smov [#allocation12]
        %v801 = vld [vmem:[%s799] ss:$0 sm:$0xff]
        %s803 = scalar_lea.vmem %s799, 4294967295
        %v804 = vld [vmem:[%s803] sm:$0xfe]
        %v805 = vlaneseq
        %v806 = vshrl.u32 %v805, 7
        %vm807 = vcmp.eq.s32.totalorder %v806, 0
        %v808 = vsel %vm807, %v801, %v804
        %s809 = scalar_lea.vmem %s799, 7
        %v810 = vld [vmem:[%s809] ss:$0 sm:$0xff]
        %811 = vst [vmem:[%s799] sm:$0xff] %v808
        %v812 = vld [vmem:[%s800] ss:$0 sm:$0xff]
        %s813 = scalar_lea.vmem %s799, 1
        %814 = vst [vmem:[%s813] sm:$0x1] %v812
        %s815 = scalar_lea.vmem %s800, 1
        %v816 = vld [vmem:[%s815] sm:$0x7f]
        %v817 = vlaneseq
        %v818 = vshrl.u32 %v817, 7
        %vm819 = vcmp.eq.s32.totalorder %v818, 7
        %v820 = vsel %vm819, %v810, %v816
        %v821 = vld [vmem:[%s800] ss:$0 sm:$0xff]
        %822 = vst [vmem:[%s800] sm:$0xff] %v820
        %s823 = smov [#allocation10]
        %s824 = smov [#allocation13]
        %v825 = vld [vmem:[%s823] ss:$0 sm:$0xff]
        %s827 = scalar_lea.vmem %s823, 4294967295
        %v828 = vld [vmem:[%s827] sm:$0xfe]
        %v829 = vlaneseq
        %v830 = vshrl.u32 %v829, 7
        %vm831 = vcmp.eq.s32.totalorder %v830, 0
        %v832 = vsel %vm831, %v825, %v828
        %s833 = scalar_lea.vmem %s823, 7
        %v834 = vld [vmem:[%s833] ss:$0 sm:$0xff]
        %835 = vst [vmem:[%s823] sm:$0xff] %v832
        %v836 = vld [vmem:[%s824] ss:$0 sm:$0xff]
        %s837 = scalar_lea.vmem %s823, 1
        %838 = vst [vmem:[%s837] sm:$0x1] %v836
        %s839 = scalar_lea.vmem %s824, 1
        %v840 = vld [vmem:[%s839] sm:$0x7f]
        %v841 = vlaneseq
        %v842 = vshrl.u32 %v841, 7
        %vm843 = vcmp.eq.s32.totalorder %v842, 7
        %v844 = vsel %vm843, %v834, %v840
        %v845 = vld [vmem:[%s824] ss:$0 sm:$0xff]
        %846 = vst [vmem:[%s824] sm:$0xff] %v844
      $region101: #{custom-call.115} parent=93 // loop_footer
        %s407 = sadd.s32 1, %s403
      $region102: #{custom-call.115} parent=93 // loop_footer_branch
        %402 = sbr.rel target = $region98
      $region103: #{custom-call.115} parent=93 // loop_exit
        _
      %s847 = sadd.s32 %s305, 1
    $region94: #{custom-call.115} parent=1 // loop_footer
      _
    $region95: #{custom-call.115} parent=1 // loop_footer_branch
      %304 = sbr.rel target = $region91
    $region96: #{custom-call.115} parent=1 // loop_exit
      _
    %s850 = smov [#allocation15]
    %s851 = smov [#allocation4]
    %v852 = vlaneseq
    %v853 = vand.u32 %v852, 127
    %v854 = vmov %v853
    %v855 = vlaneseq
    %v856 = vshrl.u32 %v855, 7
    %v857 = vmov %v856
    %v858 = vld [vmem:[%s850] sm:$0xff]
    %vm861 = vcmp.eq.s32.totalorder %v857, %v854
    %v862 = vsel %vm861, %v858, 0.0
    %v863 = vrot.slane %v862, 4
    %v864 = vadd.f32 %v862, %v863
    %v865 = vrot.slane %v864, 2
    %v866 = vadd.f32 %v864, %v865
    %v867 = vrot.slane %v866, 1
    %v868 = vadd.f32 %v866, %v867
    %869 = vst [vmem:[%s851] sm:$0x1] %v868
    %s870 = smov [#allocation18]
    %s871 = smov [#allocation6]
    %v872 = vlaneseq
    %v873 = vand.u32 %v872, 127
    %v874 = vmov %v873
    %v875 = vlaneseq
    %v876 = vshrl.u32 %v875, 7
    %v877 = vmov %v876
    %v878 = vld [vmem:[%s870] sm:$0xff]
    %vm881 = vcmp.eq.s32.totalorder %v877, %v874
    %v882 = vsel %vm881, %v878, 0.0
    %v883 = vrot.slane %v882, 4
    %v884 = vadd.f32 %v882, %v883
    %v885 = vrot.slane %v884, 2
    %v886 = vadd.f32 %v884, %v885
    %v887 = vrot.slane %v886, 1
    %v888 = vadd.f32 %v886, %v887
    %889 = vst [vmem:[%s871] sm:$0x1] %v888
    %s891 = sshllo.u32 0, 1
    %v893 = vld [vmem:[#allocation4] sm:%s891]
    %s894 = sshllo.u32 0, 1
    %895 = vst [vmem:[#allocation5] sm:%s894] %v893
    %s897 = sshllo.u32 0, 1
    %v899 = vld [vmem:[#allocation6] sm:%s897]
    %s900 = sshllo.u32 0, 1
    %901 = vst [vmem:[#allocation7] sm:%s900] %v899
    // Predicated region
    $region104: #{custom-call.115} parent=1 // pred_check
      _
    $region105: #{custom-call.115} parent=1 // pred_check_branch
      %903 = sbr.rel (0) target = $region107
    $region106: #{custom-call.115} parent=1 // pred_region
      %p905 = scmp.gt.s32.totalorder 1, 0
      // Predicated region
      $region108: #{custom-call.115} parent=106 // pred_check
        %p906 = pneg %p905
      $region109: #{custom-call.115} parent=106 // pred_check_branch
        %908 = sbr.rel (%p906) target = $region111
      $region110: #{custom-call.115} parent=106 // pred_region
        %s909 = sshra.s32 1, 3
        %p910 = scmp.gt.s32.totalorder %s909, 0
        // Predicated region
        $region112: #{custom-call.115} parent=110 // pred_check
          %p911 = pneg %p910
        $region113: #{custom-call.115} parent=110 // pred_check_branch
          %913 = sbr.rel (%p911) target = $region115
        $region114: #{custom-call.115} parent=110 // pred_region
          %s914 = ssub.s32 %s909, 1
          %s915 = smul.u32 %s914, 128
          %s916 = sshra.s32 %s915, 4
          %s917 = scalar_lea.vmem [#allocation5], %s916
          %v918 = vld [vmem:[#allocation5] sm:$0xff]
          // While loop
          $region116: #{custom-call.115} parent=114 // loop_pre_header
            _
          $region117: #{custom-call.115} parent=114 // loop_header
            %s919 = sphi [#allocation5], %s941
            %s920 = sphi %s4, %s942
            %v921 = vphi %v918, %v943
            %s922 = ssub.s32 %s917, 64
            %p923 = scmp.gt.s32.totalorder %s919, %s922
          $region118: #{custom-call.115} parent=114 // loop_header_branch
            %925 = sbr.rel (%p923) target = $region122
          $region119: #{custom-call.115} parent=114 // loop_body
            %926 = vst [vmem:[%s920] sm:$0xff] %v921
            %v927 = vld [vmem:[%s919 + $0x8] sm:$0xff]
            %928 = vst [vmem:[%s920 + $0x8] sm:$0xff] %v927
            %v929 = vld [vmem:[%s919 + $0x10] sm:$0xff]
            %930 = vst [vmem:[%s920 + $0x10] sm:$0xff] %v929
            %v931 = vld [vmem:[%s919 + $0x18] sm:$0xff]
            %932 = vst [vmem:[%s920 + $0x18] sm:$0xff] %v931
            %v933 = vld [vmem:[%s919 + $0x20] sm:$0xff]
            %934 = vst [vmem:[%s920 + $0x20] sm:$0xff] %v933
            %v935 = vld [vmem:[%s919 + $0x28] sm:$0xff]
            %936 = vst [vmem:[%s920 + $0x28] sm:$0xff] %v935
            %v937 = vld [vmem:[%s919 + $0x30] sm:$0xff]
            %938 = vst [vmem:[%s920 + $0x30] sm:$0xff] %v937
            %v939 = vld [vmem:[%s919 + $0x38] sm:$0xff]
            %940 = vst [vmem:[%s920 + $0x38] sm:$0xff] %v939
          $region120: #{custom-call.115} parent=114 // loop_footer
            %s941 = scalar_lea.vmem %s919, 64
            %s942 = scalar_lea.vmem %s920, 64
            %v943 = vld [vmem:[%s919 + $0x40] sm:$0xff]
          $region121: #{custom-call.115} parent=114 // loop_footer_branch
            %944 = sbr.rel target = $region117
          $region122: #{custom-call.115} parent=114 // loop_exit
            _
          // While loop
          $region123: #{custom-call.115} parent=114 // loop_pre_header
            _
          $region124: #{custom-call.115} parent=114 // loop_header
            %s945 = sphi %s919, %s953
            %s946 = sphi %s920, %s954
            %v947 = vphi %v921, %v947
            %p948 = scmp.gt.s32.totalorder %s945, %s917
          $region125: #{custom-call.115} parent=114 // loop_header_branch
            %950 = sbr.rel (%p948) target = $region129
          $region126: #{custom-call.115} parent=114 // loop_body
            %v951 = vld [vmem:[%s945] sm:$0xff]
            %952 = vst [vmem:[%s946] sm:$0xff] %v951
          $region127: #{custom-call.115} parent=114 // loop_footer
            %s953 = scalar_lea.vmem %s945, 8
            %s954 = scalar_lea.vmem %s946, 8
          $region128: #{custom-call.115} parent=114 // loop_footer_branch
            %955 = sbr.rel target = $region124
          $region129: #{custom-call.115} parent=114 // loop_exit
            _
        $region115: #{custom-call.115} parent=110 // pred_fallthru
          _
        %s956 = sand.u32 1, 7
        %s957 = sshllo.u32 0, %s956
        %s958 = smul.u32 %s909, 128
        %s959 = sshra.s32 %s958, 4
        %s960 = scalar_lea.vmem %s4, %s959
        %s961 = smul.u32 %s909, 128
        %s962 = sshra.s32 %s961, 4
        %s963 = scalar_lea.vmem [#allocation5], %s962
        %v964 = vld [vmem:[%s963] sm:%s957]
        %965 = vst [vmem:[%s960] sm:%s957] %v964
      $region111: #{custom-call.115} parent=106 // pred_fallthru
        _
    $region107: #{custom-call.115} parent=1 // pred_fallthru
      _
    // Predicated region
    $region130: #{custom-call.115} parent=1 // pred_check
      _
    $region131: #{custom-call.115} parent=1 // pred_check_branch
      %967 = sbr.rel (0) target = $region133
    $region132: #{custom-call.115} parent=1 // pred_region
      %p969 = scmp.gt.s32.totalorder 1, 0
      // Predicated region
      $region134: #{custom-call.115} parent=132 // pred_check
        %p970 = pneg %p969
      $region135: #{custom-call.115} parent=132 // pred_check_branch
        %972 = sbr.rel (%p970) target = $region137
      $region136: #{custom-call.115} parent=132 // pred_region
        %s973 = sshra.s32 1, 3
        %p974 = scmp.gt.s32.totalorder %s973, 0
        // Predicated region
        $region138: #{custom-call.115} parent=136 // pred_check
          %p975 = pneg %p974
        $region139: #{custom-call.115} parent=136 // pred_check_branch
          %977 = sbr.rel (%p975) target = $region141
        $region140: #{custom-call.115} parent=136 // pred_region
          %s978 = ssub.s32 %s973, 1
          %s979 = smul.u32 %s978, 128
          %s980 = sshra.s32 %s979, 4
          %s981 = scalar_lea.vmem [#allocation7], %s980
          %v982 = vld [vmem:[#allocation7] sm:$0xff]
          // While loop
          $region142: #{custom-call.115} parent=140 // loop_pre_header
            _
          $region143: #{custom-call.115} parent=140 // loop_header
            %s983 = sphi [#allocation7], %s1005
            %s984 = sphi %s5, %s1006
            %v985 = vphi %v982, %v1007
            %s986 = ssub.s32 %s981, 64
            %p987 = scmp.gt.s32.totalorder %s983, %s986
          $region144: #{custom-call.115} parent=140 // loop_header_branch
            %989 = sbr.rel (%p987) target = $region148
          $region145: #{custom-call.115} parent=140 // loop_body
            %990 = vst [vmem:[%s984] sm:$0xff] %v985
            %v991 = vld [vmem:[%s983 + $0x8] sm:$0xff]
            %992 = vst [vmem:[%s984 + $0x8] sm:$0xff] %v991
            %v993 = vld [vmem:[%s983 + $0x10] sm:$0xff]
            %994 = vst [vmem:[%s984 + $0x10] sm:$0xff] %v993
            %v995 = vld [vmem:[%s983 + $0x18] sm:$0xff]
            %996 = vst [vmem:[%s984 + $0x18] sm:$0xff] %v995
            %v997 = vld [vmem:[%s983 + $0x20] sm:$0xff]
            %998 = vst [vmem:[%s984 + $0x20] sm:$0xff] %v997
            %v999 = vld [vmem:[%s983 + $0x28] sm:$0xff]
            %1000 = vst [vmem:[%s984 + $0x28] sm:$0xff] %v999
            %v1001 = vld [vmem:[%s983 + $0x30] sm:$0xff]
            %1002 = vst [vmem:[%s984 + $0x30] sm:$0xff] %v1001
            %v1003 = vld [vmem:[%s983 + $0x38] sm:$0xff]
            %1004 = vst [vmem:[%s984 + $0x38] sm:$0xff] %v1003
          $region146: #{custom-call.115} parent=140 // loop_footer
            %s1005 = scalar_lea.vmem %s983, 64
            %s1006 = scalar_lea.vmem %s984, 64
            %v1007 = vld [vmem:[%s983 + $0x40] sm:$0xff]
          $region147: #{custom-call.115} parent=140 // loop_footer_branch
            %1008 = sbr.rel target = $region143
          $region148: #{custom-call.115} parent=140 // loop_exit
            _
          // While loop
          $region149: #{custom-call.115} parent=140 // loop_pre_header
            _
          $region150: #{custom-call.115} parent=140 // loop_header
            %s1009 = sphi %s983, %s1017
            %s1010 = sphi %s984, %s1018
            %v1011 = vphi %v985, %v1011
            %p1012 = scmp.gt.s32.totalorder %s1009, %s981
          $region151: #{custom-call.115} parent=140 // loop_header_branch
            %1014 = sbr.rel (%p1012) target = $region155
          $region152: #{custom-call.115} parent=140 // loop_body
            %v1015 = vld [vmem:[%s1009] sm:$0xff]
            %1016 = vst [vmem:[%s1010] sm:$0xff] %v1015
          $region153: #{custom-call.115} parent=140 // loop_footer
            %s1017 = scalar_lea.vmem %s1009, 8
            %s1018 = scalar_lea.vmem %s1010, 8
          $region154: #{custom-call.115} parent=140 // loop_footer_branch
            %1019 = sbr.rel target = $region150
          $region155: #{custom-call.115} parent=140 // loop_exit
            _
        $region141: #{custom-call.115} parent=136 // pred_fallthru
          _
        %s1020 = sand.u32 1, 7
        %s1021 = sshllo.u32 0, %s1020
        %s1022 = smul.u32 %s973, 128
        %s1023 = sshra.s32 %s1022, 4
        %s1024 = scalar_lea.vmem %s5, %s1023
        %s1025 = smul.u32 %s973, 128
        %s1026 = sshra.s32 %s1025, 4
        %s1027 = scalar_lea.vmem [#allocation7], %s1026
        %v1028 = vld [vmem:[%s1027] sm:%s1021]
        %1029 = vst [vmem:[%s1024] sm:%s1021] %v1028
      $region137: #{custom-call.115} parent=132 // pred_fallthru
        _
    $region133: #{custom-call.115} parent=1 // pred_fallthru
      _
    %s1031 = ssub.s32 128, 128
    %1032 = vsyncadd [#allocation9], %s1031
    %s1033 = sshll.u32 [#allocation8], 4
    %s1034 = int_to_ptr.vmem [resolvable:$true] %s1033
    %1036 = dma.vmem_to_hbm [thread:$0]  %s1034, 128, %s6, [#allocation9]
    %s1038 = ssub.s32 128, 128
    %1039 = vsyncadd [#allocation11], %s1038
    %s1040 = sshll.u32 [#allocation10], 4
    %s1041 = int_to_ptr.vmem [resolvable:$true] %s1040
    %1043 = dma.vmem_to_hbm [thread:$0]  %s1041, 128, %s7, [#allocation11]
    %s1045 = ssub.s32 128, 128
    %1046 = vsyncadd [#allocation11], %s1045
    %s1047 = sshll.u32 [#allocation12], 4
    %s1048 = int_to_ptr.vmem [resolvable:$true] %s1047
    %1050 = dma.vmem_to_hbm [thread:$0]  %s1048, 128, %s8, [#allocation11]
    %s1052 = ssub.s32 128, 128
    %1053 = vsyncadd [#allocation14], %s1052
    %s1054 = sshll.u32 [#allocation13], 4
    %s1055 = int_to_ptr.vmem [resolvable:$true] %s1054
    %1057 = dma.vmem_to_hbm [thread:$0]  %s1055, 128, %s9, [#allocation14]
    // Predicated region
    $region156: #{custom-call.115} parent=1 // pred_check
      _
    $region157: #{custom-call.115} parent=1 // pred_check_branch
      %1059 = sbr.rel (0) target = $region159
    $region158: #{custom-call.115} parent=1 // pred_region
      _
    $region159: #{custom-call.115} parent=1 // pred_fallthru
      _
    // Predicated region
    $region160: #{custom-call.115} parent=1 // pred_check
      _
    $region161: #{custom-call.115} parent=1 // pred_check_branch
      %1061 = sbr.rel (0) target = $region163
    $region162: #{custom-call.115} parent=1 // pred_region
      _
    $region163: #{custom-call.115} parent=1 // pred_fallthru
      _
    %1062 = dma.done [#allocation9], 128
    %1063 = dma.done [#allocation11], 128
    %1064 = dma.done [#allocation11], 128
    %1065 = dma.done [#allocation14], 128
    %1066 = vsyncpa [#allocation9], 1
    %1067 = vsyncpa [#allocation11], 1
    %1068 = vsyncpa [#allocation14], 1

// kernel: _forward_impl.1
$region0: #{_forward_impl.1}
  #allocation0 [shape = 'u32[]', space=smem, size = 0x4, offset = 0x4, fixed_abs, tag = 'smem constant byte address 0x4 - core index']
  #allocation1 [shape = 'u32[144,128]{1,0:T(1,128)}', space=vmem, size = 0x12000, scoped, tag = 'internal scratch']
  %s0 = inlined_call_operand.vmem [shape: f32[16,8], index: 0, kind: input, shape index: {}]
  %s1 = inlined_call_operand.vmem [shape: f32[8,128], index: 1, kind: input, shape index: {}]
  %s2 = inlined_call_operand.vmem [shape: f32[1,128], index: 2, kind: input, shape index: {}]
  %s3 = inlined_call_operand.hbm [shape: f32[2,128,128], index: 3, kind: input, shape index: {}]
  %s4 = inlined_call_operand.vmem [shape: f32[2,1,128], index: 4, kind: input, shape index: {}]
  %s5 = inlined_call_operand.vmem [shape: f32[16,16], index: 5, kind: input, shape index: {}]
  %s6 = inlined_call_operand.vmem [shape: f32[16,1], index: 6, kind: input, shape index: {}]
  %s7 = inlined_call_operand.vmem [shape: f32[1,16], index: 7, kind: input, shape index: {}]
  %s8 = inlined_call_operand.vmem [shape: f32[2,16,128], index: 8, kind: output, shape index: {0}]
  %s9 = inlined_call_operand.vmem [shape: f32[3,128], index: 9, kind: output, shape index: {1}]
  %10 = xla_tuple %s8, %s9
  %s11 = sld [smem:[#allocation0]]
  $region54: #{_forward_impl.1} parent=0
    _
  %s13 = ssub.s32 1, %s11
  %s14 = scalar_select 0, %s13, %s11
  $region1: #{_forward_impl.1} parent=0
    #allocation2 [shape = 'u8[131072]{0}', space=vmem, size = 0x20000, scoped, tag = 'input window, operand 3, single buffered']
    #allocation3 [shape = 's32[1]{0}', space=sflag, size = 0x4, scoped, tag = 'scoped memory for _forward_impl.1']
    %15 = vsyncpa [#allocation3], 0
    // Predicated region
    $region2: #{_forward_impl.1} parent=1 // pred_check
      _
    $region3: #{_forward_impl.1} parent=1 // pred_check_branch
      %17 = sbr.rel (0) target = $region5
    $region4: #{_forward_impl.1} parent=1 // pred_region
      _
    $region5: #{_forward_impl.1} parent=1 // pred_fallthru
      _
    // Predicated region
    $region6: #{_forward_impl.1} parent=1 // pred_check
      _
    $region7: #{_forward_impl.1} parent=1 // pred_check_branch
      %19 = sbr.rel (0) target = $region9
    $region8: #{_forward_impl.1} parent=1 // pred_region
      _
    $region9: #{_forward_impl.1} parent=1 // pred_fallthru
      _
    // Predicated region
    $region10: #{_forward_impl.1} parent=1 // pred_check
      _
    $region11: #{_forward_impl.1} parent=1 // pred_check_branch
      %21 = sbr.rel (0) target = $region13
    $region12: #{_forward_impl.1} parent=1 // pred_region
      _
    $region13: #{_forward_impl.1} parent=1 // pred_fallthru
      _
    // Predicated region
    $region14: #{_forward_impl.1} parent=1 // pred_check
      _
    $region15: #{_forward_impl.1} parent=1 // pred_check_branch
      %23 = sbr.rel (0) target = $region17
    $region16: #{_forward_impl.1} parent=1 // pred_region
      %s25 = ssub.s32 4096, 4096
      %26 = vsyncadd [#allocation3], %s25
      %s27 = sshll.u32 [#allocation2], 4
      %s28 = int_to_ptr.vmem [resolvable:$true] %s27
      %33 = dma.hbm_to_vmem [thread:$0]  %s3, 4096, %s28, [#allocation3], 128, 128, 8
    $region17: #{_forward_impl.1} parent=1 // pred_fallthru
      _
    // Predicated region
    $region18: #{_forward_impl.1} parent=1 // pred_check
      _
    $region19: #{_forward_impl.1} parent=1 // pred_check_branch
      %35 = sbr.rel (0) target = $region21
    $region20: #{_forward_impl.1} parent=1 // pred_region
      _
    $region21: #{_forward_impl.1} parent=1 // pred_fallthru
      _
    // Predicated region
    $region22: #{_forward_impl.1} parent=1 // pred_check
      _
    $region23: #{_forward_impl.1} parent=1 // pred_check_branch
      %37 = sbr.rel (0) target = $region25
    $region24: #{_forward_impl.1} parent=1 // pred_region
      _
    $region25: #{_forward_impl.1} parent=1 // pred_fallthru
      _
    // Predicated region
    $region26: #{_forward_impl.1} parent=1 // pred_check
      _
    $region27: #{_forward_impl.1} parent=1 // pred_check_branch
      %39 = sbr.rel (0) target = $region29
    $region28: #{_forward_impl.1} parent=1 // pred_region
      _
    $region29: #{_forward_impl.1} parent=1 // pred_fallthru
      _
    // Predicated region
    $region30: #{_forward_impl.1} parent=1 // pred_check
      _
    $region31: #{_forward_impl.1} parent=1 // pred_check_branch
      %41 = sbr.rel (0) target = $region33
    $region32: #{_forward_impl.1} parent=1 // pred_region
      _
    $region33: #{_forward_impl.1} parent=1 // pred_fallthru
      _
    // Predicated region
    $region34: #{_forward_impl.1} parent=1 // pred_check
      _
    $region35: #{_forward_impl.1} parent=1 // pred_check_branch
      %43 = sbr.rel (0) target = $region37
    $region36: #{_forward_impl.1} parent=1 // pred_region
      %44 = dma.done [#allocation3], 4096
    $region37: #{_forward_impl.1} parent=1 // pred_fallthru
      _
    %v45 = vld [vmem:[%s5] sm:$0xff]
    %v46 = vld [vmem:[%s5 + $0x8] sm:$0xff]
    %v47 = vld [vmem:[%s6] sm:$0xff]
    %v48 = vld [vmem:[%s6 + $0x8] sm:$0xff]
    %v49 = vld [vmem:[%s7] sm:$0x1]
    %v50 = vmul.f32 %v47, %v47
    %v51 = vmul.f32 %v48, %v48
    %53 = vset.pattern.permute.xlu0 0
    %54 = vperm.xlu0 %53, %v47
    %v55 = vpop.permute.xlu0 %54
    %58 = vset.pattern.permute.xlu0 0
    %59 = vperm.xlu0 %58, %v48
    %v60 = vpop.permute.xlu0 %59
    %v62 = vmul.f32 %v45, %v55
    %v63 = vmul.f32 %v46, %v60
    %v65 = vlaneseq
    %v66 = vshrl.u32 %v65, 7
    %v67 = vsub.s32 0, %v66
    %v68 = vrot.slane %v49, %v67
    %v70 = vmul.f32 %v62, %v68
    %v71 = vmul.f32 %v63, %v68
    %vm72 = vcmask 130048
    %v73 = vsel %vm72, %v45, 0.0
    %74 = vadd.xlane.f32.xlu0 %v73
    %v75 = vpop.xlane.xlu0 %74
    %v76 = vsel %vm72, %v46, 0.0
    %77 = vadd.xlane.f32.xlu0 %v76
    %v78 = vpop.xlane.xlu0 %77
    %v79 = vmul.f32 %v45, %v68
    %v80 = vmul.f32 %v46, %v68
    %v81 = vsel %vm72, %v79, 0.0
    %82 = vadd.xlane.f32.xlu0 %v81
    %v83 = vpop.xlane.xlu0 %82
    %v84 = vsel %vm72, %v80, 0.0
    %85 = vadd.xlane.f32.xlu0 %v84
    %v86 = vpop.xlane.xlu0 %85
    %v87 = vmul.f32 %v50, %v47
    %v88 = vmul.f32 %v51, %v48
    %v89 = vmul.f32 %v87, %v83
    %v90 = vmul.f32 %v88, %v86
    %v91 = vld [vmem:[%s0] sm:$0xff]
    %v92 = vld [vmem:[%s0 + $0x8] sm:$0xff]
    %v93 = vld [vmem:[%s1] sm:$0xff]
    %v94 = vld [vmem:[%s2] sm:$0x1]
    %v96 = vlaneseq
    %v97 = vshrl.u32 %v96, 7
    %v98 = vsub.s32 0, %v97
    %v99 = vrot.slane %v94, %v98
    %vm101 = vcmask 64512
    %v103 = vsel %vm101, %v91, 0
    %v106 = vsel %vm101, %v92, 0
    %108 = vmatprep.subr.mxu0 0.0
    %109 = vmatpush1.msra.mxu0 %v93
    %110 = vmatprep.subr.mxu0 0.0
    %111 = vmatpush1.msra.mxu0 0.0
    %112 = vmatprep.subr.mxu0 0.0
    %113 = vmatpush1.msra.mxu0 0.0
    %114 = vmatprep.subr.mxu0 0.0
    %115 = vmatpush1.msra.mxu0 0.0
    %116 = vmatprep.subr.mxu0 0.0
    %117 = vmatpush1.msra.mxu0 0.0
    %118 = vmatprep.subr.mxu0 0.0
    %119 = vmatpush1.msra.mxu0 0.0
    %120 = vmatprep.subr.mxu0 0.0
    %121 = vmatpush1.msra.mxu0 0.0
    %122 = vmatprep.subr.mxu0 0.0
    %123 = vmatpush1.msra.mxu0 0.0
    %124 = vmatprep.subr.mxu0 0.0
    %125 = vmatpush1.msra.mxu0 0.0
    %126 = vmatprep.subr.mxu0 0.0
    %127 = vmatpush1.msra.mxu0 0.0
    %128 = vmatprep.subr.mxu0 0.0
    %129 = vmatpush1.msra.mxu0 0.0
    %130 = vmatprep.subr.mxu0 0.0
    %131 = vmatpush1.msra.mxu0 0.0
    %132 = vmatprep.subr.mxu0 0.0
    %133 = vmatpush1.msra.mxu0 0.0
    %134 = vmatprep.subr.mxu0 0.0
    %135 = vmatpush1.msra.mxu0 0.0
    %136 = vmatprep.subr.mxu0 0.0
    %137 = vmatpush1.msra.mxu0 0.0
    %138 = vmatprep.subr.mxu0 0.0
    %139 = vmatpush1.msra.mxu0 0.0
    %140 = vmatprep.subr.mxu0 0.0
    %141 = vmatpush1.msra.mxu0 0.0
    %142 = vmatprep.subr.mxu0 0.0
    %143 = vmatpush1.msra.mxu0 0.0
    %144 = vmatprep.subr.mxu0 0.0
    %145 = vmatpush1.msra.mxu0 0.0
    %146 = vmatprep.subr.mxu0 0.0
    %147 = vmatpush1.msra.mxu0 0.0
    %148 = vmatprep.subr.mxu0 0.0
    %149 = vmatpush1.msra.mxu0 0.0
    %150 = vmatprep.subr.mxu0 0.0
    %151 = vmatpush1.msra.mxu0 0.0
    %152 = vmatprep.subr.mxu0 0.0
    %153 = vmatpush1.msra.mxu0 0.0
    %154 = vmatprep.subr.mxu0 0.0
    %155 = vmatpush1.msra.mxu0 0.0
    %156 = vmatprep.subr.mxu0 0.0
    %157 = vmatpush1.msra.mxu0 0.0
    %158 = vmatprep.subr.mxu0 0.0
    %159 = vmatpush1.msra.mxu0 0.0
    %160 = vmatprep.subr.mxu0 0.0
    %161 = vmatpush1.msra.mxu0 0.0
    %162 = vmatprep.subr.mxu0 0.0
    %163 = vmatpush1.msra.mxu0 0.0
    %164 = vmatprep.subr.mxu0 0.0
    %165 = vmatpush1.msra.mxu0 0.0
    %166 = vmatprep.subr.mxu0 0.0
    %167 = vmatpush1.msra.mxu0 0.0
    %168 = vmatprep.subr.mxu0 0.0
    %169 = vmatpush1.msra.mxu0 0.0
    %170 = vmatprep.subr.mxu0 0.0
    %171 = vmatpush1.msra.mxu0 0.0
    %172 = vmatprep.mubr.f32.mxu0 0.0
    %173 = vmatmul.mubr.f32.gmra.mrb[0].mxu0 %v103
    %v174 = vpop.f32.mrb[0].mxu0
    %v175 = vadd.f32 %v99, %v174
    %v176 = vpop.f32.mrb[0].mxu0
    %177 = vmatprep.mubr.f32.mxu0 0.0
    %178 = vmatmul.mubr.f32.gmra.mrb[0].mxu0 %v106
    %v179 = vpop.f32.mrb[0].mxu0
    %v180 = vadd.f32 %v99, %v179
    %v181 = vpop.f32.mrb[0].mxu0
    %182 = vdwg.mxu0
    %v183 = vmul.f32 %v175, %v175
    %v184 = vmul.f32 %v180, %v180
    %v185 = vadd.f32 %v183, %v184
    %186 = vadd.xlane.f32.xlu0 %v185
    %v187 = vpop.xlane.xlu0 %186
    %v188 = vrot.slane %v187, 4
    %v189 = vadd.f32 %v187, %v188
    %v190 = vrot.slane %v189, 2
    %v191 = vadd.f32 %v189, %v190
    %v192 = vrot.slane %v191, 1
    %v193 = vadd.f32 %v191, %v192
    %s194 = vtos %v193
    %v195 = vstv %s194
    %v196 = vrsqrt.pop %v195
    %s197 = vtos %v196
    %v198 = vstv %s197
    %v199 = vmul.f32 %v175, %v198
    %v200 = vmul.f32 %v180, %v198
    %v201 = vmul.f32 %v199, %v199
    %v202 = vmul.f32 %v200, %v200
    %203 = vadd.xlane.f32.xlu0 %v201
    %v204 = vpop.xlane.xlu0 %203
    %205 = vadd.xlane.f32.xlu0 %v202
    %v206 = vpop.xlane.xlu0 %205
    %v207 = vmul.f32 %v89, %v204
    %v208 = vmul.f32 %v90, %v206
    %vm209 = vcmask 7168
    %v210 = vsel %vm209, %v207, 0.0
    %v211 = vsel %vm209, %v208, 0.0
    %v212 = vadd.f32 %v210, %v211
    %213 = vadd.xlane.f32.xlu0 %v212
    %v214 = vpop.xlane.xlu0 %213
    %v215 = vrot.slane %v214, 4
    %v216 = vadd.f32 %v214, %v215
    %v217 = vrot.slane %v216, 2
    %v218 = vadd.f32 %v216, %v217
    %v219 = vrot.slane %v218, 1
    %v220 = vadd.f32 %v218, %v219
    %s221 = vtos %v220
    %223 = vset.pattern.permute.xlu0 0
    %224 = vperm.xlu0 %223, %v50
    %v225 = vpop.permute.xlu0 %224
    %228 = vset.pattern.permute.xlu0 0
    %229 = vperm.xlu0 %228, %v51
    %v230 = vpop.permute.xlu0 %229
    %v232 = vmul.f32 %v225, %v199
    %v233 = vmul.f32 %v230, %v200
    %v235 = vsel %vm72, %v45, 0
    %v238 = vsel %vm72, %v46, 0
    %240 = vmatprep.subr.mxu0 0.0
    %241 = vmatpush1.msra.mxu0 %v232
    %242 = vmatprep.subr.mxu0 0.0
    %243 = vmatpush1.msra.mxu0 %v233
    %244 = vmatprep.subr.mxu0 0.0
    %245 = vmatpush1.msra.mxu0 0.0
    %246 = vmatprep.subr.mxu0 0.0
    %247 = vmatpush1.msra.mxu0 0.0
    %248 = vmatprep.subr.mxu0 0.0
    %249 = vmatpush1.msra.mxu0 0.0
    %250 = vmatprep.subr.mxu0 0.0
    %251 = vmatpush1.msra.mxu0 0.0
    %252 = vmatprep.subr.mxu0 0.0
    %253 = vmatpush1.msra.mxu0 0.0
    %254 = vmatprep.subr.mxu0 0.0
    %255 = vmatpush1.msra.mxu0 0.0
    %256 = vmatprep.subr.mxu0 0.0
    %257 = vmatpush1.msra.mxu0 0.0
    %258 = vmatprep.subr.mxu0 0.0
    %259 = vmatpush1.msra.mxu0 0.0
    %260 = vmatprep.subr.mxu0 0.0
    %261 = vmatpush1.msra.mxu0 0.0
    %262 = vmatprep.subr.mxu0 0.0
    %263 = vmatpush1.msra.mxu0 0.0
    %264 = vmatprep.subr.mxu0 0.0
    %265 = vmatpush1.msra.mxu0 0.0
    %266 = vmatprep.subr.mxu0 0.0
    %267 = vmatpush1.msra.mxu0 0.0
    %268 = vmatprep.subr.mxu0 0.0
    %269 = vmatpush1.msra.mxu0 0.0
    %270 = vmatprep.subr.mxu0 0.0
    %271 = vmatpush1.msra.mxu0 0.0
    %272 = vmatprep.subr.mxu0 0.0
    %273 = vmatpush1.msra.mxu0 0.0
    %274 = vmatprep.subr.mxu0 0.0
    %275 = vmatpush1.msra.mxu0 0.0
    %276 = vmatprep.subr.mxu0 0.0
    %277 = vmatpush1.msra.mxu0 0.0
    %278 = vmatprep.subr.mxu0 0.0
    %279 = vmatpush1.msra.mxu0 0.0
    %280 = vmatprep.subr.mxu0 0.0
    %281 = vmatpush1.msra.mxu0 0.0
    %282 = vmatprep.subr.mxu0 0.0
    %283 = vmatpush1.msra.mxu0 0.0
    %284 = vmatprep.subr.mxu0 0.0
    %285 = vmatpush1.msra.mxu0 0.0
    %286 = vmatprep.subr.mxu0 0.0
    %287 = vmatpush1.msra.mxu0 0.0
    %288 = vmatprep.subr.mxu0 0.0
    %289 = vmatpush1.msra.mxu0 0.0
    %290 = vmatprep.subr.mxu0 0.0
    %291 = vmatpush1.msra.mxu0 0.0
    %292 = vmatprep.subr.mxu0 0.0
    %293 = vmatpush1.msra.mxu0 0.0
    %294 = vmatprep.subr.mxu0 0.0
    %295 = vmatpush1.msra.mxu0 0.0
    %296 = vmatprep.subr.mxu0 0.0
    %297 = vmatpush1.msra.mxu0 0.0
    %298 = vmatprep.subr.mxu0 0.0
    %299 = vmatpush1.msra.mxu0 0.0
    %300 = vmatprep.subr.mxu0 0.0
    %301 = vmatpush1.msra.mxu0 0.0
    %302 = vmatprep.subr.mxu0 0.0
    %303 = vmatpush1.msra.mxu0 0.0
    %304 = vmatprep.mubr.f32.mxu0 0.0
    %305 = vmatmul.mubr.f32.gmra.mrb[0].mxu0 %v235
    %v306 = vpop.f32.mrb[0].mxu0
    %v307 = vadd.f32 0.0, %v306
    %v308 = vpop.f32.mrb[0].mxu0
    %309 = vmatprep.mubr.f32.mxu0 0.0
    %310 = vmatmul.mubr.f32.gmra.mrb[0].mxu0 %v238
    %v311 = vpop.f32.mrb[0].mxu0
    %v312 = vadd.f32 0.0, %v311
    %v313 = vpop.f32.mrb[0].mxu0
    %314 = vdwg.mxu0
    %v315 = vmul.f32 %v225, %v307
    %v316 = vmul.f32 %v230, %v312
    %v317 = vmul.f32 %v315, %v199
    %v318 = vmul.f32 %v316, %v200
    %v319 = vadd.f32 %v317, %v318
    %320 = vadd.xlane.f32.xlu0 %v319
    %v321 = vpop.xlane.xlu0 %320
    %v322 = vrot.slane %v321, 4
    %v323 = vadd.f32 %v321, %v322
    %v324 = vrot.slane %v323, 2
    %v325 = vadd.f32 %v323, %v324
    %v326 = vrot.slane %v325, 1
    %v327 = vadd.f32 %v325, %v326
    %s328 = vtos %v327
    %s329 = ssub.f32 %s221, %s328
    %v330 = vlaneseq
    %v331 = vand.u32 %v330, 127
    %vm332 = vcmp.eq.s32.totalorder %v331, 0
    %v333 = vstv %s329
    %v334 = vsel %vm332, %v333, 0.0
    %v335 = vadd.f32 %v334, 0.0
    %v336 = vld [vmem:[#allocation2] sm:$0xff]
    %v337 = vld [vmem:[#allocation2 + $0x8] sm:$0xff]
    %v338 = vld [vmem:[#allocation2 + $0x10] sm:$0xff]
    %v339 = vld [vmem:[#allocation2 + $0x18] sm:$0xff]
    %v340 = vld [vmem:[#allocation2 + $0x20] sm:$0xff]
    %v341 = vld [vmem:[#allocation2 + $0x28] sm:$0xff]
    %v342 = vld [vmem:[#allocation2 + $0x30] sm:$0xff]
    %v343 = vld [vmem:[#allocation2 + $0x38] sm:$0xff]
    %v344 = vld [vmem:[#allocation2 + $0x40] sm:$0xff]
    %v345 = vld [vmem:[#allocation2 + $0x48] sm:$0xff]
    %v346 = vld [vmem:[#allocation2 + $0x50] sm:$0xff]
    %v347 = vld [vmem:[#allocation2 + $0x58] sm:$0xff]
    %v348 = vld [vmem:[#allocation2 + $0x60] sm:$0xff]
    %v349 = vld [vmem:[#allocation2 + $0x68] sm:$0xff]
    %v350 = vld [vmem:[#allocation2 + $0x70] sm:$0xff]
    %v351 = vld [vmem:[#allocation2 + $0x78] sm:$0xff]
    %352 = vmatprep.subr.mxu0 0.0
    %353 = vmatpush1.msra.mxu0 %v336
    %354 = vmatprep.subr.mxu0 0.0
    %355 = vmatpush1.msra.mxu0 %v337
    %356 = vmatprep.subr.mxu0 0.0
    %357 = vmatpush1.msra.mxu0 %v338
    %358 = vmatprep.subr.mxu0 0.0
    %359 = vmatpush1.msra.mxu0 %v339
    %360 = vmatprep.subr.mxu0 0.0
    %361 = vmatpush1.msra.mxu0 %v340
    %362 = vmatprep.subr.mxu0 0.0
    %363 = vmatpush1.msra.mxu0 %v341
    %364 = vmatprep.subr.mxu0 0.0
    %365 = vmatpush1.msra.mxu0 %v342
    %366 = vmatprep.subr.mxu0 0.0
    %367 = vmatpush1.msra.mxu0 %v343
    %368 = vmatprep.subr.mxu0 0.0
    %369 = vmatpush1.msra.mxu0 %v344
    %370 = vmatprep.subr.mxu0 0.0
    %371 = vmatpush1.msra.mxu0 %v345
    %372 = vmatprep.subr.mxu0 0.0
    %373 = vmatpush1.msra.mxu0 %v346
    %374 = vmatprep.subr.mxu0 0.0
    %375 = vmatpush1.msra.mxu0 %v347
    %376 = vmatprep.subr.mxu0 0.0
    %377 = vmatpush1.msra.mxu0 %v348
    %378 = vmatprep.subr.mxu0 0.0
    %379 = vmatpush1.msra.mxu0 %v349
    %380 = vmatprep.subr.mxu0 0.0
    %381 = vmatpush1.msra.mxu0 %v350
    %382 = vmatprep.subr.mxu0 0.0
    %383 = vmatpush1.msra.mxu0 %v351
    %384 = vmatprep.subr.mxu0 0.0
    %385 = vmatpush1.msra.mxu0 0.0
    %386 = vmatprep.subr.mxu0 0.0
    %387 = vmatpush1.msra.mxu0 0.0
    %388 = vmatprep.subr.mxu0 0.0
    %389 = vmatpush1.msra.mxu0 0.0
    %390 = vmatprep.subr.mxu0 0.0
    %391 = vmatpush1.msra.mxu0 0.0
    %392 = vmatprep.subr.mxu0 0.0
    %393 = vmatpush1.msra.mxu0 0.0
    %394 = vmatprep.subr.mxu0 0.0
    %395 = vmatpush1.msra.mxu0 0.0
    %396 = vmatprep.subr.mxu0 0.0
    %397 = vmatpush1.msra.mxu0 0.0
    %398 = vmatprep.subr.mxu0 0.0
    %399 = vmatpush1.msra.mxu0 0.0
    %400 = vmatprep.subr.mxu0 0.0
    %401 = vmatpush1.msra.mxu0 0.0
    %402 = vmatprep.subr.mxu0 0.0
    %403 = vmatpush1.msra.mxu0 0.0
    %404 = vmatprep.subr.mxu0 0.0
    %405 = vmatpush1.msra.mxu0 0.0
    %406 = vmatprep.subr.mxu0 0.0
    %407 = vmatpush1.msra.mxu0 0.0
    %408 = vmatprep.subr.mxu0 0.0
    %409 = vmatpush1.msra.mxu0 0.0
    %410 = vmatprep.subr.mxu0 0.0
    %411 = vmatpush1.msra.mxu0 0.0
    %412 = vmatprep.subr.mxu0 0.0
    %413 = vmatpush1.msra.mxu0 0.0
    %414 = vmatprep.subr.mxu0 0.0
    %415 = vmatpush1.msra.mxu0 0.0
    %416 = vmatprep.mubr.f32.mxu0 0.0
    %417 = vmatmul.mubr.f32.gmra.mrb[0].mxu0 %v175
    %v418 = vpop.f32.mrb[0].mxu0
    %v419 = vadd.f32 0.0, %v418
    %v420 = vpop.f32.mrb[0].mxu0
    %421 = vmatprep.mubr.f32.mxu0 0.0
    %422 = vmatmul.mubr.f32.gmra.mrb[0].mxu0 %v180
    %v423 = vpop.f32.mrb[0].mxu0
    %v424 = vadd.f32 0.0, %v423
    %v425 = vpop.f32.mrb[0].mxu0
    %426 = vdwg.mxu0
    %v427 = vld [vmem:[%s4] sm:$0x1]
    %v429 = vlaneseq
    %v430 = vshrl.u32 %v429, 7
    %v431 = vsub.s32 0, %v430
    %v432 = vrot.slane %v427, %v431
    %v435 = vsel %vm72, %v70, 0
    %v438 = vsel %vm72, %v71, 0
    %440 = vmatprep.subr.mxu0 0.0
    %441 = vmatpush1.msra.mxu0 %v419
    %442 = vmatprep.subr.mxu0 0.0
    %443 = vmatpush1.msra.mxu0 %v424
    %444 = vmatprep.subr.mxu0 0.0
    %445 = vmatpush1.msra.mxu0 0.0
    %446 = vmatprep.subr.mxu0 0.0
    %447 = vmatpush1.msra.mxu0 0.0
    %448 = vmatprep.subr.mxu0 0.0
    %449 = vmatpush1.msra.mxu0 0.0
    %450 = vmatprep.subr.mxu0 0.0
    %451 = vmatpush1.msra.mxu0 0.0
    %452 = vmatprep.subr.mxu0 0.0
    %453 = vmatpush1.msra.mxu0 0.0
    %454 = vmatprep.subr.mxu0 0.0
    %455 = vmatpush1.msra.mxu0 0.0
    %456 = vmatprep.subr.mxu0 0.0
    %457 = vmatpush1.msra.mxu0 0.0
    %458 = vmatprep.subr.mxu0 0.0
    %459 = vmatpush1.msra.mxu0 0.0
    %460 = vmatprep.subr.mxu0 0.0
    %461 = vmatpush1.msra.mxu0 0.0
    %462 = vmatprep.subr.mxu0 0.0
    %463 = vmatpush1.msra.mxu0 0.0
    %464 = vmatprep.subr.mxu0 0.0
    %465 = vmatpush1.msra.mxu0 0.0
    %466 = vmatprep.subr.mxu0 0.0
    %467 = vmatpush1.msra.mxu0 0.0
    %468 = vmatprep.subr.mxu0 0.0
    %469 = vmatpush1.msra.mxu0 0.0
    %470 = vmatprep.subr.mxu0 0.0
    %471 = vmatpush1.msra.mxu0 0.0
    %472 = vmatprep.subr.mxu0 0.0
    %473 = vmatpush1.msra.mxu0 0.0
    %474 = vmatprep.subr.mxu0 0.0
    %475 = vmatpush1.msra.mxu0 0.0
    %476 = vmatprep.subr.mxu0 0.0
    %477 = vmatpush1.msra.mxu0 0.0
    %478 = vmatprep.subr.mxu0 0.0
    %479 = vmatpush1.msra.mxu0 0.0
    %480 = vmatprep.subr.mxu0 0.0
    %481 = vmatpush1.msra.mxu0 0.0
    %482 = vmatprep.subr.mxu0 0.0
    %483 = vmatpush1.msra.mxu0 0.0
    %484 = vmatprep.subr.mxu0 0.0
    %485 = vmatpush1.msra.mxu0 0.0
    %486 = vmatprep.subr.mxu0 0.0
    %487 = vmatpush1.msra.mxu0 0.0
    %488 = vmatprep.subr.mxu0 0.0
    %489 = vmatpush1.msra.mxu0 0.0
    %490 = vmatprep.subr.mxu0 0.0
    %491 = vmatpush1.msra.mxu0 0.0
    %492 = vmatprep.subr.mxu0 0.0
    %493 = vmatpush1.msra.mxu0 0.0
    %494 = vmatprep.subr.mxu0 0.0
    %495 = vmatpush1.msra.mxu0 0.0
    %496 = vmatprep.subr.mxu0 0.0
    %497 = vmatpush1.msra.mxu0 0.0
    %498 = vmatprep.subr.mxu0 0.0
    %499 = vmatpush1.msra.mxu0 0.0
    %500 = vmatprep.subr.mxu0 0.0
    %501 = vmatpush1.msra.mxu0 0.0
    %502 = vmatprep.subr.mxu0 0.0
    %503 = vmatpush1.msra.mxu0 0.0
    %504 = vmatprep.mubr.f32.mxu0 0.0
    %505 = vmatmul.mubr.f32.gmra.mrb[0].mxu0 %v435
    %v506 = vpop.f32.mrb[0].mxu0
    %v507 = vadd.f32 %v432, %v506
    %v508 = vpop.f32.mrb[0].mxu0
    %509 = vmatprep.mubr.f32.mxu0 0.0
    %510 = vmatmul.mubr.f32.gmra.mrb[0].mxu0 %v438
    %v511 = vpop.f32.mrb[0].mxu0
    %v512 = vadd.f32 %v432, %v511
    %v513 = vpop.f32.mrb[0].mxu0
    %514 = vdwg.mxu0
    %v515 = vmax.f32 %v507, 0.0
    %v516 = vmax.f32 %v512, 0.0
    %517 = vst [vmem:[%s8] sm:$0xff] %v515
    %518 = vst [vmem:[%s8 + $0x8] sm:$0xff] %v516
    %v519 = vmul.f32 %v515, %v515
    %v520 = vmul.f32 %v516, %v516
    %v521 = vadd.f32 %v519, %v520
    %522 = vadd.xlane.f32.xlu0 %v521
    %v523 = vpop.xlane.xlu0 %522
    %v524 = vrot.slane %v523, 4
    %v525 = vadd.f32 %v523, %v524
    %v526 = vrot.slane %v525, 2
    %v527 = vadd.f32 %v525, %v526
    %v528 = vrot.slane %v527, 1
    %v529 = vadd.f32 %v527, %v528
    %s530 = vtos %v529
    %v531 = vstv %s530
    %v532 = vrsqrt.pop %v531
    %s533 = vtos %v532
    %v534 = vstv %s533
    %v535 = vmul.f32 %v515, %v534
    %v536 = vmul.f32 %v516, %v534
    %v537 = vmul.f32 %v535, %v535
    %v538 = vmul.f32 %v536, %v536
    %539 = vadd.xlane.f32.xlu0 %v537
    %v540 = vpop.xlane.xlu0 %539
    %541 = vadd.xlane.f32.xlu0 %v538
    %v542 = vpop.xlane.xlu0 %541
    %v543 = vmul.f32 %v89, %v540
    %v544 = vmul.f32 %v90, %v542
    %v545 = vsel %vm209, %v543, 0.0
    %v546 = vsel %vm209, %v544, 0.0
    %v547 = vadd.f32 %v545, %v546
    %548 = vadd.xlane.f32.xlu0 %v547
    %v549 = vpop.xlane.xlu0 %548
    %v550 = vrot.slane %v549, 4
    %v551 = vadd.f32 %v549, %v550
    %v552 = vrot.slane %v551, 2
    %v553 = vadd.f32 %v551, %v552
    %v554 = vrot.slane %v553, 1
    %v555 = vadd.f32 %v553, %v554
    %s556 = vtos %v555
    %v557 = vmul.f32 %v225, %v535
    %v558 = vmul.f32 %v230, %v536
    %559 = vmatprep.subr.mxu0 %v557
    %560 = vmatpush1.msra.mxu0 %v535
    %561 = vmatprep.subr.mxu0 %v558
    %562 = vmatpush1.msra.mxu0 %v536
    %563 = vmatprep.subr.mxu0 0.0
    %564 = vmatpush1.msra.mxu0 0.0
    %565 = vmatprep.subr.mxu0 0.0
    %566 = vmatpush1.msra.mxu0 0.0
    %567 = vmatprep.subr.mxu0 0.0
    %568 = vmatpush1.msra.mxu0 0.0
    %569 = vmatprep.subr.mxu0 0.0
    %570 = vmatpush1.msra.mxu0 0.0
    %571 = vmatprep.subr.mxu0 0.0
    %572 = vmatpush1.msra.mxu0 0.0
    %573 = vmatprep.subr.mxu0 0.0
    %574 = vmatpush1.msra.mxu0 0.0
    %575 = vmatprep.subr.mxu0 0.0
    %576 = vmatpush1.msra.mxu0 0.0
    %577 = vmatprep.subr.mxu0 0.0
    %578 = vmatpush1.msra.mxu0 0.0
    %579 = vmatprep.subr.mxu0 0.0
    %580 = vmatpush1.msra.mxu0 0.0
    %581 = vmatprep.subr.mxu0 0.0
    %582 = vmatpush1.msra.mxu0 0.0
    %583 = vmatprep.subr.mxu0 0.0
    %584 = vmatpush1.msra.mxu0 0.0
    %585 = vmatprep.subr.mxu0 0.0
    %586 = vmatpush1.msra.mxu0 0.0
    %587 = vmatprep.subr.mxu0 0.0
    %588 = vmatpush1.msra.mxu0 0.0
    %589 = vmatprep.subr.mxu0 0.0
    %590 = vmatpush1.msra.mxu0 0.0
    %591 = vmatprep.subr.mxu0 0.0
    %592 = vmatpush1.msra.mxu0 0.0
    %593 = vmatprep.subr.mxu0 0.0
    %594 = vmatpush1.msra.mxu0 0.0
    %595 = vmatprep.subr.mxu0 0.0
    %596 = vmatpush1.msra.mxu0 0.0
    %597 = vmatprep.subr.mxu0 0.0
    %598 = vmatpush1.msra.mxu0 0.0
    %599 = vmatprep.subr.mxu0 0.0
    %600 = vmatpush1.msra.mxu0 0.0
    %601 = vmatprep.subr.mxu0 0.0
    %602 = vmatpush1.msra.mxu0 0.0
    %603 = vmatprep.subr.mxu0 0.0
    %604 = vmatpush1.msra.mxu0 0.0
    %605 = vmatprep.subr.mxu0 0.0
    %606 = vmatpush1.msra.mxu0 0.0
    %607 = vmatprep.subr.mxu0 0.0
    %608 = vmatpush1.msra.mxu0 0.0
    %609 = vmatprep.subr.mxu0 0.0
    %610 = vmatpush1.msra.mxu0 0.0
    %611 = vmatprep.subr.mxu0 0.0
    %612 = vmatpush1.msra.mxu0 0.0
    %613 = vmatprep.subr.mxu0 0.0
    %614 = vmatpush1.msra.mxu0 0.0
    %615 = vmatprep.subr.mxu0 0.0
    %616 = vmatpush1.msra.mxu0 0.0
    %617 = vmatprep.subr.mxu0 0.0
    %618 = vmatpush1.msra.mxu0 0.0
    %619 = vmatprep.subr.mxu0 0.0
    %620 = vmatpush1.msra.mxu0 0.0
    %621 = vmatprep.subr.mxu0 0.0
    %622 = vmatpush1.msra.mxu0 0.0
    %623 = vmatprep.mubr.f32.mxu0 0.0
    %624 = vmatmul.mubr.f32.gmra.mrb[0].mxu0 %v235
    %v625 = vpop.f32.mrb[0].mxu0
    %v626 = vadd.f32 0.0, %v625
    %v627 = vpop.f32.mrb[0].mxu0
    %v628 = vadd.f32 0.0, %v627
    %629 = vmatprep.mubr.f32.mxu0 0.0
    %630 = vmatmul.mubr.f32.gmra.mrb[0].mxu0 %v238
    %v631 = vpop.f32.mrb[0].mxu0
    %v632 = vadd.f32 0.0, %v631
    %v633 = vpop.f32.mrb[0].mxu0
    %v634 = vadd.f32 0.0, %v633
    %635 = vdwg.mxu0
    %v636 = vmul.f32 %v626, %v535
    %v637 = vmul.f32 %v632, %v536
    %v638 = vadd.f32 %v636, %v637
    %639 = vadd.xlane.f32.xlu0 %v638
    %v640 = vpop.xlane.xlu0 %639
    %v641 = vrot.slane %v640, 4
    %v642 = vadd.f32 %v640, %v641
    %v643 = vrot.slane %v642, 2
    %v644 = vadd.f32 %v642, %v643
    %v645 = vrot.slane %v644, 1
    %v646 = vadd.f32 %v644, %v645
    %s647 = vtos %v646
    %v648 = vmul.f32 %v225, %v628
    %v649 = vmul.f32 %v230, %v634
    %v650 = vmul.f32 %v648, %v535
    %v651 = vmul.f32 %v649, %v536
    %v652 = vadd.f32 %v650, %v651
    %653 = vadd.xlane.f32.xlu0 %v652
    %v654 = vpop.xlane.xlu0 %653
    %v655 = vrot.slane %v654, 4
    %v656 = vadd.f32 %v654, %v655
    %v657 = vrot.slane %v656, 2
    %v658 = vadd.f32 %v656, %v657
    %v659 = vrot.slane %v658, 1
    %v660 = vadd.f32 %v658, %v659
    %s661 = vtos %v660
    %v662 = vmul.f32 %v75, %v540
    %v663 = vmul.f32 %v78, %v542
    %v664 = vsel %vm209, %v662, 0.0
    %v665 = vsel %vm209, %v663, 0.0
    %v666 = vadd.f32 %v664, %v665
    %667 = vadd.xlane.f32.xlu0 %v666
    %v668 = vpop.xlane.xlu0 %667
    %v669 = vrot.slane %v668, 4
    %v670 = vadd.f32 %v668, %v669
    %v671 = vrot.slane %v670, 2
    %v672 = vadd.f32 %v670, %v671
    %v673 = vrot.slane %v672, 1
    %v674 = vadd.f32 %v672, %v673
    %s675 = vtos %v674
    %s676 = ssub.f32 %s675, %s647
    %s677 = ssub.f32 %s556, %s661
    %v678 = vstv %s676
    %v679 = vsel %vm332, %v678, 0.0
    %v680 = vadd.f32 %v679, 0.0
    %vm681 = vcmp.eq.s32.totalorder %v331, 1
    %v682 = vstv %s677
    %v683 = vsel %vm681, %v682, 0.0
    %v684 = vadd.f32 %v680, %v683
    %s685 = scalar_lea.vmem [#allocation2], 128
    %v686 = vld [vmem:[%s685] sm:$0xff]
    %v687 = vld [vmem:[%s685 + $0x8] sm:$0xff]
    %v688 = vld [vmem:[%s685 + $0x10] sm:$0xff]
    %v689 = vld [vmem:[%s685 + $0x18] sm:$0xff]
    %v690 = vld [vmem:[%s685 + $0x20] sm:$0xff]
    %v691 = vld [vmem:[%s685 + $0x28] sm:$0xff]
    %v692 = vld [vmem:[%s685 + $0x30] sm:$0xff]
    %v693 = vld [vmem:[%s685 + $0x38] sm:$0xff]
    %v694 = vld [vmem:[%s685 + $0x40] sm:$0xff]
    %v695 = vld [vmem:[%s685 + $0x48] sm:$0xff]
    %v696 = vld [vmem:[%s685 + $0x50] sm:$0xff]
    %v697 = vld [vmem:[%s685 + $0x58] sm:$0xff]
    %v698 = vld [vmem:[%s685 + $0x60] sm:$0xff]
    %v699 = vld [vmem:[%s685 + $0x68] sm:$0xff]
    %v700 = vld [vmem:[%s685 + $0x70] sm:$0xff]
    %v701 = vld [vmem:[%s685 + $0x78] sm:$0xff]
    %702 = vmatprep.subr.mxu0 0.0
    %703 = vmatpush1.msra.mxu0 %v686
    %704 = vmatprep.subr.mxu0 0.0
    %705 = vmatpush1.msra.mxu0 %v687
    %706 = vmatprep.subr.mxu0 0.0
    %707 = vmatpush1.msra.mxu0 %v688
    %708 = vmatprep.subr.mxu0 0.0
    %709 = vmatpush1.msra.mxu0 %v689
    %710 = vmatprep.subr.mxu0 0.0
    %711 = vmatpush1.msra.mxu0 %v690
    %712 = vmatprep.subr.mxu0 0.0
    %713 = vmatpush1.msra.mxu0 %v691
    %714 = vmatprep.subr.mxu0 0.0
    %715 = vmatpush1.msra.mxu0 %v692
    %716 = vmatprep.subr.mxu0 0.0
    %717 = vmatpush1.msra.mxu0 %v693
    %718 = vmatprep.subr.mxu0 0.0
    %719 = vmatpush1.msra.mxu0 %v694
    %720 = vmatprep.subr.mxu0 0.0
    %721 = vmatpush1.msra.mxu0 %v695
    %722 = vmatprep.subr.mxu0 0.0
    %723 = vmatpush1.msra.mxu0 %v696
    %724 = vmatprep.subr.mxu0 0.0
    %725 = vmatpush1.msra.mxu0 %v697
    %726 = vmatprep.subr.mxu0 0.0
    %727 = vmatpush1.msra.mxu0 %v698
    %728 = vmatprep.subr.mxu0 0.0
    %729 = vmatpush1.msra.mxu0 %v699
    %730 = vmatprep.subr.mxu0 0.0
    %731 = vmatpush1.msra.mxu0 %v700
    %732 = vmatprep.subr.mxu0 0.0
    %733 = vmatpush1.msra.mxu0 %v701
    %734 = vmatprep.subr.mxu0 0.0
    %735 = vmatpush1.msra.mxu0 0.0
    %736 = vmatprep.subr.mxu0 0.0
    %737 = vmatpush1.msra.mxu0 0.0
    %738 = vmatprep.subr.mxu0 0.0
    %739 = vmatpush1.msra.mxu0 0.0
    %740 = vmatprep.subr.mxu0 0.0
    %741 = vmatpush1.msra.mxu0 0.0
    %742 = vmatprep.subr.mxu0 0.0
    %743 = vmatpush1.msra.mxu0 0.0
    %744 = vmatprep.subr.mxu0 0.0
    %745 = vmatpush1.msra.mxu0 0.0
    %746 = vmatprep.subr.mxu0 0.0
    %747 = vmatpush1.msra.mxu0 0.0
    %748 = vmatprep.subr.mxu0 0.0
    %749 = vmatpush1.msra.mxu0 0.0
    %750 = vmatprep.subr.mxu0 0.0
    %751 = vmatpush1.msra.mxu0 0.0
    %752 = vmatprep.subr.mxu0 0.0
    %753 = vmatpush1.msra.mxu0 0.0
    %754 = vmatprep.subr.mxu0 0.0
    %755 = vmatpush1.msra.mxu0 0.0
    %756 = vmatprep.subr.mxu0 0.0
    %757 = vmatpush1.msra.mxu0 0.0
    %758 = vmatprep.subr.mxu0 0.0
    %759 = vmatpush1.msra.mxu0 0.0
    %760 = vmatprep.subr.mxu0 0.0
    %761 = vmatpush1.msra.mxu0 0.0
    %762 = vmatprep.subr.mxu0 0.0
    %763 = vmatpush1.msra.mxu0 0.0
    %764 = vmatprep.subr.mxu0 0.0
    %765 = vmatpush1.msra.mxu0 0.0
    %766 = vmatprep.mubr.f32.mxu0 0.0
    %767 = vmatmul.mubr.f32.gmra.mrb[0].mxu0 %v515
    %v768 = vpop.f32.mrb[0].mxu0
    %v769 = vadd.f32 0.0, %v768
    %v770 = vpop.f32.mrb[0].mxu0
    %771 = vmatprep.mubr.f32.mxu0 0.0
    %772 = vmatmul.mubr.f32.gmra.mrb[0].mxu0 %v516
    %v773 = vpop.f32.mrb[0].mxu0
    %v774 = vadd.f32 0.0, %v773
    %v775 = vpop.f32.mrb[0].mxu0
    %776 = vdwg.mxu0
    %s777 = scalar_lea.vmem %s4, 1
    %v778 = vld [vmem:[%s777] sm:$0x1]
    %v780 = vlaneseq
    %v781 = vshrl.u32 %v780, 7
    %v782 = vsub.s32 0, %v781
    %v783 = vrot.slane %v778, %v782
    %785 = vmatprep.subr.mxu0 0.0
    %786 = vmatpush1.msra.mxu0 %v769
    %787 = vmatprep.subr.mxu0 0.0
    %788 = vmatpush1.msra.mxu0 %v774
    %789 = vmatprep.subr.mxu0 0.0
    %790 = vmatpush1.msra.mxu0 0.0
    %791 = vmatprep.subr.mxu0 0.0
    %792 = vmatpush1.msra.mxu0 0.0
    %793 = vmatprep.subr.mxu0 0.0
    %794 = vmatpush1.msra.mxu0 0.0
    %795 = vmatprep.subr.mxu0 0.0
    %796 = vmatpush1.msra.mxu0 0.0
    %797 = vmatprep.subr.mxu0 0.0
    %798 = vmatpush1.msra.mxu0 0.0
    %799 = vmatprep.subr.mxu0 0.0
    %800 = vmatpush1.msra.mxu0 0.0
    %801 = vmatprep.subr.mxu0 0.0
    %802 = vmatpush1.msra.mxu0 0.0
    %803 = vmatprep.subr.mxu0 0.0
    %804 = vmatpush1.msra.mxu0 0.0
    %805 = vmatprep.subr.mxu0 0.0
    %806 = vmatpush1.msra.mxu0 0.0
    %807 = vmatprep.subr.mxu0 0.0
    %808 = vmatpush1.msra.mxu0 0.0
    %809 = vmatprep.subr.mxu0 0.0
    %810 = vmatpush1.msra.mxu0 0.0
    %811 = vmatprep.subr.mxu0 0.0
    %812 = vmatpush1.msra.mxu0 0.0
    %813 = vmatprep.subr.mxu0 0.0
    %814 = vmatpush1.msra.mxu0 0.0
    %815 = vmatprep.subr.mxu0 0.0
    %816 = vmatpush1.msra.mxu0 0.0
    %817 = vmatprep.subr.mxu0 0.0
    %818 = vmatpush1.msra.mxu0 0.0
    %819 = vmatprep.subr.mxu0 0.0
    %820 = vmatpush1.msra.mxu0 0.0
    %821 = vmatprep.subr.mxu0 0.0
    %822 = vmatpush1.msra.mxu0 0.0
    %823 = vmatprep.subr.mxu0 0.0
    %824 = vmatpush1.msra.mxu0 0.0
    %825 = vmatprep.subr.mxu0 0.0
    %826 = vmatpush1.msra.mxu0 0.0
    %827 = vmatprep.subr.mxu0 0.0
    %828 = vmatpush1.msra.mxu0 0.0
    %829 = vmatprep.subr.mxu0 0.0
    %830 = vmatpush1.msra.mxu0 0.0
    %831 = vmatprep.subr.mxu0 0.0
    %832 = vmatpush1.msra.mxu0 0.0
    %833 = vmatprep.subr.mxu0 0.0
    %834 = vmatpush1.msra.mxu0 0.0
    %835 = vmatprep.subr.mxu0 0.0
    %836 = vmatpush1.msra.mxu0 0.0
    %837 = vmatprep.subr.mxu0 0.0
    %838 = vmatpush1.msra.mxu0 0.0
    %839 = vmatprep.subr.mxu0 0.0
    %840 = vmatpush1.msra.mxu0 0.0
    %841 = vmatprep.subr.mxu0 0.0
    %842 = vmatpush1.msra.mxu0 0.0
    %843 = vmatprep.subr.mxu0 0.0
    %844 = vmatpush1.msra.mxu0 0.0
    %845 = vmatprep.subr.mxu0 0.0
    %846 = vmatpush1.msra.mxu0 0.0
    %847 = vmatprep.subr.mxu0 0.0
    %848 = vmatpush1.msra.mxu0 0.0
    %849 = vmatprep.mubr.f32.mxu0 0.0
    %850 = vmatmul.mubr.f32.gmra.mrb[0].mxu0 %v435
    %v851 = vpop.f32.mrb[0].mxu0
    %v852 = vadd.f32 %v783, %v851
    %v853 = vpop.f32.mrb[0].mxu0
    %854 = vmatprep.mubr.f32.mxu0 0.0
    %855 = vmatmul.mubr.f32.gmra.mrb[0].mxu0 %v438
    %v856 = vpop.f32.mrb[0].mxu0
    %v857 = vadd.f32 %v783, %v856
    %v858 = vpop.f32.mrb[0].mxu0
    %859 = vdwg.mxu0
    %v860 = vmax.f32 %v852, 0.0
    %v861 = vmax.f32 %v857, 0.0
    %s862 = scalar_lea.vmem %s8, 16
    %863 = vst [vmem:[%s862] sm:$0xff] %v860
    %864 = vst [vmem:[%s862 + $0x8] sm:$0xff] %v861
    %v865 = vmul.f32 %v860, %v860
    %v866 = vmul.f32 %v861, %v861
    %v867 = vadd.f32 %v865, %v866
    %868 = vadd.xlane.f32.xlu0 %v867
    %v869 = vpop.xlane.xlu0 %868
    %v870 = vrot.slane %v869, 4
    %v871 = vadd.f32 %v869, %v870
    %v872 = vrot.slane %v871, 2
    %v873 = vadd.f32 %v871, %v872
    %v874 = vrot.slane %v873, 1
    %v875 = vadd.f32 %v873, %v874
    %s876 = vtos %v875
    %v877 = vstv %s876
    %v878 = vrsqrt.pop %v877
    %s879 = vtos %v878
    %v880 = vstv %s879
    %v881 = vmul.f32 %v860, %v880
    %v882 = vmul.f32 %v861, %v880
    %v883 = vmul.f32 %v881, %v881
    %v884 = vmul.f32 %v882, %v882
    %885 = vadd.xlane.f32.xlu0 %v883
    %v886 = vpop.xlane.xlu0 %885
    %887 = vadd.xlane.f32.xlu0 %v884
    %v888 = vpop.xlane.xlu0 %887
    %v889 = vmul.f32 %v89, %v886
    %v890 = vmul.f32 %v90, %v888
    %v891 = vsel %vm209, %v889, 0.0
    %v892 = vsel %vm209, %v890, 0.0
    %v893 = vadd.f32 %v891, %v892
    %894 = vadd.xlane.f32.xlu0 %v893
    %v895 = vpop.xlane.xlu0 %894
    %v896 = vrot.slane %v895, 4
    %v897 = vadd.f32 %v895, %v896
    %v898 = vrot.slane %v897, 2
    %v899 = vadd.f32 %v897, %v898
    %v900 = vrot.slane %v899, 1
    %v901 = vadd.f32 %v899, %v900
    %s902 = vtos %v901
    %v903 = vmul.f32 %v225, %v881
    %v904 = vmul.f32 %v230, %v882
    %905 = vmatprep.subr.mxu0 %v903
    %906 = vmatpush1.msra.mxu0 %v881
    %907 = vmatprep.subr.mxu0 %v904
    %908 = vmatpush1.msra.mxu0 %v882
    %909 = vmatprep.subr.mxu0 0.0
    %910 = vmatpush1.msra.mxu0 0.0
    %911 = vmatprep.subr.mxu0 0.0
    %912 = vmatpush1.msra.mxu0 0.0
    %913 = vmatprep.subr.mxu0 0.0
    %914 = vmatpush1.msra.mxu0 0.0
    %915 = vmatprep.subr.mxu0 0.0
    %916 = vmatpush1.msra.mxu0 0.0
    %917 = vmatprep.subr.mxu0 0.0
    %918 = vmatpush1.msra.mxu0 0.0
    %919 = vmatprep.subr.mxu0 0.0
    %920 = vmatpush1.msra.mxu0 0.0
    %921 = vmatprep.subr.mxu0 0.0
    %922 = vmatpush1.msra.mxu0 0.0
    %923 = vmatprep.subr.mxu0 0.0
    %924 = vmatpush1.msra.mxu0 0.0
    %925 = vmatprep.subr.mxu0 0.0
    %926 = vmatpush1.msra.mxu0 0.0
    %927 = vmatprep.subr.mxu0 0.0
    %928 = vmatpush1.msra.mxu0 0.0
    %929 = vmatprep.subr.mxu0 0.0
    %930 = vmatpush1.msra.mxu0 0.0
    %931 = vmatprep.subr.mxu0 0.0
    %932 = vmatpush1.msra.mxu0 0.0
    %933 = vmatprep.subr.mxu0 0.0
    %934 = vmatpush1.msra.mxu0 0.0
    %935 = vmatprep.subr.mxu0 0.0
    %936 = vmatpush1.msra.mxu0 0.0
    %937 = vmatprep.subr.mxu0 0.0
    %938 = vmatpush1.msra.mxu0 0.0
    %939 = vmatprep.subr.mxu0 0.0
    %940 = vmatpush1.msra.mxu0 0.0
    %941 = vmatprep.subr.mxu0 0.0
    %942 = vmatpush1.msra.mxu0 0.0
    %943 = vmatprep.subr.mxu0 0.0
    %944 = vmatpush1.msra.mxu0 0.0
    %945 = vmatprep.subr.mxu0 0.0
    %946 = vmatpush1.msra.mxu0 0.0
    %947 = vmatprep.subr.mxu0 0.0
    %948 = vmatpush1.msra.mxu0 0.0
    %949 = vmatprep.subr.mxu0 0.0
    %950 = vmatpush1.msra.mxu0 0.0
    %951 = vmatprep.subr.mxu0 0.0
    %952 = vmatpush1.msra.mxu0 0.0
    %953 = vmatprep.subr.mxu0 0.0
    %954 = vmatpush1.msra.mxu0 0.0
    %955 = vmatprep.subr.mxu0 0.0
    %956 = vmatpush1.msra.mxu0 0.0
    %957 = vmatprep.subr.mxu0 0.0
    %958 = vmatpush1.msra.mxu0 0.0
    %959 = vmatprep.subr.mxu0 0.0
    %960 = vmatpush1.msra.mxu0 0.0
    %961 = vmatprep.subr.mxu0 0.0
    %962 = vmatpush1.msra.mxu0 0.0
    %963 = vmatprep.subr.mxu0 0.0
    %964 = vmatpush1.msra.mxu0 0.0
    %965 = vmatprep.subr.mxu0 0.0
    %966 = vmatpush1.msra.mxu0 0.0
    %967 = vmatprep.subr.mxu0 0.0
    %968 = vmatpush1.msra.mxu0 0.0
    %969 = vmatprep.mubr.f32.mxu0 0.0
    %970 = vmatmul.mubr.f32.gmra.mrb[0].mxu0 %v235
    %v971 = vpop.f32.mrb[0].mxu0
    %v972 = vadd.f32 0.0, %v971
    %v973 = vpop.f32.mrb[0].mxu0
    %v974 = vadd.f32 0.0, %v973
    %975 = vmatprep.mubr.f32.mxu0 0.0
    %976 = vmatmul.mubr.f32.gmra.mrb[0].mxu0 %v238
    %v977 = vpop.f32.mrb[0].mxu0
    %v978 = vadd.f32 0.0, %v977
    %v979 = vpop.f32.mrb[0].mxu0
    %v980 = vadd.f32 0.0, %v979
    %981 = vdwg.mxu0
    %v982 = vmul.f32 %v972, %v881
    %v983 = vmul.f32 %v978, %v882
    %v984 = vadd.f32 %v982, %v983
    %985 = vadd.xlane.f32.xlu0 %v984
    %v986 = vpop.xlane.xlu0 %985
    %v987 = vrot.slane %v986, 4
    %v988 = vadd.f32 %v986, %v987
    %v989 = vrot.slane %v988, 2
    %v990 = vadd.f32 %v988, %v989
    %v991 = vrot.slane %v990, 1
    %v992 = vadd.f32 %v990, %v991
    %s993 = vtos %v992
    %v994 = vmul.f32 %v225, %v974
    %v995 = vmul.f32 %v230, %v980
    %v996 = vmul.f32 %v994, %v881
    %v997 = vmul.f32 %v995, %v882
    %v998 = vadd.f32 %v996, %v997
    %999 = vadd.xlane.f32.xlu0 %v998
    %v1000 = vpop.xlane.xlu0 %999
    %v1001 = vrot.slane %v1000, 4
    %v1002 = vadd.f32 %v1000, %v1001
    %v1003 = vrot.slane %v1002, 2
    %v1004 = vadd.f32 %v1002, %v1003
    %v1005 = vrot.slane %v1004, 1
    %v1006 = vadd.f32 %v1004, %v1005
    %s1007 = vtos %v1006
    %v1008 = vmul.f32 %v75, %v886
    %v1009 = vmul.f32 %v78, %v888
    %v1010 = vsel %vm209, %v1008, 0.0
    %v1011 = vsel %vm209, %v1009, 0.0
    %v1012 = vadd.f32 %v1010, %v1011
    %1013 = vadd.xlane.f32.xlu0 %v1012
    %v1014 = vpop.xlane.xlu0 %1013
    %v1015 = vrot.slane %v1014, 4
    %v1016 = vadd.f32 %v1014, %v1015
    %v1017 = vrot.slane %v1016, 2
    %v1018 = vadd.f32 %v1016, %v1017
    %v1019 = vrot.slane %v1018, 1
    %v1020 = vadd.f32 %v1018, %v1019
    %s1021 = vtos %v1020
    %s1022 = ssub.f32 %s1021, %s993
    %s1023 = ssub.f32 %s902, %s1007
    %v1024 = vstv %s1022
    %v1025 = vsel %vm332, %v1024, 0.0
    %v1026 = vadd.f32 %v1025, 0.0
    %v1027 = vstv %s1023
    %v1028 = vsel %vm681, %v1027, 0.0
    %v1029 = vadd.f32 %v1026, %v1028
    %vm1030 = vcmask 1040384
    %v1031 = vsel %vm1030, %v335, %v684
    %vm1032 = vcmask 1041408
    %v1033 = vsel %vm1032, %v1031, %v1029
    %1034 = vst [vmem:[%s9] sm:$0x7] %v1033
    // Predicated region
    $region38: #{_forward_impl.1} parent=1 // pred_check
      _
    $region39: #{_forward_impl.1} parent=1 // pred_check_branch
      %1036 = sbr.rel (0) target = $region41
    $region40: #{_forward_impl.1} parent=1 // pred_region
      _
    $region41: #{_forward_impl.1} parent=1 // pred_fallthru
      _
    // Predicated region
    $region42: #{_forward_impl.1} parent=1 // pred_check
      _
    $region43: #{_forward_impl.1} parent=1 // pred_check_branch
      %1038 = sbr.rel (0) target = $region45
    $region44: #{_forward_impl.1} parent=1 // pred_region
      _
    $region45: #{_forward_impl.1} parent=1 // pred_fallthru
      _
    // Predicated region
    $region46: #{_forward_impl.1} parent=1 // pred_check
      _
    $region47: #{_forward_impl.1} parent=1 // pred_check_branch
      %1040 = sbr.rel (0) target = $region49
    $region48: #{_forward_impl.1} parent=1 // pred_region
      _
    $region49: #{_forward_impl.1} parent=1 // pred_fallthru
      _
    // Predicated region
    $region50: #{_forward_impl.1} parent=1 // pred_check
      _
    $region51: #{_forward_impl.1} parent=1 // pred_check_branch
      %1042 = sbr.rel (0) target = $region53
    $region52: #{_forward_impl.1} parent=1 // pred_region
      _
    $region53: #{_forward_impl.1} parent=1 // pred_fallthru
      _
    %1043 = vsyncpa [#allocation3], 1

// kernel: custom-call.109
$region0: #{custom-call.109}
  %s0 = inlined_call_operand.vmem [shape: f32[32,16], index: 0, kind: input, shape index: {}]
  %s1 = inlined_call_operand.vmem [shape: f32[32,16], index: 1, kind: output, shape index: {0}]
  %s2 = inlined_call_operand.hbm [shape: f32[16], index: 2, kind: output, shape index: {1}]
  %3 = xla_tuple %s1, %s2
  $region1: #{custom-call.109} parent=0
    #allocation0 [shape = 'u8[16384]{0}', space=vmem, size = 0x4000, scoped, tag = 'operand span for operand 0']
    #allocation1 [shape = 'u8[16384]{0}', space=vmem, size = 0x4000, scoped, tag = 'operand span for operand 1']
    #allocation2 [shape = 'u8[4096]{0}', space=vmem, size = 0x1000, scoped, tag = 'operand span for operand 2']
    #allocation3 [shape = 'u8[512]{0}', space=vmem, size = 0x400, scoped, tag = 'packed  for operand 2']
    #allocation4 [shape = 's32[1]{0}', space=sflag, size = 0x4, scoped, tag = 'scoped memory for custom-call.109']
    #allocation5 [shape = 'f32[32,128]{1,0}', space=vmem, size = 0x4000, scoped, tag = 'scratch for Householder reflectors']
    %4 = vsyncpa [#allocation4], 0
    // Predicated region
    $region2: #{custom-call.109} parent=1 // pred_check
      _
    $region3: #{custom-call.109} parent=1 // pred_check_branch
      %6 = sbr.rel (0) target = $region5
    $region4: #{custom-call.109} parent=1 // pred_region
      // Predicated region
      $region6: #{custom-call.109} parent=4 // pred_check
        _
      $region7: #{custom-call.109} parent=4 // pred_check_branch
        %8 = sbr.rel (0) target = $region9
      $region8: #{custom-call.109} parent=4 // pred_region
        // Predicated region
        $region21: #{custom-call.109} parent=8 // pred_check
          _
        $region22: #{custom-call.109} parent=8 // pred_check_branch
          %29 = sbr.rel (0) target = $region24
        $region23: #{custom-call.109} parent=8 // pred_region
          loop: start=0, step=1, limit=1
          $region25: #{custom-call.109} parent=23 // loop_pre_header
            _
          $region26: #{custom-call.109} parent=23 // loop_header
            %s31 = sphi 0, %s35
            %p32 = scmp.ge.s32.totalorder %s31, 1
            %s36 = sphi %s0, %s0
            %s37 = sphi [#allocation0], [#allocation0]
          $region27: #{custom-call.109} parent=23 // loop_header_branch
            %34 = sbr.rel (%p32) target = $region31
          $region28: #{custom-call.109} parent=23 // loop_body
            %v38 = vld [vmem:[%s36] sm:$0xff]
            %39 = vst [vmem:[%s37] sm:$0xff] %v38
            %v40 = vld [vmem:[%s36 + $0x8] sm:$0xff]
            %41 = vst [vmem:[%s37 + $0x8] sm:$0xff] %v40
            %v42 = vld [vmem:[%s36 + $0x10] sm:$0xff]
            %43 = vst [vmem:[%s37 + $0x10] sm:$0xff] %v42
            %v44 = vld [vmem:[%s36 + $0x18] sm:$0xff]
            %45 = vst [vmem:[%s37 + $0x18] sm:$0xff] %v44
          $region29: #{custom-call.109} parent=23 // loop_footer
            %s35 = sadd.s32 1, %s31
          $region30: #{custom-call.109} parent=23 // loop_footer_branch
            %30 = sbr.rel target = $region26
          $region31: #{custom-call.109} parent=23 // loop_exit
            _
        $region24: #{custom-call.109} parent=8 // pred_fallthru
          _
        // Predicated region
        $region32: #{custom-call.109} parent=8 // pred_check
          _
        $region33: #{custom-call.109} parent=8 // pred_check_branch
          %47 = sbr.rel target = $region35
        $region34: #{custom-call.109} parent=8 // pred_region
          _
        $region35: #{custom-call.109} parent=8 // pred_fallthru
          _
      $region9: #{custom-call.109} parent=4 // pred_fallthru
        _
      // Predicated region
      $region10: #{custom-call.109} parent=4 // pred_check
        _
      $region11: #{custom-call.109} parent=4 // pred_check_branch
        %10 = sbr.rel target = $region13
      $region12: #{custom-call.109} parent=4 // pred_region
        loop: start=0, step=1, limit=1
        $region14: #{custom-call.109} parent=12 // loop_pre_header
          _
        $region15: #{custom-call.109} parent=12 // loop_header
          %s13 = sphi 0, %s17
          %p14 = scmp.ge.s32.totalorder %s13, 1
          %s18 = sphi %s0, %s0
          %s19 = sphi [#allocation0], [#allocation0]
        $region16: #{custom-call.109} parent=12 // loop_header_branch
          %16 = sbr.rel (%p14) target = $region20
        $region17: #{custom-call.109} parent=12 // loop_body
          %v20 = vld [vmem:[%s18] sm:$0xff]
          %21 = vst [vmem:[%s19] sm:$0xff] %v20
          %v22 = vld [vmem:[%s18 + $0x8] sm:$0xff]
          %23 = vst [vmem:[%s19 + $0x8] sm:$0xff] %v22
          %v24 = vld [vmem:[%s18 + $0x10] sm:$0xff]
          %25 = vst [vmem:[%s19 + $0x10] sm:$0xff] %v24
          %v26 = vld [vmem:[%s18 + $0x18] sm:$0xff]
          %27 = vst [vmem:[%s19 + $0x18] sm:$0xff] %v26
        $region18: #{custom-call.109} parent=12 // loop_footer
          %s17 = sadd.s32 1, %s13
        $region19: #{custom-call.109} parent=12 // loop_footer_branch
          %12 = sbr.rel target = $region15
        $region20: #{custom-call.109} parent=12 // loop_exit
          _
      $region13: #{custom-call.109} parent=4 // pred_fallthru
        _
    $region5: #{custom-call.109} parent=1 // pred_fallthru
      _
    %48 = vnop
    %v49 = vld [vmem:[#allocation0] sm:$0xff]
    %50 = vst [vmem:[#allocation1] sm:$0xff] %v49
    %s51 = scalar_lea.vmem [#allocation1], 8
    %s52 = scalar_lea.vmem [#allocation0], 8
    %v53 = vld [vmem:[%s52] sm:$0xff]
    %54 = vst [vmem:[%s51] sm:$0xff] %v53
    %s55 = scalar_lea.vmem [#allocation1], 16
    %s56 = scalar_lea.vmem [#allocation0], 16
    %v57 = vld [vmem:[%s56] sm:$0xff]
    %58 = vst [vmem:[%s55] sm:$0xff] %v57
    %s59 = scalar_lea.vmem [#allocation1], 24
    %s60 = scalar_lea.vmem [#allocation0], 24
    %v61 = vld [vmem:[%s60] sm:$0xff]
    %62 = vst [vmem:[%s59] sm:$0xff] %v61
    %63 = vst [vmem:[#allocation2] sm:$0x1] 0.0
    loop: start=0, step=1, limit=16
    $region36: #{custom-call.109} parent=1 // loop_pre_header
      _
    $region37: #{custom-call.109} parent=1 // loop_header
      %s65 = sphi 0, %s69
      %p66 = scmp.ge.s32.totalorder %s65, 16
    $region38: #{custom-call.109} parent=1 // loop_header_branch
      %68 = sbr.rel (%p66) target = $region42
    $region39: #{custom-call.109} parent=1 // loop_body
      %v70 = vld [vmem:[#allocation1] sm:$0xff]
      %v71 = vlaneseq
      %v72 = vshrl.u32 %v71, 7
      %v74 = vstv %s65
      %vm75 = vcmp.gt.s32.totalorder %v72, %v74
      %v76 = vsel %vm75, %v70, 0.0
      %v77 = vmul.f32 %v76, %v76
      %s78 = scalar_lea.vmem [#allocation1], 8
      %v79 = vld [vmem:[%s78] sm:$0xff]
      %v80 = vlaneseq
      %v81 = vshrl.u32 %v80, 7
      %v82 = vadd.s32 %v81, 8
      %v83 = vstv %s65
      %vm84 = vcmp.gt.s32.totalorder %v82, %v83
      %v85 = vsel %vm84, %v79, 0.0
      %v86 = vmul.f32 %v85, %v85
      %v87 = vadd.f32 %v77, %v86
      %s88 = scalar_lea.vmem [#allocation1], 16
      %v89 = vld [vmem:[%s88] sm:$0xff]
      %v90 = vlaneseq
      %v91 = vshrl.u32 %v90, 7
      %v92 = vadd.s32 %v91, 16
      %v93 = vstv %s65
      %vm94 = vcmp.gt.s32.totalorder %v92, %v93
      %v95 = vsel %vm94, %v89, 0.0
      %v96 = vmul.f32 %v95, %v95
      %v97 = vadd.f32 %v87, %v96
      %s98 = scalar_lea.vmem [#allocation1], 24
      %v99 = vld [vmem:[%s98] sm:$0xff]
      %v100 = vlaneseq
      %v101 = vshrl.u32 %v100, 7
      %v102 = vadd.s32 %v101, 24
      %v103 = vstv %s65
      %vm104 = vcmp.gt.s32.totalorder %v102, %v103
      %vm105 = vcmp.lt.s32.totalorder %v102, 32
      %vm106 = vmand %vm104, %vm105
      %v107 = vsel %vm106, %v99, 0.0
      %v108 = vmul.f32 %v107, %v107
      %v109 = vadd.f32 %v97, %v108
      %v110 = vrot.slane %v109, 4
      %v111 = vadd.f32 %v109, %v110
      %v112 = vrot.slane %v111, 2
      %v113 = vadd.f32 %v111, %v112
      %v114 = vrot.slane %v113, 1
      %v115 = vadd.f32 %v113, %v114
      %v116 = vrsqrt.pop %v115
      %v117 = vmul.f32 %v115, %v116
      %vm118 = vcmp.eq.f32.partialorder %v115, inf
      %v119 = vsel %vm118, %v115, %v117
      %vm120 = vcmp.eq.f32.partialorder %v115, 0.0
      %v121 = vand.u32 %v115, 2147483648
      %v122 = vsel %vm120, %v121, %v119
      %vm123 = vcmp.eq.f32.partialorder %v115, 0.0
      %s124 = sshrl.u32 %s65, 3
      %s125 = sand.u32 %s65, 7
      %s126 = smul.addr %s124, 8
      %s127 = sadd.s32 %s125, %s126
      %s128 = scalar_lea.vmem [#allocation1], %s127
      %v129 = vld [vmem:[%s128] ss:$0 sm:$0xff]
      %v130 = vand.u32 2147483647, %v129
      %v131 = vmax.f32 %v130, 0.0
      %v132 = vand.u32 2147483647, %v122
      %v133 = vmax.f32 %v131, %v132
      %v134 = vrcp.pop %v133
      %v135 = vmul.f32 %v130, %v134
      %v136 = vmul.f32 %v135, %v135
      %v137 = vrcp.pop %v133
      %v138 = vmul.f32 0.0, %v137
      %v139 = vmul.f32 %v138, %v138
      %v140 = vadd.f32 %v136, %v139
      %v141 = vrcp.pop %v133
      %v142 = vmul.f32 %v132, %v141
      %v143 = vmul.f32 %v142, %v142
      %v144 = vadd.f32 %v140, %v143
      %vm145 = vcmp.eq.f32.partialorder %v133, 0.0
      %v146 = vrsqrt.pop %v144
      %v147 = vmul.f32 %v144, %v146
      %vm148 = vcmp.eq.f32.partialorder %v144, inf
      %v149 = vsel %vm148, %v144, %v147
      %vm150 = vcmp.eq.f32.partialorder %v144, 0.0
      %v151 = vand.u32 %v144, 2147483648
      %v152 = vsel %vm150, %v151, %v149
      %v153 = vmul.f32 %v133, %v152
      %v154 = vsel %vm145, 0.0, %v153
      %vm155 = vcmp.lt.f32.partialorder %v129, 0.0
      %v156 = vxor.u32 %v154, 2147483648
      %v157 = vsel %vm155, %v154, %v156
      %v158 = vsub.f32 %v157, %v129
      %v159 = vrcp.pop %v157
      %v160 = vmul.f32 %v158, %v159
      %v161 = vsel %vm123, %v129, %v157
      %v162 = vsel %vm123, 0.0, %v160
      %v163 = vsub.f32 %v129, %v161
      %s164 = smov [#allocation1]
      %v165 = vlaneseq
      %v166 = vshrl.u32 %v165, 7
      %v167 = vmov %v166
      %v168 = vld [vmem:[%s164] sm:$0xff]
      %v170 = vstv %s65
      %vm171 = vcmp.gt.s32.totalorder %v167, %v170
      %v172 = vsel %vm171, %v168, 0.0
      %v173 = vrcp.pop %v163
      %v174 = vmul.f32 %v172, %v173
      %v175 = vsel %vm123, 0.0, %v174
      %v176 = vstv %s65
      %v177 = vlaneseq
      %v178 = vand.u32 %v177, 127
      %vm179 = vcmp.eq.s32.totalorder %v178, %v176
      %v180 = vsel %vm179, %v175, 0.0
      %181 = vadd.xlane.f32.xlu0 %v180
      %v182 = vpop.xlane.xlu0 %181
      %183 = vst [vmem:[#allocation5] sm:$0xff] %v182
      %s184 = scalar_lea.vmem %s164, 8
      %v185 = vld [vmem:[%s184] sm:$0xff]
      %v186 = vadd.s32 %v167, 8
      %v187 = vstv %s65
      %vm188 = vcmp.gt.s32.totalorder %v186, %v187
      %v189 = vsel %vm188, %v185, 0.0
      %v190 = vrcp.pop %v163
      %v191 = vmul.f32 %v189, %v190
      %v192 = vsel %vm123, 0.0, %v191
      %v193 = vstv %s65
      %v194 = vlaneseq
      %v195 = vand.u32 %v194, 127
      %vm196 = vcmp.eq.s32.totalorder %v195, %v193
      %v197 = vsel %vm196, %v192, 0.0
      %198 = vadd.xlane.f32.xlu0 %v197
      %v199 = vpop.xlane.xlu0 %198
      %s200 = scalar_lea.vmem [#allocation5], 8
      %201 = vst [vmem:[%s200] sm:$0xff] %v199
      %s202 = scalar_lea.vmem %s164, 16
      %v203 = vld [vmem:[%s202] sm:$0xff]
      %v204 = vadd.s32 %v167, 16
      %v205 = vstv %s65
      %vm206 = vcmp.gt.s32.totalorder %v204, %v205
      %v207 = vsel %vm206, %v203, 0.0
      %v208 = vrcp.pop %v163
      %v209 = vmul.f32 %v207, %v208
      %v210 = vsel %vm123, 0.0, %v209
      %v211 = vstv %s65
      %v212 = vlaneseq
      %v213 = vand.u32 %v212, 127
      %vm214 = vcmp.eq.s32.totalorder %v213, %v211
      %v215 = vsel %vm214, %v210, 0.0
      %216 = vadd.xlane.f32.xlu0 %v215
      %v217 = vpop.xlane.xlu0 %216
      %s218 = scalar_lea.vmem [#allocation5], 16
      %219 = vst [vmem:[%s218] sm:$0xff] %v217
      %s220 = scalar_lea.vmem %s164, 24
      %v221 = vld [vmem:[%s220] sm:$0xff]
      %v222 = vadd.s32 %v167, 24
      %v223 = vstv %s65
      %vm224 = vcmp.gt.s32.totalorder %v222, %v223
      %vm225 = vcmp.lt.s32.totalorder %v222, 32
      %vm226 = vmand %vm224, %vm225
      %v227 = vsel %vm226, %v221, 0.0
      %v228 = vrcp.pop %v163
      %v229 = vmul.f32 %v227, %v228
      %v230 = vsel %vm123, 0.0, %v229
      %v231 = vstv %s65
      %v232 = vlaneseq
      %v233 = vand.u32 %v232, 127
      %vm234 = vcmp.eq.s32.totalorder %v233, %v231
      %v235 = vsel %vm234, %v230, 0.0
      %236 = vadd.xlane.f32.xlu0 %v235
      %v237 = vpop.xlane.xlu0 %236
      %s238 = scalar_lea.vmem [#allocation5], 24
      %239 = vst [vmem:[%s238] sm:$0xff] %v237
      %s240 = scalar_lea.vmem [#allocation5], %s65
      %241 = vst [vmem:[%s240] sm:$0x1] 1.0
      %v242 = vstv %s65
      %v243 = vlaneseq
      %v244 = vand.u32 %v243, 127
      %vm245 = vcmp.eq.s32.totalorder %v244, %v242
      %v246 = vsel %vm245, %v162, 0.0
      %247 = vadd.xlane.f32.xlu0 %v246
      %v248 = vpop.xlane.xlu0 %247
      %v249 = vstv %s65
      %v250 = vlaneseq
      %v251 = vand.u32 %v250, 127
      %vm252 = vcmp.eq.s32.totalorder %v251, %v249
      %v253 = vld [vmem:[#allocation2] ss:$0 sm:$0xff]
      %v254 = vsel %vm252, %v248, %v253
      %255 = vst [vmem:[#allocation2] sm:$0x1] %v254
      %s256 = smov [#allocation1]
      %s257 = smov [#allocation5]
      %v258 = vlaneseq
      %v259 = vshrl.u32 %v258, 7
      %v260 = vmov %v259
      %v262 = vld [vmem:[%s257] sm:$0xff]
      %v263 = vld [vmem:[%s256] sm:$0xff]
      %v264 = vmul.f32 %v262, %v263
      %v265 = vadd.s32 %v260, 8
      %s266 = scalar_lea.vmem %s257, 8
      %v267 = vld [vmem:[%s266] sm:$0xff]
      %s268 = scalar_lea.vmem %s256, 8
      %v269 = vld [vmem:[%s268] sm:$0xff]
      %v270 = vmul.f32 %v267, %v269
      %v271 = vadd.f32 %v264, %v270
      %v272 = vadd.s32 %v260, 16
      %s273 = scalar_lea.vmem %s257, 16
      %v274 = vld [vmem:[%s273] sm:$0xff]
      %s275 = scalar_lea.vmem %s256, 16
      %v276 = vld [vmem:[%s275] sm:$0xff]
      %v277 = vmul.f32 %v274, %v276
      %v278 = vadd.f32 %v271, %v277
      %v279 = vadd.s32 %v260, 24
      %s280 = scalar_lea.vmem %s257, 24
      %v281 = vld [vmem:[%s280] sm:$0xff]
      %s282 = scalar_lea.vmem %s256, 24
      %v283 = vld [vmem:[%s282] sm:$0xff]
      %v284 = vmul.f32 %v281, %v283
      %vm285 = vcmp.lt.s32.totalorder %v279, 32
      %v286 = vsel %vm285, %v284, 0.0
      %v287 = vadd.f32 %v278, %v286
      %v288 = vrot.slane %v287, 4
      %v289 = vadd.f32 %v287, %v288
      %v290 = vrot.slane %v289, 2
      %v291 = vadd.f32 %v289, %v290
      %v292 = vrot.slane %v291, 1
      %v293 = vadd.f32 %v291, %v292
      %s294 = smov %s256
      %s295 = smov %s257
      %v296 = vlaneseq
      %v297 = vshrl.u32 %v296, 7
      %v298 = vmov %v297
      %v299 = vmul.f32 %v293, %v248
      %v301 = vlaneseq
      %v302 = vand.u32 %v301, 127
      %v303 = vld [vmem:[%s295] sm:$0xff]
      %v304 = vmul.f32 %v303, %v299
      %v305 = vld [vmem:[%s294] sm:$0xff]
      %v306 = vstv %s65
      %vm307 = vcmp.gt.s32.totalorder %v302, %v306
      %v308 = vsub.f32 %v305, %v304
      %v309 = vsel %vm307, %v308, %v305
      %v310 = vstv %s65
      %v311 = vlaneseq
      %v312 = vand.u32 %v311, 127
      %vm313 = vcmp.eq.s32.totalorder %v312, %v310
      %v314 = vstv %s65
      %vm315 = vcmp.ge.s32.totalorder %v298, %v314
      %vm316 = vmand %vm313, %vm315
      %v317 = vsel %vm316, %v303, %v309
      %318 = vst [vmem:[%s294] sm:$0xff] %v317
      %v319 = vadd.s32 %v298, 8
      %v320 = vlaneseq
      %v321 = vand.u32 %v320, 127
      %s322 = scalar_lea.vmem %s295, 8
      %v323 = vld [vmem:[%s322] sm:$0xff]
      %v324 = vmul.f32 %v323, %v299
      %s325 = scalar_lea.vmem %s294, 8
      %v326 = vld [vmem:[%s325] sm:$0xff]
      %v327 = vstv %s65
      %vm328 = vcmp.gt.s32.totalorder %v321, %v327
      %v329 = vsub.f32 %v326, %v324
      %v330 = vsel %vm328, %v329, %v326
      %v331 = vstv %s65
      %v332 = vlaneseq
      %v333 = vand.u32 %v332, 127
      %vm334 = vcmp.eq.s32.totalorder %v333, %v331
      %v335 = vstv %s65
      %vm336 = vcmp.ge.s32.totalorder %v319, %v335
      %vm337 = vmand %vm334, %vm336
      %v338 = vsel %vm337, %v323, %v330
      %339 = vst [vmem:[%s325] sm:$0xff] %v338
      %v340 = vadd.s32 %v298, 16
      %v341 = vlaneseq
      %v342 = vand.u32 %v341, 127
      %s343 = scalar_lea.vmem %s295, 16
      %v344 = vld [vmem:[%s343] sm:$0xff]
      %v345 = vmul.f32 %v344, %v299
      %s346 = scalar_lea.vmem %s294, 16
      %v347 = vld [vmem:[%s346] sm:$0xff]
      %v348 = vstv %s65
      %vm349 = vcmp.gt.s32.totalorder %v342, %v348
      %v350 = vsub.f32 %v347, %v345
      %v351 = vsel %vm349, %v350, %v347
      %v352 = vstv %s65
      %v353 = vlaneseq
      %v354 = vand.u32 %v353, 127
      %vm355 = vcmp.eq.s32.totalorder %v354, %v352
      %v356 = vstv %s65
      %vm357 = vcmp.ge.s32.totalorder %v340, %v356
      %vm358 = vmand %vm355, %vm357
      %v359 = vsel %vm358, %v344, %v351
      %360 = vst [vmem:[%s346] sm:$0xff] %v359
      %v361 = vadd.s32 %v298, 24
      %v362 = vlaneseq
      %v363 = vand.u32 %v362, 127
      %s364 = scalar_lea.vmem %s295, 24
      %v365 = vld [vmem:[%s364] sm:$0xff]
      %v366 = vmul.f32 %v365, %v299
      %s367 = scalar_lea.vmem %s294, 24
      %v368 = vld [vmem:[%s367] sm:$0xff]
      %v369 = vstv %s65
      %vm370 = vcmp.gt.s32.totalorder %v363, %v369
      %v371 = vsub.f32 %v368, %v366
      %v372 = vsel %vm370, %v371, %v368
      %v373 = vstv %s65
      %v374 = vlaneseq
      %v375 = vand.u32 %v374, 127
      %vm376 = vcmp.eq.s32.totalorder %v375, %v373
      %v377 = vstv %s65
      %vm378 = vcmp.ge.s32.totalorder %v361, %v377
      %vm379 = vmand %vm376, %vm378
      %v380 = vsel %vm379, %v365, %v372
      %381 = vst [vmem:[%s367] sm:$0xff] %v380
      %s382 = scalar_lea.vmem %s294, %s65
      %v383 = vld [vmem:[%s382] ss:$0 sm:$0xff]
      %v384 = vstv %s65
      %v385 = vlaneseq
      %v386 = vand.u32 %v385, 127
      %vm387 = vcmp.eq.s32.totalorder %v386, %v384
      %v388 = vsel %vm387, %v161, %v383
      %389 = vst [vmem:[%s382] sm:$0x1] %v388
    $region40: #{custom-call.109} parent=1 // loop_footer
      %s69 = sadd.s32 1, %s65
    $region41: #{custom-call.109} parent=1 // loop_footer_branch
      %64 = sbr.rel target = $region37
    $region42: #{custom-call.109} parent=1 // loop_exit
      _
    %s391 = sshllo.u32 0, 1
    %v393 = vld [vmem:[#allocation2] sm:%s391]
    %s394 = sshllo.u32 0, 1
    %395 = vst [vmem:[#allocation3] sm:%s394] %v393
    // Predicated region
    $region43: #{custom-call.109} parent=1 // pred_check
      _
    $region44: #{custom-call.109} parent=1 // pred_check_branch
      %397 = sbr.rel (0) target = $region46
    $region45: #{custom-call.109} parent=1 // pred_region
      // Predicated region
      $region47: #{custom-call.109} parent=45 // pred_check
        _
      $region48: #{custom-call.109} parent=45 // pred_check_branch
        %399 = sbr.rel (0) target = $region50
      $region49: #{custom-call.109} parent=45 // pred_region
        // Predicated region
        $region62: #{custom-call.109} parent=49 // pred_check
          _
        $region63: #{custom-call.109} parent=49 // pred_check_branch
          %420 = sbr.rel (0) target = $region65
        $region64: #{custom-call.109} parent=49 // pred_region
          loop: start=0, step=1, limit=1
          $region66: #{custom-call.109} parent=64 // loop_pre_header
            _
          $region67: #{custom-call.109} parent=64 // loop_header
            %s422 = sphi 0, %s426
            %p423 = scmp.ge.s32.totalorder %s422, 1
            %s427 = sphi [#allocation1], [#allocation1]
            %s428 = sphi %s1, %s1
          $region68: #{custom-call.109} parent=64 // loop_header_branch
            %425 = sbr.rel (%p423) target = $region72
          $region69: #{custom-call.109} parent=64 // loop_body
            %v429 = vld [vmem:[%s427] sm:$0xff]
            %430 = vst [vmem:[%s428] sm:$0xff] %v429
            %v431 = vld [vmem:[%s427 + $0x8] sm:$0xff]
            %432 = vst [vmem:[%s428 + $0x8] sm:$0xff] %v431
            %v433 = vld [vmem:[%s427 + $0x10] sm:$0xff]
            %434 = vst [vmem:[%s428 + $0x10] sm:$0xff] %v433
            %v435 = vld [vmem:[%s427 + $0x18] sm:$0xff]
            %436 = vst [vmem:[%s428 + $0x18] sm:$0xff] %v435
          $region70: #{custom-call.109} parent=64 // loop_footer
            %s426 = sadd.s32 1, %s422
          $region71: #{custom-call.109} parent=64 // loop_footer_branch
            %421 = sbr.rel target = $region67
          $region72: #{custom-call.109} parent=64 // loop_exit
            _
        $region65: #{custom-call.109} parent=49 // pred_fallthru
          _
        // Predicated region
        $region73: #{custom-call.109} parent=49 // pred_check
          _
        $region74: #{custom-call.109} parent=49 // pred_check_branch
          %438 = sbr.rel target = $region76
        $region75: #{custom-call.109} parent=49 // pred_region
          _
        $region76: #{custom-call.109} parent=49 // pred_fallthru
          _
      $region50: #{custom-call.109} parent=45 // pred_fallthru
        _
      // Predicated region
      $region51: #{custom-call.109} parent=45 // pred_check
        _
      $region52: #{custom-call.109} parent=45 // pred_check_branch
        %401 = sbr.rel target = $region54
      $region53: #{custom-call.109} parent=45 // pred_region
        loop: start=0, step=1, limit=1
        $region55: #{custom-call.109} parent=53 // loop_pre_header
          _
        $region56: #{custom-call.109} parent=53 // loop_header
          %s404 = sphi 0, %s408
          %p405 = scmp.ge.s32.totalorder %s404, 1
          %s409 = sphi [#allocation1], [#allocation1]
          %s410 = sphi %s1, %s1
        $region57: #{custom-call.109} parent=53 // loop_header_branch
          %407 = sbr.rel (%p405) target = $region61
        $region58: #{custom-call.109} parent=53 // loop_body
          %v411 = vld [vmem:[%s409] sm:$0xff]
          %412 = vst [vmem:[%s410] sm:$0xff] %v411
          %v413 = vld [vmem:[%s409 + $0x8] sm:$0xff]
          %414 = vst [vmem:[%s410 + $0x8] sm:$0xff] %v413
          %v415 = vld [vmem:[%s409 + $0x10] sm:$0xff]
          %416 = vst [vmem:[%s410 + $0x10] sm:$0xff] %v415
          %v417 = vld [vmem:[%s409 + $0x18] sm:$0xff]
          %418 = vst [vmem:[%s410 + $0x18] sm:$0xff] %v417
        $region59: #{custom-call.109} parent=53 // loop_footer
          %s408 = sadd.s32 1, %s404
        $region60: #{custom-call.109} parent=53 // loop_footer_branch
          %403 = sbr.rel target = $region56
        $region61: #{custom-call.109} parent=53 // loop_exit
          _
      $region54: #{custom-call.109} parent=45 // pred_fallthru
        _
    $region46: #{custom-call.109} parent=1 // pred_fallthru
      _
    %439 = vnop
    // Predicated region
    $region77: #{custom-call.109} parent=1 // pred_check
      _
    $region78: #{custom-call.109} parent=1 // pred_check_branch
      %441 = sbr.rel (0) target = $region80
    $region79: #{custom-call.109} parent=1 // pred_region
      %s443 = ssub.s32 16, 16
      %444 = vsyncadd [#allocation4], %s443
      %s446 = sshll.u32 [#allocation3], 4
      %s447 = int_to_ptr.vmem [resolvable:$true] %s446
      %449 = dma.vmem_to_hbm [thread:$0]  %s447, 16, %s2, [#allocation4]
    $region80: #{custom-call.109} parent=1 // pred_fallthru
      _
    // Predicated region
    $region81: #{custom-call.109} parent=1 // pred_check
      _
    $region82: #{custom-call.109} parent=1 // pred_check_branch
      %451 = sbr.rel (0) target = $region84
    $region83: #{custom-call.109} parent=1 // pred_region
      %452 = dma.done [#allocation4], 16
    $region84: #{custom-call.109} parent=1 // pred_fallthru
      _
    %453 = vsyncpa [#allocation4], 1

</llo_original>
